<compile_context>
chip_gen: v5e
topology: v5e:2x2
jax: 0.10.0
libtpu: 0.0.40
codegen_flags: <defaults>
</compile_context>

<pallas_src>
import functools

import jax
import jax.numpy as jnp
from jax.experimental import pallas as pl
from jax.experimental.pallas import tpu as pltpu

# ---------------- config (scaled-down densenet) ----------------
GROWTH = 8
BN_SIZE = 4
INIT_FEATURES = 16
BLOCK_CONFIG = (2, 2, 2, 2)
NUM_CLASSES = 10
BN_EPS = 1e-5

LANE = 128


# ---------------- tiling helpers ----------------
def _round_up(x, m):
    return (x + m - 1) // m * m


def _pick_div(d, cands):
    for c in cands:
        if d % c == 0:
            return c
    return d


def _choose_m(m):
    # tile the row dim; keep tm a multiple of 8 (sublane) and <= 256
    if m >= 256:
        tm = 256
    else:
        tm = _round_up(m, 8)
    return _round_up(m, tm), tm


# ---------------- fused (BN-ReLU ->) matmul (-> BN-ReLU | +bias) kernel -----
def _make_mm_kernel(pre_act, post_mode):
    """pre_act: apply relu(x*s+b) on the activation tile before the dot.
    post_mode: 'none' | 'bn_relu' | 'bias' epilogue on the accumulator."""

    def kernel(*refs):
        idx = 0
        x_ref = refs[idx]; idx += 1
        w_ref = refs[idx]; idx += 1
        if pre_act:
            ps_ref = refs[idx]; pb_ref = refs[idx + 1]; idx += 2
        if post_mode == "bn_relu":
            qs_ref = refs[idx]; qb_ref = refs[idx + 1]; idx += 2
        elif post_mode == "bias":
            qb_ref = refs[idx]; idx += 1
        o_ref = refs[idx]
        acc_ref = refs[idx + 1]

        k = pl.program_id(2)

        @pl.when(k == 0)
        def _():
            acc_ref[...] = jnp.zeros_like(acc_ref)

        a = x_ref[...]
        if pre_act:
            # folded BN (scale/shift) + ReLU prologue, f32 math
            a = jnp.maximum(a * ps_ref[...] + pb_ref[...], 0.0)
        acc_ref[...] += jnp.dot(
            a.astype(jnp.bfloat16), w_ref[...],
            preferred_element_type=jnp.float32)

        @pl.when(k == pl.num_programs(2) - 1)
        def _():
            r = acc_ref[...]
            if post_mode == "bn_relu":
                r = jnp.maximum(r * qs_ref[...] + qb_ref[...], 0.0)
            elif post_mode == "bias":
                r = r + qb_ref[...]
            o_ref[...] = r.astype(o_ref.dtype)

    return kernel


def fused_matmul(x, w, pre_bn=None, post_bn=None, bias=None):
    """out = epilogue( prologue(x) @ w )   with lane-padded, tiled MXU matmul.

    x: [M, K] f32, w: [K, N] f32 (cast to bf16 here),
    pre_bn/post_bn: (scale, shift) folded BN vectors (len K / len N),
    bias: len-N vector (FC).  Returns [M, N] f32 (padding sliced off).
    """
    M, K = x.shape
    Kw, N = w.shape
    assert K == Kw

    M_pad, tm = _choose_m(M)
    K_pad = _round_up(K, LANE)
    tk = _pick_div(K_pad, (512, 256, 128))
    N_pad = _round_up(N, LANE)
    tn = _pick_div(N_pad, (256, 128))

    x_p = jnp.pad(x, ((0, M_pad - M), (0, K_pad - K)))
    w_p = jnp.pad(w, ((0, K_pad - K), (0, N_pad - N))).astype(jnp.bfloat16)

    args = [x_p, w_p]
    in_specs = [
        pl.BlockSpec((tm, tk), lambda i, j, k: (i, k)),
        pl.BlockSpec((tk, tn), lambda i, j, k: (k, j)),
    ]

    pre_act = pre_bn is not None
    if pre_act:
        s, b = pre_bn
        args += [
            jnp.pad(s, (0, K_pad - K)).reshape(1, K_pad),
            jnp.pad(b, (0, K_pad - K)).reshape(1, K_pad),
        ]
        in_specs += [pl.BlockSpec((1, tk), lambda i, j, k: (0, k))] * 2

    if post_bn is not None:
        post_mode = "bn_relu"
        s, b = post_bn
        args += [
            jnp.pad(s, (0, N_pad - N)).reshape(1, N_pad),
            jnp.pad(b, (0, N_pad - N)).reshape(1, N_pad),
        ]
        in_specs += [pl.BlockSpec((1, tn), lambda i, j, k: (0, j))] * 2
    elif bias is not None:
        post_mode = "bias"
        args.append(jnp.pad(bias, (0, N_pad - N)).reshape(1, N_pad))
        in_specs.append(pl.BlockSpec((1, tn), lambda i, j, k: (0, j)))
    else:
        post_mode = "none"

    out = pl.pallas_call(
        _make_mm_kernel(pre_act, post_mode),
        out_shape=jax.ShapeDtypeStruct((M_pad, N_pad), jnp.float32),
        grid_spec=pltpu.PrefetchScalarGridSpec(
            num_scalar_prefetch=0,
            grid=(M_pad // tm, N_pad // tn, K_pad // tk),
            in_specs=in_specs,
            out_specs=pl.BlockSpec((tm, tn), lambda i, j, k: (i, j)),
            scratch_shapes=[pltpu.VMEM((tm, tn), jnp.float32)],
        ),
        compiler_params=pltpu.CompilerParams(
            dimension_semantics=("parallel", "parallel", "arbitrary")),
    )(*args)
    return out[:M, :N]


# ---------------- fused tail kernel: BN+ReLU -> global avg pool -> FC -------
def _tail_kernel(x_ref, s_ref, b_ref, w_ref, fb_ref, o_ref):
    x = x_ref[0]                                             # [HW, C_pad]
    y = jnp.maximum(x * s_ref[...] + b_ref[...], 0.0)        # BN + ReLU (f32)
    m = jnp.mean(y, axis=0, keepdims=True)                   # global avg pool
    o_ref[0] = (jnp.dot(m.astype(jnp.bfloat16), w_ref[...],
                        preferred_element_type=jnp.float32)
                + fb_ref[...])


def fused_tail(x_nhwc, norm, fc_w, fc_b):
    N, H, W, C = x_nhwc.shape
    HW = H * W
    C_pad = _round_up(C, LANE)
    ncls = fc_w.shape[1]
    N_pad = _round_up(ncls, LANE)

    x3 = jnp.pad(x_nhwc.reshape(N, HW, C), ((0, 0), (0, 0), (0, C_pad - C)))
    s, b = norm
    s_p = jnp.pad(s, (0, C_pad - C)).reshape(1, C_pad)
    b_p = jnp.pad(b, (0, C_pad - C)).reshape(1, C_pad)
    w_p = jnp.pad(fc_w, ((0, C_pad - C), (0, N_pad - ncls))).astype(jnp.bfloat16)
    fb_p = jnp.pad(fc_b, (0, N_pad - ncls)).reshape(1, N_pad)

    out = pl.pallas_call(
        _tail_kernel,
        out_shape=jax.ShapeDtypeStruct((N, 1, N_pad), jnp.float32),
        grid=(N,),
        in_specs=[
            pl.BlockSpec((1, HW, C_pad), lambda n: (n, 0, 0)),
            pl.BlockSpec((1, C_pad), lambda n: (0, 0)),
            pl.BlockSpec((1, C_pad), lambda n: (0, 0)),
            pl.BlockSpec((C_pad, N_pad), lambda n: (0, 0)),
            pl.BlockSpec((1, N_pad), lambda n: (0, 0)),
        ],
        out_specs=pl.BlockSpec((1, 1, N_pad), lambda n: (n, 0, 0)),
        compiler_params=pltpu.CompilerParams(
            dimension_semantics=("parallel",)),
    )(x3, s_p, b_p, w_p, fb_p)
    return out[:, 0, :ncls]


# ---------------- glue: im2col, pooling (XLA, small) ----------------
def _im2col(x, kh, kw, stride, pad):
    # x: [N, H, W, C] -> patches [N*oh*ow, kh*kw*C]
    N, H, W, C = x.shape
    xp = jnp.pad(x, ((0, 0), (pad, pad), (pad, pad), (0, 0)))
    oh = (H + 2 * pad - kh) // stride + 1
    ow = (W + 2 * pad - kw) // stride + 1
    parts = []
    for i in range(kh):
        for j in range(kw):
            parts.append(
                xp[:, i: i + stride * oh: stride, j: j + stride * ow: stride, :])
    p = jnp.stack(parts, axis=3)              # [N, oh, ow, kh*kw, C]
    return p.reshape(N * oh * ow, kh * kw * C), oh, ow


def conv2d_fused(x_nhwc, w_oihw, stride=1, pad=0, pre_bn=None, post_bn=None):
    """conv (no bias) with optional fused pre BN+ReLU and post BN+ReLU."""
    Cout, Cin, kh, kw = w_oihw.shape
    N, H, W, C = x_nhwc.shape
    assert C == Cin
    if kh == 1 and kw == 1 and stride == 1 and pad == 0:
        patches = x_nhwc.reshape(N * H * W, C)
        oh, ow = H, W
        pre = pre_bn
    else:
        patches, oh, ow = _im2col(x_nhwc, kh, kw, stride, pad)
        pre = None
        if pre_bn is not None:
            s, b = pre_bn
            pre = (jnp.tile(s, kh * kw), jnp.tile(b, kh * kw))
    wm = jnp.transpose(w_oihw, (2, 3, 1, 0)).reshape(kh * kw * Cin, Cout)
    out = fused_matmul(patches, wm, pre_bn=pre, post_bn=post_bn)
    return out.reshape(N, oh, ow, Cout)


def maxpool_3x3_s2_p1(x):
    N, H, W, C = x.shape
    xp = jnp.pad(x, ((0, 0), (1, 1), (1, 1), (0, 0)), constant_values=-jnp.inf)
    oh = (H + 2 - 3) // 2 + 1
    ow = (W + 2 - 3) // 2 + 1
    parts = []
    for i in range(3):
        for j in range(3):
            parts.append(xp[:, i: i + 2 * oh: 2, j: j + 2 * ow: 2, :])
    return jnp.max(jnp.stack(parts, 0), axis=0)


def avgpool_2x2(x):
    N, H, W, C = x.shape
    assert H % 2 == 0 and W % 2 == 0
    return x.reshape(N, H // 2, 2, W // 2, 2, C).mean(axis=(2, 4))


# ---------------- deterministic parameter init ----------------
def _conv_w(key, cout, cin, kh, kw):
    fan_in = cin * kh * kw
    return (jax.random.normal(key, (cout, cin, kh, kw))
            * (2.0 / fan_in) ** 0.5).astype(jnp.float32)


def _bn_params(key, c):
    k1, k2, k3, k4 = jax.random.split(key, 4)
    gamma = jax.random.uniform(k1, (c,), minval=0.8, maxval=1.2)
    beta = jax.random.normal(k2, (c,)) * 0.05
    mean = jax.random.normal(k3, (c,)) * 0.05
    var = jax.random.uniform(k4, (c,), minval=0.8, maxval=1.2)
    scale = gamma / jnp.sqrt(var + BN_EPS)
    shift = beta - mean * scale
    return scale.astype(jnp.float32), shift.astype(jnp.float32)


def init_params(key):
    keys = iter(jax.random.split(key, 256))
    params = {}
    params["conv0"] = _conv_w(next(keys), INIT_FEATURES, 3, 7, 7)
    params["norm0"] = _bn_params(next(keys), INIT_FEATURES)
    nf = INIT_FEATURES
    for bi, nl in enumerate(BLOCK_CONFIG):
        for li in range(nl):
            cin = nf + li * GROWTH
            params[f"b{bi}_l{li}"] = {
                "norm1": _bn_params(next(keys), cin),
                "conv1": _conv_w(next(keys), BN_SIZE * GROWTH, cin, 1, 1),
                "norm2": _bn_params(next(keys), BN_SIZE * GROWTH),
                "conv2": _conv_w(next(keys), GROWTH, BN_SIZE * GROWTH, 3, 3),
            }
        nf = nf + nl * GROWTH
        if bi != len(BLOCK_CONFIG) - 1:
            cout = nf // 2
            params[f"t{bi}"] = {
                "norm": _bn_params(next(keys), nf),
                "conv": _conv_w(next(keys), cout, nf, 1, 1),
            }
            nf = cout
    params["norm5"] = _bn_params(next(keys), nf)
    kw_, kb_ = jax.random.split(next(keys))
    params["fc_w"] = (jax.random.normal(kw_, (nf, NUM_CLASSES)) * 0.05).astype(
        jnp.float32)
    params["fc_b"] = (jax.random.normal(kb_, (NUM_CLASSES,)) * 0.05).astype(
        jnp.float32)
    return params


# ---------------- forward (== timm_model.forward -> backbone(x)) ----------
@functools.partial(jax.jit, static_argnums=())
def timm_model_forward(x_nchw, params):
    # labels arg of the PyTorch module is ignored in forward; same here.
    x = jnp.transpose(x_nchw, (0, 2, 3, 1)).astype(jnp.float32)  # NCHW -> NHWC

    # stem: conv7x7/2 (+ fused norm0+ReLU epilogue) -> maxpool3x3/2
    x = conv2d_fused(x, params["conv0"], stride=2, pad=3,
                     post_bn=params["norm0"])
    x = maxpool_3x3_s2_p1(x)

    for bi, nl in enumerate(BLOCK_CONFIG):
        feats = x
        for li in range(nl):
            p = params[f"b{bi}_l{li}"]
            # norm1+ReLU -> 1x1 conv -> norm2+ReLU  : ONE fused kernel
            y = conv2d_fused(feats, p["conv1"],
                             pre_bn=p["norm1"], post_bn=p["norm2"])
            # 3x3 conv on the already-activated bottleneck output
            y = conv2d_fused(y, p["conv2"], stride=1, pad=1)
            # TODO(synk): replace growing concat with aliased column writes
            # into a preallocated lane-padded feature slab for full densenet.
            feats = jnp.concatenate([feats, y], axis=-1)
        x = feats
        if bi != len(BLOCK_CONFIG) - 1:
            p = params[f"t{bi}"]
            # transition: norm+ReLU fused into the 1x1 compression conv
            x = conv2d_fused(x, p["conv"], pre_bn=p["norm"])
            x = avgpool_2x2(x)

    # tail: norm5+ReLU -> global avg pool -> FC (+bias), one fused kernel
    logits = fused_tail(x, params["norm5"], params["fc_w"], params["fc_b"])
    return logits


if __name__ == "__main__":
    key = jax.random.PRNGKey(0)
    kx, kp = jax.random.split(key)
    x = jax.random.normal(kx, (2, 3, 32, 32), dtype=jnp.float32)  # NCHW input
    params = init_params(kp)
    out = timm_model_forward(x, params)
    out = jax.block_until_ready(out)
    assert out.shape == (2, NUM_CLASSES) and out.dtype == jnp.float32
    assert bool(jnp.all(jnp.isfinite(out)))
    print("KERNEL_OK")
</pallas_src>

<mosaic_0001>
module attributes {stable_mosaic.version = 11 : i64} {
  func.func @kernel(%arg0: i32, %arg1: i32, %arg2: i32, %arg3: memref<256x256xf32, #tpu.memory_space<vmem>>, %arg4: memref<256x128xbf16, #tpu.memory_space<vmem>>, %arg5: memref<1x128xf32, #tpu.memory_space<vmem>>, %arg6: memref<1x128xf32, #tpu.memory_space<vmem>>, %arg7: memref<256x128xf32, #tpu.memory_space<vmem>>, %arg8: memref<256x128xf32, #tpu.memory_space<vmem>>) attributes {dimension_semantics = [#tpu.dimension_semantics<parallel>, #tpu.dimension_semantics<parallel>, #tpu.dimension_semantics<arbitrary>], iteration_bounds = array<i64: 2, 1, 1>, scalar_prefetch = 0 : i64, scratch_operands = 1 : i64, tpu.core_type = #tpu.core_type<tc>, window_params = [{transform_indices = @transform_0, window_bounds = array<i64: 256, 256>}, {transform_indices = @transform_1, window_bounds = array<i64: 256, 128>}, {transform_indices = @transform_2, window_bounds = array<i64: 1, 128>}, {transform_indices = @transform_3, window_bounds = array<i64: 1, 128>}, {transform_indices = @transform_4, window_bounds = array<i64: 256, 128>}]} {
    %c0_i32 = arith.constant 0 : i32
    %0 = arith.cmpi eq, %arg2, %c0_i32 : i32
    %1 = arith.extui %0 : i1 to i32
    %c0_i32_0 = arith.constant 0 : i32
    %2 = arith.cmpi ne, %1, %c0_i32_0 : i32
    scf.if %2 {
      %cst_10 = arith.constant 0.000000e+00 : f32
      %13 = vector.broadcast %cst_10 : f32 to vector<256x128xf32>
      %c0_11 = arith.constant 0 : index
      %c0_12 = arith.constant 0 : index
      %14 = vector.load %arg8[%c0_11, %c0_12] : memref<256x128xf32, #tpu.memory_space<vmem>>, vector<256x128xf32>
      tpu.vector_store %arg8[%c0_11, %c0_12], %13 {strides = array<i32>} : memref<256x128xf32, #tpu.memory_space<vmem>>, vector<256x128xf32>,
    } else {
    }
    %c0 = arith.constant 0 : index
    %c0_1 = arith.constant 0 : index
    %3 = vector.load %arg3[%c0, %c0_1] : memref<256x256xf32, #tpu.memory_space<vmem>>, vector<256x256xf32>
    %c0_2 = arith.constant 0 : index
    %c0_3 = arith.constant 0 : index
    %4 = vector.load %arg8[%c0_2, %c0_3] : memref<256x128xf32, #tpu.memory_space<vmem>>, vector<256x128xf32>
    %5 = arith.truncf %3 : vector<256x256xf32> to vector<256x256xbf16>
    %c0_4 = arith.constant 0 : index
    %c0_5 = arith.constant 0 : index
    %6 = vector.load %arg4[%c0_4, %c0_5] : memref<256x128xbf16, #tpu.memory_space<vmem>>, vector<256x128xbf16>
    %cst = arith.constant dense<0.000000e+00> : vector<256x128xf32>
    %7 = tpu.matmul %5, %6, %cst {dimension_numbers = #tpu.dot_dimension_numbers<[1], [0], [0], [1], [0, 0, 1, 1], [], []>} : vector<256x256xbf16>, vector<256x128xbf16>, vector<256x128xf32> -> vector<256x128xf32>
    %8 = arith.addf %4, %7 : vector<256x128xf32>
    %c0_6 = arith.constant 0 : index
    %c0_7 = arith.constant 0 : index
    %9 = vector.load %arg8[%c0_6, %c0_7] : memref<256x128xf32, #tpu.memory_space<vmem>>, vector<256x128xf32>
    tpu.vector_store %arg8[%c0_6, %c0_7], %8 {strides = array<i32>} : memref<256x128xf32, #tpu.memory_space<vmem>>, vector<256x128xf32>,
    %c0_i32_8 = arith.constant 0 : i32
    %10 = arith.cmpi eq, %arg2, %c0_i32_8 : i32
    %11 = arith.extui %10 : i1 to i32
    %c0_i32_9 = arith.constant 0 : i32
    %12 = arith.cmpi ne, %11, %c0_i32_9 : i32
    scf.if %12 {
      %c0_10 = arith.constant 0 : index
      %c0_11 = arith.constant 0 : index
      %13 = vector.load %arg8[%c0_10, %c0_11] : memref<256x128xf32, #tpu.memory_space<vmem>>, vector<256x128xf32>
      %c0_12 = arith.constant 0 : index
      %c0_13 = arith.constant 0 : index
      %14 = vector.load %arg5[%c0_12, %c0_13] : memref<1x128xf32, #tpu.memory_space<vmem>>, vector<1x128xf32>
      %15 = vector.broadcast %14 : vector<1x128xf32> to vector<256x128xf32>
      %16 = arith.mulf %13, %15 : vector<256x128xf32>
      %c0_14 = arith.constant 0 : index
      %c0_15 = arith.constant 0 : index
      %17 = vector.load %arg6[%c0_14, %c0_15] : memref<1x128xf32, #tpu.memory_space<vmem>>, vector<1x128xf32>
      %18 = vector.broadcast %17 : vector<1x128xf32> to vector<256x128xf32>
      %19 = arith.addf %16, %18 : vector<256x128xf32>
      %cst_16 = arith.constant 0.000000e+00 : f32
      %20 = vector.broadcast %cst_16 : f32 to vector<256x128xf32>
      %21 = arith.maximumf %19, %20 : vector<256x128xf32>
      %c0_17 = arith.constant 0 : index
      %c0_18 = arith.constant 0 : index
      %22 = vector.load %arg7[%c0_17, %c0_18] : memref<256x128xf32, #tpu.memory_space<vmem>>, vector<256x128xf32>
      tpu.vector_store %arg7[%c0_17, %c0_18], %21 {strides = array<i32>} : memref<256x128xf32, #tpu.memory_space<vmem>>, vector<256x128xf32>,
    } else {
    }
    return
  }
  func.func @transform_0(%arg0: i32, %arg1: i32, %arg2: i32) -> (i32, i32) {
    %c0_i32 = arith.constant 0 : i32
    return %arg0, %arg2 : i32, i32
  }
  func.func @transform_1(%arg0: i32, %arg1: i32, %arg2: i32) -> (i32, i32) {
    %c0_i32 = arith.constant 0 : i32
    return %arg2, %arg1 : i32, i32
  }
  func.func @transform_2(%arg0: i32, %arg1: i32, %arg2: i32) -> (i32, i32) {
    %c0_i32 = arith.constant 0 : i32
    %c0_i32_0 = arith.constant 0 : i32
    return %c0_i32, %arg1 : i32, i32
  }
  func.func @transform_3(%arg0: i32, %arg1: i32, %arg2: i32) -> (i32, i32) {
    %c0_i32 = arith.constant 0 : i32
    %c0_i32_0 = arith.constant 0 : i32
    return %c0_i32, %arg1 : i32, i32
  }
  func.func @transform_4(%arg0: i32, %arg1: i32, %arg2: i32) -> (i32, i32) {
    %c0_i32 = arith.constant 0 : i32
    return %arg0, %arg1 : i32, i32
  }
}

module attributes {stable_mosaic.version = 11 : i64} {
  func.func @kernel(%arg0: i32, %arg1: i32, %arg2: i32, %arg3: memref<128x128xf32, #tpu.memory_space<vmem>>, %arg4: memref<128x128xbf16, #tpu.memory_space<vmem>>, %arg5: memref<1x128xf32, #tpu.memory_space<vmem>>, %arg6: memref<1x128xf32, #tpu.memory_space<vmem>>, %arg7: memref<1x128xf32, #tpu.memory_space<vmem>>, %arg8: memref<1x128xf32, #tpu.memory_space<vmem>>, %arg9: memref<128x128xf32, #tpu.memory_space<vmem>>, %arg10: memref<128x128xf32, #tpu.memory_space<vmem>>) attributes {dimension_semantics = [#tpu.dimension_semantics<parallel>, #tpu.dimension_semantics<parallel>, #tpu.dimension_semantics<arbitrary>], iteration_bounds = array<i64: 1, 1, 1>, scalar_prefetch = 0 : i64, scratch_operands = 1 : i64, tpu.core_type = #tpu.core_type<tc>, window_params = [{transform_indices = @transform_0, window_bounds = array<i64: 128, 128>}, {transform_indices = @transform_1, window_bounds = array<i64: 128, 128>}, {transform_indices = @transform_2, window_bounds = array<i64: 1, 128>}, {transform_indices = @transform_3, window_bounds = array<i64: 1, 128>}, {transform_indices = @transform_4, window_bounds = array<i64: 1, 128>}, {transform_indices = @transform_5, window_bounds = array<i64: 1, 128>}, {transform_indices = @transform_6, window_bounds = array<i64: 128, 128>}]} {
    %c0_i32 = arith.constant 0 : i32
    %0 = arith.cmpi eq, %arg2, %c0_i32 : i32
    %1 = arith.extui %0 : i1 to i32
    %c0_i32_0 = arith.constant 0 : i32
    %2 = arith.cmpi ne, %1, %c0_i32_0 : i32
    scf.if %2 {
      %cst_15 = arith.constant 0.000000e+00 : f32
      %21 = vector.broadcast %cst_15 : f32 to vector<128x128xf32>
      %c0_16 = arith.constant 0 : index
      %c0_17 = arith.constant 0 : index
      %22 = vector.load %arg10[%c0_16, %c0_17] : memref<128x128xf32, #tpu.memory_space<vmem>>, vector<128x128xf32>
      tpu.vector_store %arg10[%c0_16, %c0_17], %21 {strides = array<i32>} : memref<128x128xf32, #tpu.memory_space<vmem>>, vector<128x128xf32>,
    } else {
    }
    %c0 = arith.constant 0 : index
    %c0_1 = arith.constant 0 : index
    %3 = vector.load %arg3[%c0, %c0_1] : memref<128x128xf32, #tpu.memory_space<vmem>>, vector<128x128xf32>
    %c0_2 = arith.constant 0 : index
    %c0_3 = arith.constant 0 : index
    %4 = vector.load %arg5[%c0_2, %c0_3] : memref<1x128xf32, #tpu.memory_space<vmem>>, vector<1x128xf32>
    %5 = vector.broadcast %4 : vector<1x128xf32> to vector<128x128xf32>
    %6 = arith.mulf %3, %5 : vector<128x128xf32>
    %c0_4 = arith.constant 0 : index
    %c0_5 = arith.constant 0 : index
    %7 = vector.load %arg6[%c0_4, %c0_5] : memref<1x128xf32, #tpu.memory_space<vmem>>, vector<1x128xf32>
    %8 = vector.broadcast %7 : vector<1x128xf32> to vector<128x128xf32>
    %9 = arith.addf %6, %8 : vector<128x128xf32>
    %cst = arith.constant 0.000000e+00 : f32
    %10 = vector.broadcast %cst : f32 to vector<128x128xf32>
    %11 = arith.maximumf %9, %10 : vector<128x128xf32>
    %c0_6 = arith.constant 0 : index
    %c0_7 = arith.constant 0 : index
    %12 = vector.load %arg10[%c0_6, %c0_7] : memref<128x128xf32, #tpu.memory_space<vmem>>, vector<128x128xf32>
    %13 = arith.truncf %11 : vector<128x128xf32> to vector<128x128xbf16>
    %c0_8 = arith.constant 0 : index
    %c0_9 = arith.constant 0 : index
    %14 = vector.load %arg4[%c0_8, %c0_9] : memref<128x128xbf16, #tpu.memory_space<vmem>>, vector<128x128xbf16>
    %cst_10 = arith.constant dense<0.000000e+00> : vector<128x128xf32>
    %15 = tpu.matmul %13, %14, %cst_10 {dimension_numbers = #tpu.dot_dimension_numbers<[1], [0], [0], [1], [0, 0, 1, 1], [], []>} : vector<128x128xbf16>, vector<128x128xbf16>, vector<128x128xf32> -> vector<128x128xf32>
    %16 = arith.addf %12, %15 : vector<128x128xf32>
    %c0_11 = arith.constant 0 : index
    %c0_12 = arith.constant 0 : index
    %17 = vector.load %arg10[%c0_11, %c0_12] : memref<128x128xf32, #tpu.memory_space<vmem>>, vector<128x128xf32>
    tpu.vector_store %arg10[%c0_11, %c0_12], %16 {strides = array<i32>} : memref<128x128xf32, #tpu.memory_space<vmem>>, vector<128x128xf32>,
    %c0_i32_13 = arith.constant 0 : i32
    %18 = arith.cmpi eq, %arg2, %c0_i32_13 : i32
    %19 = arith.extui %18 : i1 to i32
    %c0_i32_14 = arith.constant 0 : i32
    %20 = arith.cmpi ne, %19, %c0_i32_14 : i32
    scf.if %20 {
      %c0_15 = arith.constant 0 : index
      %c0_16 = arith.constant 0 : index
      %21 = vector.load %arg10[%c0_15, %c0_16] : memref<128x128xf32, #tpu.memory_space<vmem>>, vector<128x128xf32>
      %c0_17 = arith.constant 0 : index
      %c0_18 = arith.constant 0 : index
      %22 = vector.load %arg7[%c0_17, %c0_18] : memref<1x128xf32, #tpu.memory_space<vmem>>, vector<1x128xf32>
      %23 = vector.broadcast %22 : vector<1x128xf32> to vector<128x128xf32>
      %24 = arith.mulf %21, %23 : vector<128x128xf32>
      %c0_19 = arith.constant 0 : index
      %c0_20 = arith.constant 0 : index
      %25 = vector.load %arg8[%c0_19, %c0_20] : memref<1x128xf32, #tpu.memory_space<vmem>>, vector<1x128xf32>
      %26 = vector.broadcast %25 : vector<1x128xf32> to vector<128x128xf32>
      %27 = arith.addf %24, %26 : vector<128x128xf32>
      %cst_21 = arith.constant 0.000000e+00 : f32
      %28 = vector.broadcast %cst_21 : f32 to vector<128x128xf32>
      %29 = arith.maximumf %27, %28 : vector<128x128xf32>
      %c0_22 = arith.constant 0 : index
      %c0_23 = arith.constant 0 : index
      %30 = vector.load %arg9[%c0_22, %c0_23] : memref<128x128xf32, #tpu.memory_space<vmem>>, vector<128x128xf32>
      tpu.vector_store %arg9[%c0_22, %c0_23], %29 {strides = array<i32>} : memref<128x128xf32, #tpu.memory_space<vmem>>, vector<128x128xf32>,
    } else {
    }
    return
  }
  func.func @transform_0(%arg0: i32, %arg1: i32, %arg2: i32) -> (i32, i32) {
    %c0_i32 = arith.constant 0 : i32
    return %arg0, %arg2 : i32, i32
  }
  func.func @transform_1(%arg0: i32, %arg1: i32, %arg2: i32) -> (i32, i32) {
    %c0_i32 = arith.constant 0 : i32
    return %arg2, %arg1 : i32, i32
  }
  func.func @transform_2(%arg0: i32, %arg1: i32, %arg2: i32) -> (i32, i32) {
    %c0_i32 = arith.constant 0 : i32
    %c0_i32_0 = arith.constant 0 : i32
    return %c0_i32, %arg2 : i32, i32
  }
  func.func @transform_3(%arg0: i32, %arg1: i32, %arg2: i32) -> (i32, i32) {
    %c0_i32 = arith.constant 0 : i32
    %c0_i32_0 = arith.constant 0 : i32
    return %c0_i32, %arg2 : i32, i32
  }
  func.func @transform_4(%arg0: i32, %arg1: i32, %arg2: i32) -> (i32, i32) {
    %c0_i32 = arith.constant 0 : i32
    %c0_i32_0 = arith.constant 0 : i32
    return %c0_i32, %arg1 : i32, i32
  }
  func.func @transform_5(%arg0: i32, %arg1: i32, %arg2: i32) -> (i32, i32) {
    %c0_i32 = arith.constant 0 : i32
    %c0_i32_0 = arith.constant 0 : i32
    return %c0_i32, %arg1 : i32, i32
  }
  func.func @transform_6(%arg0: i32, %arg1: i32, %arg2: i32) -> (i32, i32) {
    %c0_i32 = arith.constant 0 : i32
    return %arg0, %arg1 : i32, i32
  }
}

module attributes {stable_mosaic.version = 11 : i64} {
  func.func @kernel(%arg0: i32, %arg1: i32, %arg2: i32, %arg3: memref<128x128xf32, #tpu.memory_space<vmem>>, %arg4: memref<128x128xbf16, #tpu.memory_space<vmem>>, %arg5: memref<128x128xf32, #tpu.memory_space<vmem>>, %arg6: memref<128x128xf32, #tpu.memory_space<vmem>>) attributes {dimension_semantics = [#tpu.dimension_semantics<parallel>, #tpu.dimension_semantics<parallel>, #tpu.dimension_semantics<arbitrary>], iteration_bounds = array<i64: 1, 1, 3>, scalar_prefetch = 0 : i64, scratch_operands = 1 : i64, tpu.core_type = #tpu.core_type<tc>, window_params = [{transform_indices = @transform_0, window_bounds = array<i64: 128, 128>}, {transform_indices = @transform_1, window_bounds = array<i64: 128, 128>}, {transform_indices = @transform_2, window_bounds = array<i64: 128, 128>}]} {
    %c0_i32 = arith.constant 0 : i32
    %0 = arith.cmpi eq, %arg2, %c0_i32 : i32
    %1 = arith.extui %0 : i1 to i32
    %c0_i32_0 = arith.constant 0 : i32
    %2 = arith.cmpi ne, %1, %c0_i32_0 : i32
    scf.if %2 {
      %cst_9 = arith.constant 0.000000e+00 : f32
      %13 = vector.broadcast %cst_9 : f32 to vector<128x128xf32>
      %c0_10 = arith.constant 0 : index
      %c0_11 = arith.constant 0 : index
      %14 = vector.load %arg6[%c0_10, %c0_11] : memref<128x128xf32, #tpu.memory_space<vmem>>, vector<128x128xf32>
      tpu.vector_store %arg6[%c0_10, %c0_11], %13 {strides = array<i32>} : memref<128x128xf32, #tpu.memory_space<vmem>>, vector<128x128xf32>,
    } else {
    }
    %c0 = arith.constant 0 : index
    %c0_1 = arith.constant 0 : index
    %3 = vector.load %arg3[%c0, %c0_1] : memref<128x128xf32, #tpu.memory_space<vmem>>, vector<128x128xf32>
    %c0_2 = arith.constant 0 : index
    %c0_3 = arith.constant 0 : index
    %4 = vector.load %arg6[%c0_2, %c0_3] : memref<128x128xf32, #tpu.memory_space<vmem>>, vector<128x128xf32>
    %5 = arith.truncf %3 : vector<128x128xf32> to vector<128x128xbf16>
    %c0_4 = arith.constant 0 : index
    %c0_5 = arith.constant 0 : index
    %6 = vector.load %arg4[%c0_4, %c0_5] : memref<128x128xbf16, #tpu.memory_space<vmem>>, vector<128x128xbf16>
    %cst = arith.constant dense<0.000000e+00> : vector<128x128xf32>
    %7 = tpu.matmul %5, %6, %cst {dimension_numbers = #tpu.dot_dimension_numbers<[1], [0], [0], [1], [0, 0, 1, 1], [], []>} : vector<128x128xbf16>, vector<128x128xbf16>, vector<128x128xf32> -> vector<128x128xf32>
    %8 = arith.addf %4, %7 : vector<128x128xf32>
    %c0_6 = arith.constant 0 : index
    %c0_7 = arith.constant 0 : index
    %9 = vector.load %arg6[%c0_6, %c0_7] : memref<128x128xf32, #tpu.memory_space<vmem>>, vector<128x128xf32>
    tpu.vector_store %arg6[%c0_6, %c0_7], %8 {strides = array<i32>} : memref<128x128xf32, #tpu.memory_space<vmem>>, vector<128x128xf32>,
    %c2_i32 = arith.constant 2 : i32
    %10 = arith.cmpi eq, %arg2, %c2_i32 : i32
    %11 = arith.extui %10 : i1 to i32
    %c0_i32_8 = arith.constant 0 : i32
    %12 = arith.cmpi ne, %11, %c0_i32_8 : i32
    scf.if %12 {
      %c0_9 = arith.constant 0 : index
      %c0_10 = arith.constant 0 : index
      %13 = vector.load %arg6[%c0_9, %c0_10] : memref<128x128xf32, #tpu.memory_space<vmem>>, vector<128x128xf32>
      %c0_11 = arith.constant 0 : index
      %c0_12 = arith.constant 0 : index
      %14 = vector.load %arg5[%c0_11, %c0_12] : memref<128x128xf32, #tpu.memory_space<vmem>>, vector<128x128xf32>
      tpu.vector_store %arg5[%c0_11, %c0_12], %13 {strides = array<i32>} : memref<128x128xf32, #tpu.memory_space<vmem>>, vector<128x128xf32>,
    } else {
    }
    return
  }
  func.func @transform_0(%arg0: i32, %arg1: i32, %arg2: i32) -> (i32, i32) {
    %c0_i32 = arith.constant 0 : i32
    return %arg0, %arg2 : i32, i32
  }
  func.func @transform_1(%arg0: i32, %arg1: i32, %arg2: i32) -> (i32, i32) {
    %c0_i32 = arith.constant 0 : i32
    return %arg2, %arg1 : i32, i32
  }
  func.func @transform_2(%arg0: i32, %arg1: i32, %arg2: i32) -> (i32, i32) {
    %c0_i32 = arith.constant 0 : i32
    return %arg0, %arg1 : i32, i32
  }
}

module attributes {stable_mosaic.version = 11 : i64} {
  func.func @kernel(%arg0: i32, %arg1: i32, %arg2: i32, %arg3: memref<128x128xf32, #tpu.memory_space<vmem>>, %arg4: memref<128x128xbf16, #tpu.memory_space<vmem>>, %arg5: memref<1x128xf32, #tpu.memory_space<vmem>>, %arg6: memref<1x128xf32, #tpu.memory_space<vmem>>, %arg7: memref<128x128xf32, #tpu.memory_space<vmem>>, %arg8: memref<128x128xf32, #tpu.memory_space<vmem>>) attributes {dimension_semantics = [#tpu.dimension_semantics<parallel>, #tpu.dimension_semantics<parallel>, #tpu.dimension_semantics<arbitrary>], iteration_bounds = array<i64: 1, 1, 1>, scalar_prefetch = 0 : i64, scratch_operands = 1 : i64, tpu.core_type = #tpu.core_type<tc>, window_params = [{transform_indices = @transform_0, window_bounds = array<i64: 128, 128>}, {transform_indices = @transform_1, window_bounds = array<i64: 128, 128>}, {transform_indices = @transform_2, window_bounds = array<i64: 1, 128>}, {transform_indices = @transform_3, window_bounds = array<i64: 1, 128>}, {transform_indices = @transform_4, window_bounds = array<i64: 128, 128>}]} {
    %c0_i32 = arith.constant 0 : i32
    %0 = arith.cmpi eq, %arg2, %c0_i32 : i32
    %1 = arith.extui %0 : i1 to i32
    %c0_i32_0 = arith.constant 0 : i32
    %2 = arith.cmpi ne, %1, %c0_i32_0 : i32
    scf.if %2 {
      %cst_15 = arith.constant 0.000000e+00 : f32
      %21 = vector.broadcast %cst_15 : f32 to vector<128x128xf32>
      %c0_16 = arith.constant 0 : index
      %c0_17 = arith.constant 0 : index
      %22 = vector.load %arg8[%c0_16, %c0_17] : memref<128x128xf32, #tpu.memory_space<vmem>>, vector<128x128xf32>
      tpu.vector_store %arg8[%c0_16, %c0_17], %21 {strides = array<i32>} : memref<128x128xf32, #tpu.memory_space<vmem>>, vector<128x128xf32>,
    } else {
    }
    %c0 = arith.constant 0 : index
    %c0_1 = arith.constant 0 : index
    %3 = vector.load %arg3[%c0, %c0_1] : memref<128x128xf32, #tpu.memory_space<vmem>>, vector<128x128xf32>
    %c0_2 = arith.constant 0 : index
    %c0_3 = arith.constant 0 : index
    %4 = vector.load %arg5[%c0_2, %c0_3] : memref<1x128xf32, #tpu.memory_space<vmem>>, vector<1x128xf32>
    %5 = vector.broadcast %4 : vector<1x128xf32> to vector<128x128xf32>
    %6 = arith.mulf %3, %5 : vector<128x128xf32>
    %c0_4 = arith.constant 0 : index
    %c0_5 = arith.constant 0 : index
    %7 = vector.load %arg6[%c0_4, %c0_5] : memref<1x128xf32, #tpu.memory_space<vmem>>, vector<1x128xf32>
    %8 = vector.broadcast %7 : vector<1x128xf32> to vector<128x128xf32>
    %9 = arith.addf %6, %8 : vector<128x128xf32>
    %cst = arith.constant 0.000000e+00 : f32
    %10 = vector.broadcast %cst : f32 to vector<128x128xf32>
    %11 = arith.maximumf %9, %10 : vector<128x128xf32>
    %c0_6 = arith.constant 0 : index
    %c0_7 = arith.constant 0 : index
    %12 = vector.load %arg8[%c0_6, %c0_7] : memref<128x128xf32, #tpu.memory_space<vmem>>, vector<128x128xf32>
    %13 = arith.truncf %11 : vector<128x128xf32> to vector<128x128xbf16>
    %c0_8 = arith.constant 0 : index
    %c0_9 = arith.constant 0 : index
    %14 = vector.load %arg4[%c0_8, %c0_9] : memref<128x128xbf16, #tpu.memory_space<vmem>>, vector<128x128xbf16>
    %cst_10 = arith.constant dense<0.000000e+00> : vector<128x128xf32>
    %15 = tpu.matmul %13, %14, %cst_10 {dimension_numbers = #tpu.dot_dimension_numbers<[1], [0], [0], [1], [0, 0, 1, 1], [], []>} : vector<128x128xbf16>, vector<128x128xbf16>, vector<128x128xf32> -> vector<128x128xf32>
    %16 = arith.addf %12, %15 : vector<128x128xf32>
    %c0_11 = arith.constant 0 : index
    %c0_12 = arith.constant 0 : index
    %17 = vector.load %arg8[%c0_11, %c0_12] : memref<128x128xf32, #tpu.memory_space<vmem>>, vector<128x128xf32>
    tpu.vector_store %arg8[%c0_11, %c0_12], %16 {strides = array<i32>} : memref<128x128xf32, #tpu.memory_space<vmem>>, vector<128x128xf32>,
    %c0_i32_13 = arith.constant 0 : i32
    %18 = arith.cmpi eq, %arg2, %c0_i32_13 : i32
    %19 = arith.extui %18 : i1 to i32
    %c0_i32_14 = arith.constant 0 : i32
    %20 = arith.cmpi ne, %19, %c0_i32_14 : i32
    scf.if %20 {
      %c0_15 = arith.constant 0 : index
      %c0_16 = arith.constant 0 : index
      %21 = vector.load %arg8[%c0_15, %c0_16] : memref<128x128xf32, #tpu.memory_space<vmem>>, vector<128x128xf32>
      %c0_17 = arith.constant 0 : index
      %c0_18 = arith.constant 0 : index
      %22 = vector.load %arg7[%c0_17, %c0_18] : memref<128x128xf32, #tpu.memory_space<vmem>>, vector<128x128xf32>
      tpu.vector_store %arg7[%c0_17, %c0_18], %21 {strides = array<i32>} : memref<128x128xf32, #tpu.memory_space<vmem>>, vector<128x128xf32>,
    } else {
    }
    return
  }
  func.func @transform_0(%arg0: i32, %arg1: i32, %arg2: i32) -> (i32, i32) {
    %c0_i32 = arith.constant 0 : i32
    return %arg0, %arg2 : i32, i32
  }
  func.func @transform_1(%arg0: i32, %arg1: i32, %arg2: i32) -> (i32, i32) {
    %c0_i32 = arith.constant 0 : i32
    return %arg2, %arg1 : i32, i32
  }
  func.func @transform_2(%arg0: i32, %arg1: i32, %arg2: i32) -> (i32, i32) {
    %c0_i32 = arith.constant 0 : i32
    %c0_i32_0 = arith.constant 0 : i32
    return %c0_i32, %arg2 : i32, i32
  }
  func.func @transform_3(%arg0: i32, %arg1: i32, %arg2: i32) -> (i32, i32) {
    %c0_i32 = arith.constant 0 : i32
    %c0_i32_0 = arith.constant 0 : i32
    return %c0_i32, %arg2 : i32, i32
  }
  func.func @transform_4(%arg0: i32, %arg1: i32, %arg2: i32) -> (i32, i32) {
    %c0_i32 = arith.constant 0 : i32
    return %arg0, %arg1 : i32, i32
  }
}

module attributes {stable_mosaic.version = 11 : i64} {
  func.func @kernel(%arg0: i32, %arg1: i32, %arg2: i32, %arg3: memref<32x128xf32, #tpu.memory_space<vmem>>, %arg4: memref<128x128xbf16, #tpu.memory_space<vmem>>, %arg5: memref<1x128xf32, #tpu.memory_space<vmem>>, %arg6: memref<1x128xf32, #tpu.memory_space<vmem>>, %arg7: memref<1x128xf32, #tpu.memory_space<vmem>>, %arg8: memref<1x128xf32, #tpu.memory_space<vmem>>, %arg9: memref<32x128xf32, #tpu.memory_space<vmem>>, %arg10: memref<32x128xf32, #tpu.memory_space<vmem>>) attributes {dimension_semantics = [#tpu.dimension_semantics<parallel>, #tpu.dimension_semantics<parallel>, #tpu.dimension_semantics<arbitrary>], iteration_bounds = array<i64: 1, 1, 1>, scalar_prefetch = 0 : i64, scratch_operands = 1 : i64, tpu.core_type = #tpu.core_type<tc>, window_params = [{transform_indices = @transform_0, window_bounds = array<i64: 32, 128>}, {transform_indices = @transform_1, window_bounds = array<i64: 128, 128>}, {transform_indices = @transform_2, window_bounds = array<i64: 1, 128>}, {transform_indices = @transform_3, window_bounds = array<i64: 1, 128>}, {transform_indices = @transform_4, window_bounds = array<i64: 1, 128>}, {transform_indices = @transform_5, window_bounds = array<i64: 1, 128>}, {transform_indices = @transform_6, window_bounds = array<i64: 32, 128>}]} {
    %c0_i32 = arith.constant 0 : i32
    %0 = arith.cmpi eq, %arg2, %c0_i32 : i32
    %1 = arith.extui %0 : i1 to i32
    %c0_i32_0 = arith.constant 0 : i32
    %2 = arith.cmpi ne, %1, %c0_i32_0 : i32
    scf.if %2 {
      %cst_15 = arith.constant 0.000000e+00 : f32
      %21 = vector.broadcast %cst_15 : f32 to vector<32x128xf32>
      %c0_16 = arith.constant 0 : index
      %c0_17 = arith.constant 0 : index
      %22 = vector.load %arg10[%c0_16, %c0_17] : memref<32x128xf32, #tpu.memory_space<vmem>>, vector<32x128xf32>
      tpu.vector_store %arg10[%c0_16, %c0_17], %21 {strides = array<i32>} : memref<32x128xf32, #tpu.memory_space<vmem>>, vector<32x128xf32>,
    } else {
    }
    %c0 = arith.constant 0 : index
    %c0_1 = arith.constant 0 : index
    %3 = vector.load %arg3[%c0, %c0_1] : memref<32x128xf32, #tpu.memory_space<vmem>>, vector<32x128xf32>
    %c0_2 = arith.constant 0 : index
    %c0_3 = arith.constant 0 : index
    %4 = vector.load %arg5[%c0_2, %c0_3] : memref<1x128xf32, #tpu.memory_space<vmem>>, vector<1x128xf32>
    %5 = vector.broadcast %4 : vector<1x128xf32> to vector<32x128xf32>
    %6 = arith.mulf %3, %5 : vector<32x128xf32>
    %c0_4 = arith.constant 0 : index
    %c0_5 = arith.constant 0 : index
    %7 = vector.load %arg6[%c0_4, %c0_5] : memref<1x128xf32, #tpu.memory_space<vmem>>, vector<1x128xf32>
    %8 = vector.broadcast %7 : vector<1x128xf32> to vector<32x128xf32>
    %9 = arith.addf %6, %8 : vector<32x128xf32>
    %cst = arith.constant 0.000000e+00 : f32
    %10 = vector.broadcast %cst : f32 to vector<32x128xf32>
    %11 = arith.maximumf %9, %10 : vector<32x128xf32>
    %c0_6 = arith.constant 0 : index
    %c0_7 = arith.constant 0 : index
    %12 = vector.load %arg10[%c0_6, %c0_7] : memref<32x128xf32, #tpu.memory_space<vmem>>, vector<32x128xf32>
    %13 = arith.truncf %11 : vector<32x128xf32> to vector<32x128xbf16>
    %c0_8 = arith.constant 0 : index
    %c0_9 = arith.constant 0 : index
    %14 = vector.load %arg4[%c0_8, %c0_9] : memref<128x128xbf16, #tpu.memory_space<vmem>>, vector<128x128xbf16>
    %cst_10 = arith.constant dense<0.000000e+00> : vector<32x128xf32>
    %15 = tpu.matmul %13, %14, %cst_10 {dimension_numbers = #tpu.dot_dimension_numbers<[1], [0], [0], [1], [0, 0, 1, 1], [], []>} : vector<32x128xbf16>, vector<128x128xbf16>, vector<32x128xf32> -> vector<32x128xf32>
    %16 = arith.addf %12, %15 : vector<32x128xf32>
    %c0_11 = arith.constant 0 : index
    %c0_12 = arith.constant 0 : index
    %17 = vector.load %arg10[%c0_11, %c0_12] : memref<32x128xf32, #tpu.memory_space<vmem>>, vector<32x128xf32>
    tpu.vector_store %arg10[%c0_11, %c0_12], %16 {strides = array<i32>} : memref<32x128xf32, #tpu.memory_space<vmem>>, vector<32x128xf32>,
    %c0_i32_13 = arith.constant 0 : i32
    %18 = arith.cmpi eq, %arg2, %c0_i32_13 : i32
    %19 = arith.extui %18 : i1 to i32
    %c0_i32_14 = arith.constant 0 : i32
    %20 = arith.cmpi ne, %19, %c0_i32_14 : i32
    scf.if %20 {
      %c0_15 = arith.constant 0 : index
      %c0_16 = arith.constant 0 : index
      %21 = vector.load %arg10[%c0_15, %c0_16] : memref<32x128xf32, #tpu.memory_space<vmem>>, vector<32x128xf32>
      %c0_17 = arith.constant 0 : index
      %c0_18 = arith.constant 0 : index
      %22 = vector.load %arg7[%c0_17, %c0_18] : memref<1x128xf32, #tpu.memory_space<vmem>>, vector<1x128xf32>
      %23 = vector.broadcast %22 : vector<1x128xf32> to vector<32x128xf32>
      %24 = arith.mulf %21, %23 : vector<32x128xf32>
      %c0_19 = arith.constant 0 : index
      %c0_20 = arith.constant 0 : index
      %25 = vector.load %arg8[%c0_19, %c0_20] : memref<1x128xf32, #tpu.memory_space<vmem>>, vector<1x128xf32>
      %26 = vector.broadcast %25 : vector<1x128xf32> to vector<32x128xf32>
      %27 = arith.addf %24, %26 : vector<32x128xf32>
      %cst_21 = arith.constant 0.000000e+00 : f32
      %28 = vector.broadcast %cst_21 : f32 to vector<32x128xf32>
      %29 = arith.maximumf %27, %28 : vector<32x128xf32>
      %c0_22 = arith.constant 0 : index
      %c0_23 = arith.constant 0 : index
      %30 = vector.load %arg9[%c0_22, %c0_23] : memref<32x128xf32, #tpu.memory_space<vmem>>, vector<32x128xf32>
      tpu.vector_store %arg9[%c0_22, %c0_23], %29 {strides = array<i32>} : memref<32x128xf32, #tpu.memory_space<vmem>>, vector<32x128xf32>,
    } else {
    }
    return
  }
  func.func @transform_0(%arg0: i32, %arg1: i32, %arg2: i32) -> (i32, i32) {
    %c0_i32 = arith.constant 0 : i32
    return %arg0, %arg2 : i32, i32
  }
  func.func @transform_1(%arg0: i32, %arg1: i32, %arg2: i32) -> (i32, i32) {
    %c0_i32 = arith.constant 0 : i32
    return %arg2, %arg1 : i32, i32
  }
  func.func @transform_2(%arg0: i32, %arg1: i32, %arg2: i32) -> (i32, i32) {
    %c0_i32 = arith.constant 0 : i32
    %c0_i32_0 = arith.constant 0 : i32
    return %c0_i32, %arg2 : i32, i32
  }
  func.func @transform_3(%arg0: i32, %arg1: i32, %arg2: i32) -> (i32, i32) {
    %c0_i32 = arith.constant 0 : i32
    %c0_i32_0 = arith.constant 0 : i32
    return %c0_i32, %arg2 : i32, i32
  }
  func.func @transform_4(%arg0: i32, %arg1: i32, %arg2: i32) -> (i32, i32) {
    %c0_i32 = arith.constant 0 : i32
    %c0_i32_0 = arith.constant 0 : i32
    return %c0_i32, %arg1 : i32, i32
  }
  func.func @transform_5(%arg0: i32, %arg1: i32, %arg2: i32) -> (i32, i32) {
    %c0_i32 = arith.constant 0 : i32
    %c0_i32_0 = arith.constant 0 : i32
    return %c0_i32, %arg1 : i32, i32
  }
  func.func @transform_6(%arg0: i32, %arg1: i32, %arg2: i32) -> (i32, i32) {
    %c0_i32 = arith.constant 0 : i32
    return %arg0, %arg1 : i32, i32
  }
}

module attributes {stable_mosaic.version = 11 : i64} {
  func.func @kernel(%arg0: i32, %arg1: i32, %arg2: i32, %arg3: memref<32x128xf32, #tpu.memory_space<vmem>>, %arg4: memref<128x128xbf16, #tpu.memory_space<vmem>>, %arg5: memref<32x128xf32, #tpu.memory_space<vmem>>, %arg6: memref<32x128xf32, #tpu.memory_space<vmem>>) attributes {dimension_semantics = [#tpu.dimension_semantics<parallel>, #tpu.dimension_semantics<parallel>, #tpu.dimension_semantics<arbitrary>], iteration_bounds = array<i64: 1, 1, 3>, scalar_prefetch = 0 : i64, scratch_operands = 1 : i64, tpu.core_type = #tpu.core_type<tc>, window_params = [{transform_indices = @transform_0, window_bounds = array<i64: 32, 128>}, {transform_indices = @transform_1, window_bounds = array<i64: 128, 128>}, {transform_indices = @transform_2, window_bounds = array<i64: 32, 128>}]} {
    %c0_i32 = arith.constant 0 : i32
    %0 = arith.cmpi eq, %arg2, %c0_i32 : i32
    %1 = arith.extui %0 : i1 to i32
    %c0_i32_0 = arith.constant 0 : i32
    %2 = arith.cmpi ne, %1, %c0_i32_0 : i32
    scf.if %2 {
      %cst_9 = arith.constant 0.000000e+00 : f32
      %13 = vector.broadcast %cst_9 : f32 to vector<32x128xf32>
      %c0_10 = arith.constant 0 : index
      %c0_11 = arith.constant 0 : index
      %14 = vector.load %arg6[%c0_10, %c0_11] : memref<32x128xf32, #tpu.memory_space<vmem>>, vector<32x128xf32>
      tpu.vector_store %arg6[%c0_10, %c0_11], %13 {strides = array<i32>} : memref<32x128xf32, #tpu.memory_space<vmem>>, vector<32x128xf32>,
    } else {
    }
    %c0 = arith.constant 0 : index
    %c0_1 = arith.constant 0 : index
    %3 = vector.load %arg3[%c0, %c0_1] : memref<32x128xf32, #tpu.memory_space<vmem>>, vector<32x128xf32>
    %c0_2 = arith.constant 0 : index
    %c0_3 = arith.constant 0 : index
    %4 = vector.load %arg6[%c0_2, %c0_3] : memref<32x128xf32, #tpu.memory_space<vmem>>, vector<32x128xf32>
    %5 = arith.truncf %3 : vector<32x128xf32> to vector<32x128xbf16>
    %c0_4 = arith.constant 0 : index
    %c0_5 = arith.constant 0 : index
    %6 = vector.load %arg4[%c0_4, %c0_5] : memref<128x128xbf16, #tpu.memory_space<vmem>>, vector<128x128xbf16>
    %cst = arith.constant dense<0.000000e+00> : vector<32x128xf32>
    %7 = tpu.matmul %5, %6, %cst {dimension_numbers = #tpu.dot_dimension_numbers<[1], [0], [0], [1], [0, 0, 1, 1], [], []>} : vector<32x128xbf16>, vector<128x128xbf16>, vector<32x128xf32> -> vector<32x128xf32>
    %8 = arith.addf %4, %7 : vector<32x128xf32>
    %c0_6 = arith.constant 0 : index
    %c0_7 = arith.constant 0 : index
    %9 = vector.load %arg6[%c0_6, %c0_7] : memref<32x128xf32, #tpu.memory_space<vmem>>, vector<32x128xf32>
    tpu.vector_store %arg6[%c0_6, %c0_7], %8 {strides = array<i32>} : memref<32x128xf32, #tpu.memory_space<vmem>>, vector<32x128xf32>,
    %c2_i32 = arith.constant 2 : i32
    %10 = arith.cmpi eq, %arg2, %c2_i32 : i32
    %11 = arith.extui %10 : i1 to i32
    %c0_i32_8 = arith.constant 0 : i32
    %12 = arith.cmpi ne, %11, %c0_i32_8 : i32
    scf.if %12 {
      %c0_9 = arith.constant 0 : index
      %c0_10 = arith.constant 0 : index
      %13 = vector.load %arg6[%c0_9, %c0_10] : memref<32x128xf32, #tpu.memory_space<vmem>>, vector<32x128xf32>
      %c0_11 = arith.constant 0 : index
      %c0_12 = arith.constant 0 : index
      %14 = vector.load %arg5[%c0_11, %c0_12] : memref<32x128xf32, #tpu.memory_space<vmem>>, vector<32x128xf32>
      tpu.vector_store %arg5[%c0_11, %c0_12], %13 {strides = array<i32>} : memref<32x128xf32, #tpu.memory_space<vmem>>, vector<32x128xf32>,
    } else {
    }
    return
  }
  func.func @transform_0(%arg0: i32, %arg1: i32, %arg2: i32) -> (i32, i32) {
    %c0_i32 = arith.constant 0 : i32
    return %arg0, %arg2 : i32, i32
  }
  func.func @transform_1(%arg0: i32, %arg1: i32, %arg2: i32) -> (i32, i32) {
    %c0_i32 = arith.constant 0 : i32
    return %arg2, %arg1 : i32, i32
  }
  func.func @transform_2(%arg0: i32, %arg1: i32, %arg2: i32) -> (i32, i32) {
    %c0_i32 = arith.constant 0 : i32
    return %arg0, %arg1 : i32, i32
  }
}

module attributes {stable_mosaic.version = 11 : i64} {
  func.func @kernel(%arg0: i32, %arg1: i32, %arg2: i32, %arg3: memref<32x128xf32, #tpu.memory_space<vmem>>, %arg4: memref<128x128xbf16, #tpu.memory_space<vmem>>, %arg5: memref<1x128xf32, #tpu.memory_space<vmem>>, %arg6: memref<1x128xf32, #tpu.memory_space<vmem>>, %arg7: memref<32x128xf32, #tpu.memory_space<vmem>>, %arg8: memref<32x128xf32, #tpu.memory_space<vmem>>) attributes {dimension_semantics = [#tpu.dimension_semantics<parallel>, #tpu.dimension_semantics<parallel>, #tpu.dimension_semantics<arbitrary>], iteration_bounds = array<i64: 1, 1, 1>, scalar_prefetch = 0 : i64, scratch_operands = 1 : i64, tpu.core_type = #tpu.core_type<tc>, window_params = [{transform_indices = @transform_0, window_bounds = array<i64: 32, 128>}, {transform_indices = @transform_1, window_bounds = array<i64: 128, 128>}, {transform_indices = @transform_2, window_bounds = array<i64: 1, 128>}, {transform_indices = @transform_3, window_bounds = array<i64: 1, 128>}, {transform_indices = @transform_4, window_bounds = array<i64: 32, 128>}]} {
    %c0_i32 = arith.constant 0 : i32
    %0 = arith.cmpi eq, %arg2, %c0_i32 : i32
    %1 = arith.extui %0 : i1 to i32
    %c0_i32_0 = arith.constant 0 : i32
    %2 = arith.cmpi ne, %1, %c0_i32_0 : i32
    scf.if %2 {
      %cst_15 = arith.constant 0.000000e+00 : f32
      %21 = vector.broadcast %cst_15 : f32 to vector<32x128xf32>
      %c0_16 = arith.constant 0 : index
      %c0_17 = arith.constant 0 : index
      %22 = vector.load %arg8[%c0_16, %c0_17] : memref<32x128xf32, #tpu.memory_space<vmem>>, vector<32x128xf32>
      tpu.vector_store %arg8[%c0_16, %c0_17], %21 {strides = array<i32>} : memref<32x128xf32, #tpu.memory_space<vmem>>, vector<32x128xf32>,
    } else {
    }
    %c0 = arith.constant 0 : index
    %c0_1 = arith.constant 0 : index
    %3 = vector.load %arg3[%c0, %c0_1] : memref<32x128xf32, #tpu.memory_space<vmem>>, vector<32x128xf32>
    %c0_2 = arith.constant 0 : index
    %c0_3 = arith.constant 0 : index
    %4 = vector.load %arg5[%c0_2, %c0_3] : memref<1x128xf32, #tpu.memory_space<vmem>>, vector<1x128xf32>
    %5 = vector.broadcast %4 : vector<1x128xf32> to vector<32x128xf32>
    %6 = arith.mulf %3, %5 : vector<32x128xf32>
    %c0_4 = arith.constant 0 : index
    %c0_5 = arith.constant 0 : index
    %7 = vector.load %arg6[%c0_4, %c0_5] : memref<1x128xf32, #tpu.memory_space<vmem>>, vector<1x128xf32>
    %8 = vector.broadcast %7 : vector<1x128xf32> to vector<32x128xf32>
    %9 = arith.addf %6, %8 : vector<32x128xf32>
    %cst = arith.constant 0.000000e+00 : f32
    %10 = vector.broadcast %cst : f32 to vector<32x128xf32>
    %11 = arith.maximumf %9, %10 : vector<32x128xf32>
    %c0_6 = arith.constant 0 : index
    %c0_7 = arith.constant 0 : index
    %12 = vector.load %arg8[%c0_6, %c0_7] : memref<32x128xf32, #tpu.memory_space<vmem>>, vector<32x128xf32>
    %13 = arith.truncf %11 : vector<32x128xf32> to vector<32x128xbf16>
    %c0_8 = arith.constant 0 : index
    %c0_9 = arith.constant 0 : index
    %14 = vector.load %arg4[%c0_8, %c0_9] : memref<128x128xbf16, #tpu.memory_space<vmem>>, vector<128x128xbf16>
    %cst_10 = arith.constant dense<0.000000e+00> : vector<32x128xf32>
    %15 = tpu.matmul %13, %14, %cst_10 {dimension_numbers = #tpu.dot_dimension_numbers<[1], [0], [0], [1], [0, 0, 1, 1], [], []>} : vector<32x128xbf16>, vector<128x128xbf16>, vector<32x128xf32> -> vector<32x128xf32>
    %16 = arith.addf %12, %15 : vector<32x128xf32>
    %c0_11 = arith.constant 0 : index
    %c0_12 = arith.constant 0 : index
    %17 = vector.load %arg8[%c0_11, %c0_12] : memref<32x128xf32, #tpu.memory_space<vmem>>, vector<32x128xf32>
    tpu.vector_store %arg8[%c0_11, %c0_12], %16 {strides = array<i32>} : memref<32x128xf32, #tpu.memory_space<vmem>>, vector<32x128xf32>,
    %c0_i32_13 = arith.constant 0 : i32
    %18 = arith.cmpi eq, %arg2, %c0_i32_13 : i32
    %19 = arith.extui %18 : i1 to i32
    %c0_i32_14 = arith.constant 0 : i32
    %20 = arith.cmpi ne, %19, %c0_i32_14 : i32
    scf.if %20 {
      %c0_15 = arith.constant 0 : index
      %c0_16 = arith.constant 0 : index
      %21 = vector.load %arg8[%c0_15, %c0_16] : memref<32x128xf32, #tpu.memory_space<vmem>>, vector<32x128xf32>
      %c0_17 = arith.constant 0 : index
      %c0_18 = arith.constant 0 : index
      %22 = vector.load %arg7[%c0_17, %c0_18] : memref<32x128xf32, #tpu.memory_space<vmem>>, vector<32x128xf32>
      tpu.vector_store %arg7[%c0_17, %c0_18], %21 {strides = array<i32>} : memref<32x128xf32, #tpu.memory_space<vmem>>, vector<32x128xf32>,
    } else {
    }
    return
  }
  func.func @transform_0(%arg0: i32, %arg1: i32, %arg2: i32) -> (i32, i32) {
    %c0_i32 = arith.constant 0 : i32
    return %arg0, %arg2 : i32, i32
  }
  func.func @transform_1(%arg0: i32, %arg1: i32, %arg2: i32) -> (i32, i32) {
    %c0_i32 = arith.constant 0 : i32
    return %arg2, %arg1 : i32, i32
  }
  func.func @transform_2(%arg0: i32, %arg1: i32, %arg2: i32) -> (i32, i32) {
    %c0_i32 = arith.constant 0 : i32
    %c0_i32_0 = arith.constant 0 : i32
    return %c0_i32, %arg2 : i32, i32
  }
  func.func @transform_3(%arg0: i32, %arg1: i32, %arg2: i32) -> (i32, i32) {
    %c0_i32 = arith.constant 0 : i32
    %c0_i32_0 = arith.constant 0 : i32
    return %c0_i32, %arg2 : i32, i32
  }
  func.func @transform_4(%arg0: i32, %arg1: i32, %arg2: i32) -> (i32, i32) {
    %c0_i32 = arith.constant 0 : i32
    return %arg0, %arg1 : i32, i32
  }
}

module attributes {stable_mosaic.version = 11 : i64} {
  func.func @kernel(%arg0: i32, %arg1: i32, %arg2: i32, %arg3: memref<8x128xf32, #tpu.memory_space<vmem>>, %arg4: memref<128x128xbf16, #tpu.memory_space<vmem>>, %arg5: memref<1x128xf32, #tpu.memory_space<vmem>>, %arg6: memref<1x128xf32, #tpu.memory_space<vmem>>, %arg7: memref<1x128xf32, #tpu.memory_space<vmem>>, %arg8: memref<1x128xf32, #tpu.memory_space<vmem>>, %arg9: memref<8x128xf32, #tpu.memory_space<vmem>>, %arg10: memref<8x128xf32, #tpu.memory_space<vmem>>) attributes {dimension_semantics = [#tpu.dimension_semantics<parallel>, #tpu.dimension_semantics<parallel>, #tpu.dimension_semantics<arbitrary>], iteration_bounds = array<i64: 1, 1, 1>, scalar_prefetch = 0 : i64, scratch_operands = 1 : i64, tpu.core_type = #tpu.core_type<tc>, window_params = [{transform_indices = @transform_0, window_bounds = array<i64: 8, 128>}, {transform_indices = @transform_1, window_bounds = array<i64: 128, 128>}, {transform_indices = @transform_2, window_bounds = array<i64: 1, 128>}, {transform_indices = @transform_3, window_bounds = array<i64: 1, 128>}, {transform_indices = @transform_4, window_bounds = array<i64: 1, 128>}, {transform_indices = @transform_5, window_bounds = array<i64: 1, 128>}, {transform_indices = @transform_6, window_bounds = array<i64: 8, 128>}]} {
    %c0_i32 = arith.constant 0 : i32
    %0 = arith.cmpi eq, %arg2, %c0_i32 : i32
    %1 = arith.extui %0 : i1 to i32
    %c0_i32_0 = arith.constant 0 : i32
    %2 = arith.cmpi ne, %1, %c0_i32_0 : i32
    scf.if %2 {
      %cst_15 = arith.constant 0.000000e+00 : f32
      %21 = vector.broadcast %cst_15 : f32 to vector<8x128xf32>
      %c0_16 = arith.constant 0 : index
      %c0_17 = arith.constant 0 : index
      %22 = vector.load %arg10[%c0_16, %c0_17] : memref<8x128xf32, #tpu.memory_space<vmem>>, vector<8x128xf32>
      tpu.vector_store %arg10[%c0_16, %c0_17], %21 {strides = array<i32>} : memref<8x128xf32, #tpu.memory_space<vmem>>, vector<8x128xf32>,
    } else {
    }
    %c0 = arith.constant 0 : index
    %c0_1 = arith.constant 0 : index
    %3 = vector.load %arg3[%c0, %c0_1] : memref<8x128xf32, #tpu.memory_space<vmem>>, vector<8x128xf32>
    %c0_2 = arith.constant 0 : index
    %c0_3 = arith.constant 0 : index
    %4 = vector.load %arg5[%c0_2, %c0_3] : memref<1x128xf32, #tpu.memory_space<vmem>>, vector<1x128xf32>
    %5 = vector.broadcast %4 : vector<1x128xf32> to vector<8x128xf32>
    %6 = arith.mulf %3, %5 : vector<8x128xf32>
    %c0_4 = arith.constant 0 : index
    %c0_5 = arith.constant 0 : index
    %7 = vector.load %arg6[%c0_4, %c0_5] : memref<1x128xf32, #tpu.memory_space<vmem>>, vector<1x128xf32>
    %8 = vector.broadcast %7 : vector<1x128xf32> to vector<8x128xf32>
    %9 = arith.addf %6, %8 : vector<8x128xf32>
    %cst = arith.constant 0.000000e+00 : f32
    %10 = vector.broadcast %cst : f32 to vector<8x128xf32>
    %11 = arith.maximumf %9, %10 : vector<8x128xf32>
    %c0_6 = arith.constant 0 : index
    %c0_7 = arith.constant 0 : index
    %12 = vector.load %arg10[%c0_6, %c0_7] : memref<8x128xf32, #tpu.memory_space<vmem>>, vector<8x128xf32>
    %13 = arith.truncf %11 : vector<8x128xf32> to vector<8x128xbf16>
    %c0_8 = arith.constant 0 : index
    %c0_9 = arith.constant 0 : index
    %14 = vector.load %arg4[%c0_8, %c0_9] : memref<128x128xbf16, #tpu.memory_space<vmem>>, vector<128x128xbf16>
    %cst_10 = arith.constant dense<0.000000e+00> : vector<8x128xf32>
    %15 = tpu.matmul %13, %14, %cst_10 {dimension_numbers = #tpu.dot_dimension_numbers<[1], [0], [0], [1], [0, 0, 1, 1], [], []>} : vector<8x128xbf16>, vector<128x128xbf16>, vector<8x128xf32> -> vector<8x128xf32>
    %16 = arith.addf %12, %15 : vector<8x128xf32>
    %c0_11 = arith.constant 0 : index
    %c0_12 = arith.constant 0 : index
    %17 = vector.load %arg10[%c0_11, %c0_12] : memref<8x128xf32, #tpu.memory_space<vmem>>, vector<8x128xf32>
    tpu.vector_store %arg10[%c0_11, %c0_12], %16 {strides = array<i32>} : memref<8x128xf32, #tpu.memory_space<vmem>>, vector<8x128xf32>,
    %c0_i32_13 = arith.constant 0 : i32
    %18 = arith.cmpi eq, %arg2, %c0_i32_13 : i32
    %19 = arith.extui %18 : i1 to i32
    %c0_i32_14 = arith.constant 0 : i32
    %20 = arith.cmpi ne, %19, %c0_i32_14 : i32
    scf.if %20 {
      %c0_15 = arith.constant 0 : index
      %c0_16 = arith.constant 0 : index
      %21 = vector.load %arg10[%c0_15, %c0_16] : memref<8x128xf32, #tpu.memory_space<vmem>>, vector<8x128xf32>
      %c0_17 = arith.constant 0 : index
      %c0_18 = arith.constant 0 : index
      %22 = vector.load %arg7[%c0_17, %c0_18] : memref<1x128xf32, #tpu.memory_space<vmem>>, vector<1x128xf32>
      %23 = vector.broadcast %22 : vector<1x128xf32> to vector<8x128xf32>
      %24 = arith.mulf %21, %23 : vector<8x128xf32>
      %c0_19 = arith.constant 0 : index
      %c0_20 = arith.constant 0 : index
      %25 = vector.load %arg8[%c0_19, %c0_20] : memref<1x128xf32, #tpu.memory_space<vmem>>, vector<1x128xf32>
      %26 = vector.broadcast %25 : vector<1x128xf32> to vector<8x128xf32>
      %27 = arith.addf %24, %26 : vector<8x128xf32>
      %cst_21 = arith.constant 0.000000e+00 : f32
      %28 = vector.broadcast %cst_21 : f32 to vector<8x128xf32>
      %29 = arith.maximumf %27, %28 : vector<8x128xf32>
      %c0_22 = arith.constant 0 : index
      %c0_23 = arith.constant 0 : index
      %30 = vector.load %arg9[%c0_22, %c0_23] : memref<8x128xf32, #tpu.memory_space<vmem>>, vector<8x128xf32>
      tpu.vector_store %arg9[%c0_22, %c0_23], %29 {strides = array<i32>} : memref<8x128xf32, #tpu.memory_space<vmem>>, vector<8x128xf32>,
    } else {
    }
    return
  }
  func.func @transform_0(%arg0: i32, %arg1: i32, %arg2: i32) -> (i32, i32) {
    %c0_i32 = arith.constant 0 : i32
    return %arg0, %arg2 : i32, i32
  }
  func.func @transform_1(%arg0: i32, %arg1: i32, %arg2: i32) -> (i32, i32) {
    %c0_i32 = arith.constant 0 : i32
    return %arg2, %arg1 : i32, i32
  }
  func.func @transform_2(%arg0: i32, %arg1: i32, %arg2: i32) -> (i32, i32) {
    %c0_i32 = arith.constant 0 : i32
    %c0_i32_0 = arith.constant 0 : i32
    return %c0_i32, %arg2 : i32, i32
  }
  func.func @transform_3(%arg0: i32, %arg1: i32, %arg2: i32) -> (i32, i32) {
    %c0_i32 = arith.constant 0 : i32
    %c0_i32_0 = arith.constant 0 : i32
    return %c0_i32, %arg2 : i32, i32
  }
  func.func @transform_4(%arg0: i32, %arg1: i32, %arg2: i32) -> (i32, i32) {
    %c0_i32 = arith.constant 0 : i32
    %c0_i32_0 = arith.constant 0 : i32
    return %c0_i32, %arg1 : i32, i32
  }
  func.func @transform_5(%arg0: i32, %arg1: i32, %arg2: i32) -> (i32, i32) {
    %c0_i32 = arith.constant 0 : i32
    %c0_i32_0 = arith.constant 0 : i32
    return %c0_i32, %arg1 : i32, i32
  }
  func.func @transform_6(%arg0: i32, %arg1: i32, %arg2: i32) -> (i32, i32) {
    %c0_i32 = arith.constant 0 : i32
    return %arg0, %arg1 : i32, i32
  }
}

module attributes {stable_mosaic.version = 11 : i64} {
  func.func @kernel(%arg0: i32, %arg1: i32, %arg2: i32, %arg3: memref<8x128xf32, #tpu.memory_space<vmem>>, %arg4: memref<128x128xbf16, #tpu.memory_space<vmem>>, %arg5: memref<8x128xf32, #tpu.memory_space<vmem>>, %arg6: memref<8x128xf32, #tpu.memory_space<vmem>>) attributes {dimension_semantics = [#tpu.dimension_semantics<parallel>, #tpu.dimension_semantics<parallel>, #tpu.dimension_semantics<arbitrary>], iteration_bounds = array<i64: 1, 1, 3>, scalar_prefetch = 0 : i64, scratch_operands = 1 : i64, tpu.core_type = #tpu.core_type<tc>, window_params = [{transform_indices = @transform_0, window_bounds = array<i64: 8, 128>}, {transform_indices = @transform_1, window_bounds = array<i64: 128, 128>}, {transform_indices = @transform_2, window_bounds = array<i64: 8, 128>}]} {
    %c0_i32 = arith.constant 0 : i32
    %0 = arith.cmpi eq, %arg2, %c0_i32 : i32
    %1 = arith.extui %0 : i1 to i32
    %c0_i32_0 = arith.constant 0 : i32
    %2 = arith.cmpi ne, %1, %c0_i32_0 : i32
    scf.if %2 {
      %cst_9 = arith.constant 0.000000e+00 : f32
      %13 = vector.broadcast %cst_9 : f32 to vector<8x128xf32>
      %c0_10 = arith.constant 0 : index
      %c0_11 = arith.constant 0 : index
      %14 = vector.load %arg6[%c0_10, %c0_11] : memref<8x128xf32, #tpu.memory_space<vmem>>, vector<8x128xf32>
      tpu.vector_store %arg6[%c0_10, %c0_11], %13 {strides = array<i32>} : memref<8x128xf32, #tpu.memory_space<vmem>>, vector<8x128xf32>,
    } else {
    }
    %c0 = arith.constant 0 : index
    %c0_1 = arith.constant 0 : index
    %3 = vector.load %arg3[%c0, %c0_1] : memref<8x128xf32, #tpu.memory_space<vmem>>, vector<8x128xf32>
    %c0_2 = arith.constant 0 : index
    %c0_3 = arith.constant 0 : index
    %4 = vector.load %arg6[%c0_2, %c0_3] : memref<8x128xf32, #tpu.memory_space<vmem>>, vector<8x128xf32>
    %5 = arith.truncf %3 : vector<8x128xf32> to vector<8x128xbf16>
    %c0_4 = arith.constant 0 : index
    %c0_5 = arith.constant 0 : index
    %6 = vector.load %arg4[%c0_4, %c0_5] : memref<128x128xbf16, #tpu.memory_space<vmem>>, vector<128x128xbf16>
    %cst = arith.constant dense<0.000000e+00> : vector<8x128xf32>
    %7 = tpu.matmul %5, %6, %cst {dimension_numbers = #tpu.dot_dimension_numbers<[1], [0], [0], [1], [0, 0, 1, 1], [], []>} : vector<8x128xbf16>, vector<128x128xbf16>, vector<8x128xf32> -> vector<8x128xf32>
    %8 = arith.addf %4, %7 : vector<8x128xf32>
    %c0_6 = arith.constant 0 : index
    %c0_7 = arith.constant 0 : index
    %9 = vector.load %arg6[%c0_6, %c0_7] : memref<8x128xf32, #tpu.memory_space<vmem>>, vector<8x128xf32>
    tpu.vector_store %arg6[%c0_6, %c0_7], %8 {strides = array<i32>} : memref<8x128xf32, #tpu.memory_space<vmem>>, vector<8x128xf32>,
    %c2_i32 = arith.constant 2 : i32
    %10 = arith.cmpi eq, %arg2, %c2_i32 : i32
    %11 = arith.extui %10 : i1 to i32
    %c0_i32_8 = arith.constant 0 : i32
    %12 = arith.cmpi ne, %11, %c0_i32_8 : i32
    scf.if %12 {
      %c0_9 = arith.constant 0 : index
      %c0_10 = arith.constant 0 : index
      %13 = vector.load %arg6[%c0_9, %c0_10] : memref<8x128xf32, #tpu.memory_space<vmem>>, vector<8x128xf32>
      %c0_11 = arith.constant 0 : index
      %c0_12 = arith.constant 0 : index
      %14 = vector.load %arg5[%c0_11, %c0_12] : memref<8x128xf32, #tpu.memory_space<vmem>>, vector<8x128xf32>
      tpu.vector_store %arg5[%c0_11, %c0_12], %13 {strides = array<i32>} : memref<8x128xf32, #tpu.memory_space<vmem>>, vector<8x128xf32>,
    } else {
    }
    return
  }
  func.func @transform_0(%arg0: i32, %arg1: i32, %arg2: i32) -> (i32, i32) {
    %c0_i32 = arith.constant 0 : i32
    return %arg0, %arg2 : i32, i32
  }
  func.func @transform_1(%arg0: i32, %arg1: i32, %arg2: i32) -> (i32, i32) {
    %c0_i32 = arith.constant 0 : i32
    return %arg2, %arg1 : i32, i32
  }
  func.func @transform_2(%arg0: i32, %arg1: i32, %arg2: i32) -> (i32, i32) {
    %c0_i32 = arith.constant 0 : i32
    return %arg0, %arg1 : i32, i32
  }
}

module attributes {stable_mosaic.version = 11 : i64} {
  func.func @kernel(%arg0: i32, %arg1: i32, %arg2: i32, %arg3: memref<8x128xf32, #tpu.memory_space<vmem>>, %arg4: memref<128x128xbf16, #tpu.memory_space<vmem>>, %arg5: memref<1x128xf32, #tpu.memory_space<vmem>>, %arg6: memref<1x128xf32, #tpu.memory_space<vmem>>, %arg7: memref<8x128xf32, #tpu.memory_space<vmem>>, %arg8: memref<8x128xf32, #tpu.memory_space<vmem>>) attributes {dimension_semantics = [#tpu.dimension_semantics<parallel>, #tpu.dimension_semantics<parallel>, #tpu.dimension_semantics<arbitrary>], iteration_bounds = array<i64: 1, 1, 1>, scalar_prefetch = 0 : i64, scratch_operands = 1 : i64, tpu.core_type = #tpu.core_type<tc>, window_params = [{transform_indices = @transform_0, window_bounds = array<i64: 8, 128>}, {transform_indices = @transform_1, window_bounds = array<i64: 128, 128>}, {transform_indices = @transform_2, window_bounds = array<i64: 1, 128>}, {transform_indices = @transform_3, window_bounds = array<i64: 1, 128>}, {transform_indices = @transform_4, window_bounds = array<i64: 8, 128>}]} {
    %c0_i32 = arith.constant 0 : i32
    %0 = arith.cmpi eq, %arg2, %c0_i32 : i32
    %1 = arith.extui %0 : i1 to i32
    %c0_i32_0 = arith.constant 0 : i32
    %2 = arith.cmpi ne, %1, %c0_i32_0 : i32
    scf.if %2 {
      %cst_15 = arith.constant 0.000000e+00 : f32
      %21 = vector.broadcast %cst_15 : f32 to vector<8x128xf32>
      %c0_16 = arith.constant 0 : index
      %c0_17 = arith.constant 0 : index
      %22 = vector.load %arg8[%c0_16, %c0_17] : memref<8x128xf32, #tpu.memory_space<vmem>>, vector<8x128xf32>
      tpu.vector_store %arg8[%c0_16, %c0_17], %21 {strides = array<i32>} : memref<8x128xf32, #tpu.memory_space<vmem>>, vector<8x128xf32>,
    } else {
    }
    %c0 = arith.constant 0 : index
    %c0_1 = arith.constant 0 : index
    %3 = vector.load %arg3[%c0, %c0_1] : memref<8x128xf32, #tpu.memory_space<vmem>>, vector<8x128xf32>
    %c0_2 = arith.constant 0 : index
    %c0_3 = arith.constant 0 : index
    %4 = vector.load %arg5[%c0_2, %c0_3] : memref<1x128xf32, #tpu.memory_space<vmem>>, vector<1x128xf32>
    %5 = vector.broadcast %4 : vector<1x128xf32> to vector<8x128xf32>
    %6 = arith.mulf %3, %5 : vector<8x128xf32>
    %c0_4 = arith.constant 0 : index
    %c0_5 = arith.constant 0 : index
    %7 = vector.load %arg6[%c0_4, %c0_5] : memref<1x128xf32, #tpu.memory_space<vmem>>, vector<1x128xf32>
    %8 = vector.broadcast %7 : vector<1x128xf32> to vector<8x128xf32>
    %9 = arith.addf %6, %8 : vector<8x128xf32>
    %cst = arith.constant 0.000000e+00 : f32
    %10 = vector.broadcast %cst : f32 to vector<8x128xf32>
    %11 = arith.maximumf %9, %10 : vector<8x128xf32>
    %c0_6 = arith.constant 0 : index
    %c0_7 = arith.constant 0 : index
    %12 = vector.load %arg8[%c0_6, %c0_7] : memref<8x128xf32, #tpu.memory_space<vmem>>, vector<8x128xf32>
    %13 = arith.truncf %11 : vector<8x128xf32> to vector<8x128xbf16>
    %c0_8 = arith.constant 0 : index
    %c0_9 = arith.constant 0 : index
    %14 = vector.load %arg4[%c0_8, %c0_9] : memref<128x128xbf16, #tpu.memory_space<vmem>>, vector<128x128xbf16>
    %cst_10 = arith.constant dense<0.000000e+00> : vector<8x128xf32>
    %15 = tpu.matmul %13, %14, %cst_10 {dimension_numbers = #tpu.dot_dimension_numbers<[1], [0], [0], [1], [0, 0, 1, 1], [], []>} : vector<8x128xbf16>, vector<128x128xbf16>, vector<8x128xf32> -> vector<8x128xf32>
    %16 = arith.addf %12, %15 : vector<8x128xf32>
    %c0_11 = arith.constant 0 : index
    %c0_12 = arith.constant 0 : index
    %17 = vector.load %arg8[%c0_11, %c0_12] : memref<8x128xf32, #tpu.memory_space<vmem>>, vector<8x128xf32>
    tpu.vector_store %arg8[%c0_11, %c0_12], %16 {strides = array<i32>} : memref<8x128xf32, #tpu.memory_space<vmem>>, vector<8x128xf32>,
    %c0_i32_13 = arith.constant 0 : i32
    %18 = arith.cmpi eq, %arg2, %c0_i32_13 : i32
    %19 = arith.extui %18 : i1 to i32
    %c0_i32_14 = arith.constant 0 : i32
    %20 = arith.cmpi ne, %19, %c0_i32_14 : i32
    scf.if %20 {
      %c0_15 = arith.constant 0 : index
      %c0_16 = arith.constant 0 : index
      %21 = vector.load %arg8[%c0_15, %c0_16] : memref<8x128xf32, #tpu.memory_space<vmem>>, vector<8x128xf32>
      %c0_17 = arith.constant 0 : index
      %c0_18 = arith.constant 0 : index
      %22 = vector.load %arg7[%c0_17, %c0_18] : memref<8x128xf32, #tpu.memory_space<vmem>>, vector<8x128xf32>
      tpu.vector_store %arg7[%c0_17, %c0_18], %21 {strides = array<i32>} : memref<8x128xf32, #tpu.memory_space<vmem>>, vector<8x128xf32>,
    } else {
    }
    return
  }
  func.func @transform_0(%arg0: i32, %arg1: i32, %arg2: i32) -> (i32, i32) {
    %c0_i32 = arith.constant 0 : i32
    return %arg0, %arg2 : i32, i32
  }
  func.func @transform_1(%arg0: i32, %arg1: i32, %arg2: i32) -> (i32, i32) {
    %c0_i32 = arith.constant 0 : i32
    return %arg2, %arg1 : i32, i32
  }
  func.func @transform_2(%arg0: i32, %arg1: i32, %arg2: i32) -> (i32, i32) {
    %c0_i32 = arith.constant 0 : i32
    %c0_i32_0 = arith.constant 0 : i32
    return %c0_i32, %arg2 : i32, i32
  }
  func.func @transform_3(%arg0: i32, %arg1: i32, %arg2: i32) -> (i32, i32) {
    %c0_i32 = arith.constant 0 : i32
    %c0_i32_0 = arith.constant 0 : i32
    return %c0_i32, %arg2 : i32, i32
  }
  func.func @transform_4(%arg0: i32, %arg1: i32, %arg2: i32) -> (i32, i32) {
    %c0_i32 = arith.constant 0 : i32
    return %arg0, %arg1 : i32, i32
  }
}

module attributes {stable_mosaic.version = 11 : i64} {
  func.func @_tail_kernel(%arg0: i32, %arg1: memref<1x1x128xf32, #tpu.memory_space<vmem>>, %arg2: memref<1x128xf32, #tpu.memory_space<vmem>>, %arg3: memref<1x128xf32, #tpu.memory_space<vmem>>, %arg4: memref<128x128xbf16, #tpu.memory_space<vmem>>, %arg5: memref<1x128xf32, #tpu.memory_space<vmem>>, %arg6: memref<1x1x128xf32, #tpu.memory_space<vmem>>) attributes {dimension_semantics = [#tpu.dimension_semantics<parallel>], iteration_bounds = array<i64: 2>, scalar_prefetch = 0 : i64, scratch_operands = 0 : i64, tpu.core_type = #tpu.core_type<tc>, window_params = [{transform_indices = @transform_0, window_bounds = array<i64: 1, 1, 128>}, {pipeline_mode = #tpu.pipeline_mode<synchronous>, transform_indices = @transform_1, window_bounds = array<i64: 1, 128>}, {pipeline_mode = #tpu.pipeline_mode<synchronous>, transform_indices = @transform_2, window_bounds = array<i64: 1, 128>}, {pipeline_mode = #tpu.pipeline_mode<synchronous>, transform_indices = @transform_3, window_bounds = array<i64: 128, 128>}, {pipeline_mode = #tpu.pipeline_mode<synchronous>, transform_indices = @transform_4, window_bounds = array<i64: 1, 128>}, {transform_indices = @transform_5, window_bounds = array<i64: 1, 1, 128>}]} {
    %c0 = arith.constant 0 : index
    %c0_0 = arith.constant 0 : index
    %c0_1 = arith.constant 0 : index
    %0 = vector.load %arg1[%c0, %c0_0, %c0_1] : memref<1x1x128xf32, #tpu.memory_space<vmem>>, vector<1x1x128xf32>
    %1 = vector.shape_cast %0 : vector<1x1x128xf32> to vector<1x128xf32>
    %c0_2 = arith.constant 0 : index
    %c0_3 = arith.constant 0 : index
    %2 = vector.load %arg2[%c0_2, %c0_3] : memref<1x128xf32, #tpu.memory_space<vmem>>, vector<1x128xf32>
    %3 = arith.mulf %1, %2 : vector<1x128xf32>
    %c0_4 = arith.constant 0 : index
    %c0_5 = arith.constant 0 : index
    %4 = vector.load %arg3[%c0_4, %c0_5] : memref<1x128xf32, #tpu.memory_space<vmem>>, vector<1x128xf32>
    %5 = arith.addf %3, %4 : vector<1x128xf32>
    %cst = arith.constant 0.000000e+00 : f32
    %6 = vector.broadcast %cst : f32 to vector<1x128xf32>
    %7 = arith.maximumf %5, %6 : vector<1x128xf32>
    %cst_6 = arith.constant dense<0.000000e+00> : vector<128xf32>
    %8 = vector.multi_reduction <add>, %7, %cst_6 [0] : vector<1x128xf32> to vector<128xf32>
    %9 = vector.shape_cast %8 : vector<128xf32> to vector<1x128xf32>
    %cst_7 = arith.constant 1.000000e+00 : f32
    %10 = vector.broadcast %cst_7 : f32 to vector<1x128xf32>
    %11 = arith.divf %9, %10 : vector<1x128xf32>
    %12 = arith.truncf %11 : vector<1x128xf32> to vector<1x128xbf16>
    %c0_8 = arith.constant 0 : index
    %c0_9 = arith.constant 0 : index
    %13 = vector.load %arg4[%c0_8, %c0_9] : memref<128x128xbf16, #tpu.memory_space<vmem>>, vector<128x128xbf16>
    %cst_10 = arith.constant dense<0.000000e+00> : vector<1x128xf32>
    %14 = tpu.matmul %12, %13, %cst_10 {dimension_numbers = #tpu.dot_dimension_numbers<[1], [0], [0], [1], [0, 0, 1, 1], [], []>} : vector<1x128xbf16>, vector<128x128xbf16>, vector<1x128xf32> -> vector<1x128xf32>
    %c0_11 = arith.constant 0 : index
    %c0_12 = arith.constant 0 : index
    %15 = vector.load %arg5[%c0_11, %c0_12] : memref<1x128xf32, #tpu.memory_space<vmem>>, vector<1x128xf32>
    %16 = arith.addf %14, %15 : vector<1x128xf32>
    %c0_13 = arith.constant 0 : index
    %c0_14 = arith.constant 0 : index
    %c0_15 = arith.constant 0 : index
    %17 = vector.load %arg6[%c0_13, %c0_14, %c0_15] : memref<1x1x128xf32, #tpu.memory_space<vmem>>, vector<1x1x128xf32>
    %18 = vector.shape_cast %17 : vector<1x1x128xf32> to vector<1x128xf32>
    %19 = vector.shape_cast %16 : vector<1x128xf32> to vector<1x1x128xf32>
    tpu.vector_store %arg6[%c0_13, %c0_14, %c0_15], %19 {strides = array<i32>} : memref<1x1x128xf32, #tpu.memory_space<vmem>>, vector<1x1x128xf32>,
    return
  }
  func.func @transform_0(%arg0: i32) -> (i32, i32, i32) {
    %c0_i32 = arith.constant 0 : i32
    %c0_i32_0 = arith.constant 0 : i32
    %c0_i32_1 = arith.constant 0 : i32
    return %arg0, %c0_i32, %c0_i32_0 : i32, i32, i32
  }
  func.func @transform_1(%arg0: i32) -> (i32, i32) {
    %c0_i32 = arith.constant 0 : i32
    %c0_i32_0 = arith.constant 0 : i32
    %c0_i32_1 = arith.constant 0 : i32
    return %c0_i32, %c0_i32_0 : i32, i32
  }
  func.func @transform_2(%arg0: i32) -> (i32, i32) {
    %c0_i32 = arith.constant 0 : i32
    %c0_i32_0 = arith.constant 0 : i32
    %c0_i32_1 = arith.constant 0 : i32
    return %c0_i32, %c0_i32_0 : i32, i32
  }
  func.func @transform_3(%arg0: i32) -> (i32, i32) {
    %c0_i32 = arith.constant 0 : i32
    %c0_i32_0 = arith.constant 0 : i32
    %c0_i32_1 = arith.constant 0 : i32
    return %c0_i32, %c0_i32_0 : i32, i32
  }
  func.func @transform_4(%arg0: i32) -> (i32, i32) {
    %c0_i32 = arith.constant 0 : i32
    %c0_i32_0 = arith.constant 0 : i32
    %c0_i32_1 = arith.constant 0 : i32
    return %c0_i32, %c0_i32_0 : i32, i32
  }
  func.func @transform_5(%arg0: i32) -> (i32, i32, i32) {
    %c0_i32 = arith.constant 0 : i32
    %c0_i32_0 = arith.constant 0 : i32
    %c0_i32_1 = arith.constant 0 : i32
    return %arg0, %c0_i32, %c0_i32_0 : i32, i32, i32
  }
}

</mosaic_0001>

<llo_original>
// kernel: timm_model_forward.21
$region0: #{timm_model_forward.21}
  #allocation0 [shape = 'u32[]', space=smem, size = 0x4, offset = 0x4, fixed_abs, tag = 'smem constant byte address 0x4 - core index']
  #allocation1 [shape = 'u32[72,128]{1,0:T(1,128)}', space=vmem, size = 0x9000, scoped, tag = 'internal scratch']
  #allocation2 [shape = 'f32[256,128]{1,0:T(8,128)}', space=vmem, size = 0x20000, scoped, tag = 'scratch operand']
  %s0 = inlined_call_operand.vmem [shape: f32[512,256], index: 0, kind: input, shape index: {}]
  %s1 = inlined_call_operand.vmem [shape: bf16[256,128], index: 1, kind: input, shape index: {}]
  %s2 = inlined_call_operand.vmem [shape: f32[1,128], index: 2, kind: input, shape index: {}]
  %s3 = inlined_call_operand.vmem [shape: f32[1,128], index: 3, kind: input, shape index: {}]
  %s4 = inlined_call_operand.vmem [shape: f32[512,128], index: 4, kind: output, shape index: {}]
  %s5 = sld [smem:[#allocation0]]
  $region57: #{timm_model_forward.21} parent=0
    _
  %s7 = ssub.s32 1, %s5
  %s8 = scalar_select 0, %s7, %s5
  loop: start=0, step=1, limit=4
  $region2: #{timm_model_forward.21} parent=0 // loop_pre_header
    _
  $region3: #{timm_model_forward.21} parent=0 // loop_header
    %s10 = sphi 0, %s14
    %p11 = scmp.ge.s32.totalorder %s10, 4
    %s17 = sphi 0, %s36
    %s18 = sphi 0, %s32
    %s19 = sphi 0, %s28
    %s20 = sphi 0, %s17
    %s21 = sphi 0, %s18
    %s22 = sphi 0, %s19
    %s23 = sphi 0, %s20
    %s24 = sphi 0, %s21
    %s25 = sphi 0, %s22
    %s41 = sphi 0, %s43
    %s44 = sphi 0, %s41
    %s45 = sphi 0, %s44
    %s61 = sphi 0, %s45
    %s69 = sphi 0, %s71
    %s72 = sphi 0, %s69
    %s73 = sphi 0, %s72
    %s89 = sphi 0, %s73
    %s95 = sphi 0, %s97
    %s98 = sphi 0, %s95
    %s99 = sphi 0, %s98
    %s115 = sphi 0, %s99
    %s121 = sphi 0, %s123
    %s124 = sphi 0, %s121
    %s125 = sphi 0, %s124
    %s141 = sphi 0, %s125
    %s149 = sphi 0, %s151
    %s152 = sphi 0, %s149
    %s153 = sphi 0, %s152
    %s169 = sphi 0, %s153
  $region4: #{timm_model_forward.21} parent=0 // loop_header_branch
    %13 = sbr.rel (%p11) target = $region8
  $region5: #{timm_model_forward.21} parent=0 // loop_body
    %s15 = ssub.s32 %s10, 1
    %s16 = ssub.s32 %s10, 2
    %s26 = sadd.s32 1, %s19
    %p27 = scmp.ge.s32.totalorder %s26, 1
    %s28 = scalar_select %p27, 0, %s26
    %s29 = sadd.s32 1, %s18
    %s30 = scalar_select %p27, %s29, %s18
    %p31 = scmp.ge.s32.totalorder %s30, 1
    %s32 = scalar_select %p31, 0, %s30
    %s33 = sadd.s32 1, %s17
    %s34 = scalar_select %p31, %s33, %s17
    %p35 = scmp.ge.s32.totalorder %s34, 2
    %s36 = scalar_select %p35, 0, %s34
    %s37 = ssub.s32 %s17, %s36
    %s38 = ssub.s32 %s19, %s28
    %s39 = sor.u32 %s37, %s38
    %p40 = scmp.eq.s32.totalorder %s39, 0
    %s42 = sadd.s32 %s41, 1
    %s43 = scalar_select %p40, %s41, %s42
    %p46 = pneg %p40
    %p47 = scmp.eq.s32.totalorder %s10, 1
    %p48 = por %p46, %p47
    %p49 = scmp.ne.s32.totalorder %s41, %s44
    %p50 = scmp.eq.s32.totalorder %s10, 0
    %p51 = por %p49, %p50
    %p52 = scmp.ne.s32.totalorder %s41, %s44
    %p53 = scmp.eq.s32.totalorder %s15, 1
    %p54 = por %p52, %p53
    %p55 = scmp.ne.s32.totalorder %s44, %s45
    %p56 = scmp.eq.s32.totalorder %s15, 0
    %p57 = por %p55, %p56
    %p58 = scmp.ne.s32.totalorder %s44, %s45
    %p59 = scmp.eq.s32.totalorder %s16, 1
    %p60 = por %p58, %p59
    %p62 = scmp.ne.s32.totalorder %s45, %s61
    %p63 = scmp.eq.s32.totalorder %s16, 0
    %p64 = por %p62, %p63
    %s65 = ssub.s32 %s19, %s28
    %s66 = ssub.s32 %s18, %s32
    %s67 = sor.u32 %s65, %s66
    %p68 = scmp.eq.s32.totalorder %s67, 0
    %s70 = sadd.s32 %s69, 1
    %s71 = scalar_select %p68, %s69, %s70
    %p74 = pneg %p68
    %p75 = scmp.eq.s32.totalorder %s10, 1
    %p76 = por %p74, %p75
    %p77 = scmp.ne.s32.totalorder %s69, %s72
    %p78 = scmp.eq.s32.totalorder %s10, 0
    %p79 = por %p77, %p78
    %p80 = scmp.ne.s32.totalorder %s69, %s72
    %p81 = scmp.eq.s32.totalorder %s15, 1
    %p82 = por %p80, %p81
    %p83 = scmp.ne.s32.totalorder %s72, %s73
    %p84 = scmp.eq.s32.totalorder %s15, 0
    %p85 = por %p83, %p84
    %p86 = scmp.ne.s32.totalorder %s72, %s73
    %p87 = scmp.eq.s32.totalorder %s16, 1
    %p88 = por %p86, %p87
    %p90 = scmp.ne.s32.totalorder %s73, %s89
    %p91 = scmp.eq.s32.totalorder %s16, 0
    %p92 = por %p90, %p91
    %s93 = ssub.s32 %s18, %s32
    %p94 = scmp.eq.s32.totalorder %s93, 0
    %s96 = sadd.s32 %s95, 1
    %s97 = scalar_select %p94, %s95, %s96
    %p100 = pneg %p94
    %p101 = scmp.eq.s32.totalorder %s10, 1
    %p102 = por %p100, %p101
    %p103 = scmp.ne.s32.totalorder %s95, %s98
    %p104 = scmp.eq.s32.totalorder %s10, 0
    %p105 = por %p103, %p104
    %p106 = scmp.ne.s32.totalorder %s95, %s98
    %p107 = scmp.eq.s32.totalorder %s15, 1
    %p108 = por %p106, %p107
    %p109 = scmp.ne.s32.totalorder %s98, %s99
    %p110 = scmp.eq.s32.totalorder %s15, 0
    %p111 = por %p109, %p110
    %p112 = scmp.ne.s32.totalorder %s98, %s99
    %p113 = scmp.eq.s32.totalorder %s16, 1
    %p114 = por %p112, %p113
    %p116 = scmp.ne.s32.totalorder %s99, %s115
    %p117 = scmp.eq.s32.totalorder %s16, 0
    %p118 = por %p116, %p117
    %s119 = ssub.s32 %s18, %s32
    %p120 = scmp.eq.s32.totalorder %s119, 0
    %s122 = sadd.s32 %s121, 1
    %s123 = scalar_select %p120, %s121, %s122
    %p126 = pneg %p120
    %p127 = scmp.eq.s32.totalorder %s10, 1
    %p128 = por %p126, %p127
    %p129 = scmp.ne.s32.totalorder %s121, %s124
    %p130 = scmp.eq.s32.totalorder %s10, 0
    %p131 = por %p129, %p130
    %p132 = scmp.ne.s32.totalorder %s121, %s124
    %p133 = scmp.eq.s32.totalorder %s15, 1
    %p134 = por %p132, %p133
    %p135 = scmp.ne.s32.totalorder %s124, %s125
    %p136 = scmp.eq.s32.totalorder %s15, 0
    %p137 = por %p135, %p136
    %p138 = scmp.ne.s32.totalorder %s124, %s125
    %p139 = scmp.eq.s32.totalorder %s16, 1
    %p140 = por %p138, %p139
    %p142 = scmp.ne.s32.totalorder %s125, %s141
    %p143 = scmp.eq.s32.totalorder %s16, 0
    %p144 = por %p142, %p143
    %s145 = ssub.s32 %s17, %s36
    %s146 = ssub.s32 %s18, %s32
    %s147 = sor.u32 %s145, %s146
    %p148 = scmp.eq.s32.totalorder %s147, 0
    %s150 = sadd.s32 %s149, 1
    %s151 = scalar_select %p148, %s149, %s150
    %p154 = pneg %p148
    %p155 = scmp.eq.s32.totalorder %s10, 1
    %p156 = por %p154, %p155
    %p157 = scmp.ne.s32.totalorder %s149, %s152
    %p158 = scmp.eq.s32.totalorder %s10, 0
    %p159 = por %p157, %p158
    %p160 = scmp.ne.s32.totalorder %s149, %s152
    %p161 = scmp.eq.s32.totalorder %s15, 1
    %p162 = por %p160, %p161
    %p163 = scmp.ne.s32.totalorder %s152, %s153
    %p164 = scmp.eq.s32.totalorder %s15, 0
    %p165 = por %p163, %p164
    %p166 = scmp.ne.s32.totalorder %s152, %s153
    %p167 = scmp.eq.s32.totalorder %s16, 1
    %p168 = por %p166, %p167
    %p170 = scmp.ne.s32.totalorder %s153, %s169
    %p171 = scmp.eq.s32.totalorder %s16, 0
    %p172 = por %p170, %p171
    %p173 = scmp.le.s32.totalorder 1, %s10
    %p174 = scmp.lt.s32.totalorder %s10, 3
    %p175 = pnand %p173, %p174
    %p176 = pneg %p175
    // Predicated region
    $region9: #{timm_model_forward.21} parent=5 // pred_check
      _
    $region10: #{timm_model_forward.21} parent=5 // pred_check_branch
      %178 = sbr.rel (%p175) target = $region12
    $region11: #{timm_model_forward.21} parent=5 // pred_region
      %s179 = ssub.s32 %s10, 1
      // Predicated region
      $region13: #{timm_model_forward.21} parent=11 // pred_check
        %p180 = pneg %p85
      $region14: #{timm_model_forward.21} parent=11 // pred_check_branch
        %182 = sbr.rel (%p180) target = $region16
      $region15: #{timm_model_forward.21} parent=11 // pred_region
        %s183 = smul.u32 32, %s22
        %p184 = scmp.lt.s32.totalorder %s183, 31
        %s185 = scalar_select %p184, %s183, 31
        %p186 = scmp.lt.s32.totalorder %s21, 0
        %s187 = scalar_select %p186, %s21, 0
        %s188 = sadd.s32 %s187, %s185
        %s189 = smul.addr %s188, 4
        %s190 = scalar_lea.vmem %s1, %s189
        %s191 = smul.u32 32, %s22
      $region16: #{timm_model_forward.21} parent=11 // pred_fallthru
        _
      // Predicated region
      $region17: #{timm_model_forward.21} parent=11 // pred_check
        %p192 = pneg %p111
      $region18: #{timm_model_forward.21} parent=11 // pred_check_branch
        %194 = sbr.rel (%p192) target = $region20
      $region19: #{timm_model_forward.21} parent=11 // pred_region
        %p195 = scmp.lt.s32.totalorder %s21, 0
        %s196 = scalar_select %p195, %s21, 0
        %s197 = scalar_lea.vmem %s2, %s196
      $region20: #{timm_model_forward.21} parent=11 // pred_fallthru
        _
      // Predicated region
      $region21: #{timm_model_forward.21} parent=11 // pred_check
        %p198 = pneg %p137
      $region22: #{timm_model_forward.21} parent=11 // pred_check_branch
        %200 = sbr.rel (%p198) target = $region24
      $region23: #{timm_model_forward.21} parent=11 // pred_region
        %p201 = scmp.lt.s32.totalorder %s21, 0
        %s202 = scalar_select %p201, %s21, 0
        %s203 = scalar_lea.vmem %s3, %s202
      $region24: #{timm_model_forward.21} parent=11 // pred_fallthru
        _
    $region12: #{timm_model_forward.21} parent=5 // pred_fallthru
      _
    %p204 = scmp.lt.s32.totalorder %s10, 2
    // Predicated region
    $region25: #{timm_model_forward.21} parent=5 // pred_check
      %p205 = pneg %p204
    $region26: #{timm_model_forward.21} parent=5 // pred_check_branch
      %207 = sbr.rel (%p205) target = $region28
    $region27: #{timm_model_forward.21} parent=5 // pred_region
      // Predicated region
      $region29: #{timm_model_forward.21} parent=27 // pred_check
        %p208 = pneg %p51
      $region30: #{timm_model_forward.21} parent=27 // pred_check_branch
        %210 = sbr.rel (%p208) target = $region32
      $region31: #{timm_model_forward.21} parent=27 // pred_region
        %s211 = smul.u32 32, %s17
        %s212 = smul.u32 2, %s19
        %p213 = scmp.lt.s32.totalorder %s211, 63
        %s214 = scalar_select %p213, %s211, 63
        %p215 = scmp.lt.s32.totalorder %s212, 1
        %s216 = scalar_select %p215, %s212, 1
        %s217 = smul.addr %s214, 2
        %s218 = sadd.s32 %s216, %s217
        %s219 = smul.addr %s218, 8
        %s220 = scalar_lea.vmem %s0, %s219
        %s221 = smul.u32 32, %s17
        %s222 = smul.u32 2, %s19
      $region32: #{timm_model_forward.21} parent=27 // pred_fallthru
        _
    $region28: #{timm_model_forward.21} parent=5 // pred_fallthru
      _
    %p223 = scmp.le.s32.totalorder 1, %s10
    %p224 = scmp.lt.s32.totalorder %s10, 3
    %p225 = pnand %p223, %p224
    %p226 = pneg %p225
    // Predicated region
    $region33: #{timm_model_forward.21} parent=5 // pred_check
      _
    $region34: #{timm_model_forward.21} parent=5 // pred_check_branch
      %228 = sbr.rel (%p225) target = $region36
    $region35: #{timm_model_forward.21} parent=5 // pred_region
      %s229 = ssub.s32 %s10, 1
      %s230 = smul.u32 32, %s20
      %s231 = smul.u32 2, %s22
      %p232 = scmp.lt.s32.totalorder %s230, 63
      %s233 = scalar_select %p232, %s230, 63
      %p234 = scmp.lt.s32.totalorder %s231, 1
      %s235 = scalar_select %p234, %s231, 1
      %s236 = smul.addr %s233, 2
      %s237 = sadd.s32 %s235, %s236
      %s238 = smul.addr %s237, 8
      %s239 = scalar_lea.vmem %s0, %s238
      %p240 = pneg %p57
      %p241 = pneg %p54
      %s242 = smul.u32 32, %s22
      %p243 = scmp.lt.s32.totalorder %s242, 31
      %s244 = scalar_select %p243, %s242, 31
      %p245 = scmp.lt.s32.totalorder %s21, 0
      %s246 = scalar_select %p245, %s21, 0
      %s247 = sadd.s32 %s246, %s244
      %s248 = smul.addr %s247, 4
      %s249 = scalar_lea.vmem %s1, %s248
      %p250 = pneg %p85
      %p251 = pneg %p82
      %p252 = scmp.lt.s32.totalorder %s21, 0
      %s253 = scalar_select %p252, %s21, 0
      %s254 = scalar_lea.vmem %s2, %s253
      %p255 = pneg %p111
      %p256 = pneg %p108
      %p257 = scmp.lt.s32.totalorder %s21, 0
      %s258 = scalar_select %p257, %s21, 0
      %s259 = scalar_lea.vmem %s3, %s258
      %p260 = pneg %p137
      %p261 = pneg %p134
      %p262 = pneg %p165
      %p263 = pneg %p162
      %s264 = smul.u32 32, %s20
      %p265 = scmp.lt.s32.totalorder %s264, 63
      %s266 = scalar_select %p265, %s264, 63
      %p267 = scmp.lt.s32.totalorder %s21, 0
      %s268 = scalar_select %p267, %s21, 0
      %s269 = sadd.s32 %s268, %s266
      %s270 = smul.addr %s269, 8
      %s271 = scalar_lea.vmem %s4, %s270
      %s272 = smul.u32 32, %s20
      %s273 = smul.u32 2, %s22
      %p274 = scmp.lt.s32.totalorder %s272, 63
      %s275 = scalar_select %p274, %s272, 63
      %p276 = scmp.lt.s32.totalorder %s273, 1
      %s277 = scalar_select %p276, %s273, 1
      %s278 = smul.addr %s275, 2
      %s279 = sadd.s32 %s277, %s278
      %s280 = smul.addr %s279, 8
      %s281 = scalar_lea.vmem %s0, %s280
      %s282 = smul.u32 32, %s20
      %s283 = smul.u32 2, %s22
      %s284 = smul.u32 32, %s22
      %p285 = scmp.lt.s32.totalorder %s284, 31
      %s286 = scalar_select %p285, %s284, 31
      %p287 = scmp.lt.s32.totalorder %s21, 0
      %s288 = scalar_select %p287, %s21, 0
      %s289 = sadd.s32 %s288, %s286
      %s290 = smul.addr %s289, 4
      %s291 = scalar_lea.vmem %s1, %s290
      %s292 = smul.u32 32, %s22
      %p293 = scmp.lt.s32.totalorder %s21, 0
      %s294 = scalar_select %p293, %s21, 0
      %s295 = scalar_lea.vmem %s2, %s294
      %p296 = scmp.lt.s32.totalorder %s21, 0
      %s297 = scalar_select %p296, %s21, 0
      %s298 = scalar_lea.vmem %s3, %s297
      %s299 = smul.u32 32, %s20
      %p300 = scmp.lt.s32.totalorder %s299, 63
      %s301 = scalar_select %p300, %s299, 63
      %p302 = scmp.lt.s32.totalorder %s21, 0
      %s303 = scalar_select %p302, %s21, 0
      %s304 = sadd.s32 %s303, %s301
      %s305 = smul.addr %s304, 8
      %s306 = scalar_lea.vmem %s4, %s305
      %s307 = smul.u32 32, %s20
      %p308 = scmp.eq.s32.totalorder %s22, 0
      // Predicated region
      $region37: #{timm_model_forward.21} parent=35 // pred_check
        %p309 = pneg %p308
      $region38: #{timm_model_forward.21} parent=35 // pred_check_branch
        %311 = sbr.rel (%p309) target = $region40
      $region39: #{timm_model_forward.21} parent=35 // pred_region
        %312 = vst [vmem:[#allocation2] sm:$0xff] 0.0
        %313 = vst [vmem:[#allocation2 + $0x8] sm:$0xff] 0.0
        %314 = vst [vmem:[#allocation2 + $0x10] sm:$0xff] 0.0
        %315 = vst [vmem:[#allocation2 + $0x18] sm:$0xff] 0.0
        %316 = vst [vmem:[#allocation2 + $0x20] sm:$0xff] 0.0
        %317 = vst [vmem:[#allocation2 + $0x28] sm:$0xff] 0.0
        %318 = vst [vmem:[#allocation2 + $0x30] sm:$0xff] 0.0
        %319 = vst [vmem:[#allocation2 + $0x38] sm:$0xff] 0.0
        %320 = vst [vmem:[#allocation2 + $0x40] sm:$0xff] 0.0
        %321 = vst [vmem:[#allocation2 + $0x48] sm:$0xff] 0.0
        %322 = vst [vmem:[#allocation2 + $0x50] sm:$0xff] 0.0
        %323 = vst [vmem:[#allocation2 + $0x58] sm:$0xff] 0.0
        %324 = vst [vmem:[#allocation2 + $0x60] sm:$0xff] 0.0
        %325 = vst [vmem:[#allocation2 + $0x68] sm:$0xff] 0.0
        %326 = vst [vmem:[#allocation2 + $0x70] sm:$0xff] 0.0
        %327 = vst [vmem:[#allocation2 + $0x78] sm:$0xff] 0.0
        %328 = vst [vmem:[#allocation2 + $0x80] sm:$0xff] 0.0
        %329 = vst [vmem:[#allocation2 + $0x88] sm:$0xff] 0.0
        %330 = vst [vmem:[#allocation2 + $0x90] sm:$0xff] 0.0
        %331 = vst [vmem:[#allocation2 + $0x98] sm:$0xff] 0.0
        %332 = vst [vmem:[#allocation2 + $0xa0] sm:$0xff] 0.0
        %333 = vst [vmem:[#allocation2 + $0xa8] sm:$0xff] 0.0
        %334 = vst [vmem:[#allocation2 + $0xb0] sm:$0xff] 0.0
        %335 = vst [vmem:[#allocation2 + $0xb8] sm:$0xff] 0.0
        %336 = vst [vmem:[#allocation2 + $0xc0] sm:$0xff] 0.0
        %337 = vst [vmem:[#allocation2 + $0xc8] sm:$0xff] 0.0
        %338 = vst [vmem:[#allocation2 + $0xd0] sm:$0xff] 0.0
        %339 = vst [vmem:[#allocation2 + $0xd8] sm:$0xff] 0.0
        %340 = vst [vmem:[#allocation2 + $0xe0] sm:$0xff] 0.0
        %341 = vst [vmem:[#allocation2 + $0xe8] sm:$0xff] 0.0
        %342 = vst [vmem:[#allocation2 + $0xf0] sm:$0xff] 0.0
        %343 = vst [vmem:[#allocation2 + $0xf8] sm:$0xff] 0.0
      $region40: #{timm_model_forward.21} parent=35 // pred_fallthru
        _
      %v344 = vld [vmem:[%s281] sm:$0xff]
      %v345 = vld [vmem:[%s281 + $0x8] sm:$0xff]
      %v346 = vld [vmem:[%s281 + $0x10] sm:$0xff]
      %v347 = vld [vmem:[%s281 + $0x18] sm:$0xff]
      %v348 = vld [vmem:[%s281 + $0x20] sm:$0xff]
      %v349 = vld [vmem:[%s281 + $0x28] sm:$0xff]
      %v350 = vld [vmem:[%s281 + $0x30] sm:$0xff]
      %v351 = vld [vmem:[%s281 + $0x38] sm:$0xff]
      %v352 = vld [vmem:[%s281 + $0x40] sm:$0xff]
      %v353 = vld [vmem:[%s281 + $0x48] sm:$0xff]
      %v354 = vld [vmem:[%s281 + $0x50] sm:$0xff]
      %v355 = vld [vmem:[%s281 + $0x58] sm:$0xff]
      %v356 = vld [vmem:[%s281 + $0x60] sm:$0xff]
      %v357 = vld [vmem:[%s281 + $0x68] sm:$0xff]
      %v358 = vld [vmem:[%s281 + $0x70] sm:$0xff]
      %v359 = vld [vmem:[%s281 + $0x78] sm:$0xff]
      %v360 = vld [vmem:[%s281 + $0x80] sm:$0xff]
      %v361 = vld [vmem:[%s281 + $0x88] sm:$0xff]
      %v362 = vld [vmem:[%s281 + $0x90] sm:$0xff]
      %v363 = vld [vmem:[%s281 + $0x98] sm:$0xff]
      %v364 = vld [vmem:[%s281 + $0xa0] sm:$0xff]
      %v365 = vld [vmem:[%s281 + $0xa8] sm:$0xff]
      %v366 = vld [vmem:[%s281 + $0xb0] sm:$0xff]
      %v367 = vld [vmem:[%s281 + $0xb8] sm:$0xff]
      %v368 = vld [vmem:[%s281 + $0xc0] sm:$0xff]
      %v369 = vld [vmem:[%s281 + $0xc8] sm:$0xff]
      %v370 = vld [vmem:[%s281 + $0xd0] sm:$0xff]
      %v371 = vld [vmem:[%s281 + $0xd8] sm:$0xff]
      %v372 = vld [vmem:[%s281 + $0xe0] sm:$0xff]
      %v373 = vld [vmem:[%s281 + $0xe8] sm:$0xff]
      %v374 = vld [vmem:[%s281 + $0xf0] sm:$0xff]
      %v375 = vld [vmem:[%s281 + $0xf8] sm:$0xff]
      %v376 = vld [vmem:[%s281 + $0x100] sm:$0xff]
      %v377 = vld [vmem:[%s281 + $0x108] sm:$0xff]
      %v378 = vld [vmem:[%s281 + $0x110] sm:$0xff]
      %v379 = vld [vmem:[%s281 + $0x118] sm:$0xff]
      %v380 = vld [vmem:[%s281 + $0x120] sm:$0xff]
      %v381 = vld [vmem:[%s281 + $0x128] sm:$0xff]
      %v382 = vld [vmem:[%s281 + $0x130] sm:$0xff]
      %v383 = vld [vmem:[%s281 + $0x138] sm:$0xff]
      %v384 = vld [vmem:[%s281 + $0x140] sm:$0xff]
      %v385 = vld [vmem:[%s281 + $0x148] sm:$0xff]
      %v386 = vld [vmem:[%s281 + $0x150] sm:$0xff]
      %v387 = vld [vmem:[%s281 + $0x158] sm:$0xff]
      %v388 = vld [vmem:[%s281 + $0x160] sm:$0xff]
      %v389 = vld [vmem:[%s281 + $0x168] sm:$0xff]
      %v390 = vld [vmem:[%s281 + $0x170] sm:$0xff]
      %v391 = vld [vmem:[%s281 + $0x178] sm:$0xff]
      %v392 = vld [vmem:[%s281 + $0x180] sm:$0xff]
      %v393 = vld [vmem:[%s281 + $0x188] sm:$0xff]
      %v394 = vld [vmem:[%s281 + $0x190] sm:$0xff]
      %v395 = vld [vmem:[%s281 + $0x198] sm:$0xff]
      %v396 = vld [vmem:[%s281 + $0x1a0] sm:$0xff]
      %v397 = vld [vmem:[%s281 + $0x1a8] sm:$0xff]
      %v398 = vld [vmem:[%s281 + $0x1b0] sm:$0xff]
      %v399 = vld [vmem:[%s281 + $0x1b8] sm:$0xff]
      %v400 = vld [vmem:[%s281 + $0x1c0] sm:$0xff]
      %v401 = vld [vmem:[%s281 + $0x1c8] sm:$0xff]
      %v402 = vld [vmem:[%s281 + $0x1d0] sm:$0xff]
      %v403 = vld [vmem:[%s281 + $0x1d8] sm:$0xff]
      %v404 = vld [vmem:[%s281 + $0x1e0] sm:$0xff]
      %v405 = vld [vmem:[%s281 + $0x1e8] sm:$0xff]
      %v406 = vld [vmem:[%s281 + $0x1f0] sm:$0xff]
      %v407 = vld [vmem:[%s281 + $0x1f8] sm:$0xff]
      %v408 = vld [vmem:[#allocation2] sm:$0xff]
      %v409 = vld [vmem:[#allocation2 + $0x8] sm:$0xff]
      %v410 = vld [vmem:[#allocation2 + $0x10] sm:$0xff]
      %v411 = vld [vmem:[#allocation2 + $0x18] sm:$0xff]
      %v412 = vld [vmem:[#allocation2 + $0x20] sm:$0xff]
      %v413 = vld [vmem:[#allocation2 + $0x28] sm:$0xff]
      %v414 = vld [vmem:[#allocation2 + $0x30] sm:$0xff]
      %v415 = vld [vmem:[#allocation2 + $0x38] sm:$0xff]
      %v416 = vld [vmem:[#allocation2 + $0x40] sm:$0xff]
      %v417 = vld [vmem:[#allocation2 + $0x48] sm:$0xff]
      %v418 = vld [vmem:[#allocation2 + $0x50] sm:$0xff]
      %v419 = vld [vmem:[#allocation2 + $0x58] sm:$0xff]
      %v420 = vld [vmem:[#allocation2 + $0x60] sm:$0xff]
      %v421 = vld [vmem:[#allocation2 + $0x68] sm:$0xff]
      %v422 = vld [vmem:[#allocation2 + $0x70] sm:$0xff]
      %v423 = vld [vmem:[#allocation2 + $0x78] sm:$0xff]
      %v424 = vld [vmem:[#allocation2 + $0x80] sm:$0xff]
      %v425 = vld [vmem:[#allocation2 + $0x88] sm:$0xff]
      %v426 = vld [vmem:[#allocation2 + $0x90] sm:$0xff]
      %v427 = vld [vmem:[#allocation2 + $0x98] sm:$0xff]
      %v428 = vld [vmem:[#allocation2 + $0xa0] sm:$0xff]
      %v429 = vld [vmem:[#allocation2 + $0xa8] sm:$0xff]
      %v430 = vld [vmem:[#allocation2 + $0xb0] sm:$0xff]
      %v431 = vld [vmem:[#allocation2 + $0xb8] sm:$0xff]
      %v432 = vld [vmem:[#allocation2 + $0xc0] sm:$0xff]
      %v433 = vld [vmem:[#allocation2 + $0xc8] sm:$0xff]
      %v434 = vld [vmem:[#allocation2 + $0xd0] sm:$0xff]
      %v435 = vld [vmem:[#allocation2 + $0xd8] sm:$0xff]
      %v436 = vld [vmem:[#allocation2 + $0xe0] sm:$0xff]
      %v437 = vld [vmem:[#allocation2 + $0xe8] sm:$0xff]
      %v438 = vld [vmem:[#allocation2 + $0xf0] sm:$0xff]
      %v439 = vld [vmem:[#allocation2 + $0xf8] sm:$0xff]
      %v440 = vpack.c.bf16 %v346, %v344
      %v441 = vpack.c.bf16 %v347, %v345
      %v442 = vpack.c.bf16 %v350, %v348
      %v443 = vpack.c.bf16 %v351, %v349
      %v444 = vpack.c.bf16 %v354, %v352
      %v445 = vpack.c.bf16 %v355, %v353
      %v446 = vpack.c.bf16 %v358, %v356
      %v447 = vpack.c.bf16 %v359, %v357
      %v448 = vpack.c.bf16 %v362, %v360
      %v449 = vpack.c.bf16 %v363, %v361
      %v450 = vpack.c.bf16 %v366, %v364
      %v451 = vpack.c.bf16 %v367, %v365
      %v452 = vpack.c.bf16 %v370, %v368
      %v453 = vpack.c.bf16 %v371, %v369
      %v454 = vpack.c.bf16 %v374, %v372
      %v455 = vpack.c.bf16 %v375, %v373
      %v456 = vpack.c.bf16 %v378, %v376
      %v457 = vpack.c.bf16 %v379, %v377
      %v458 = vpack.c.bf16 %v382, %v380
      %v459 = vpack.c.bf16 %v383, %v381
      %v460 = vpack.c.bf16 %v386, %v384
      %v461 = vpack.c.bf16 %v387, %v385
      %v462 = vpack.c.bf16 %v390, %v388
      %v463 = vpack.c.bf16 %v391, %v389
      %v464 = vpack.c.bf16 %v394, %v392
      %v465 = vpack.c.bf16 %v395, %v393
      %v466 = vpack.c.bf16 %v398, %v396
      %v467 = vpack.c.bf16 %v399, %v397
      %v468 = vpack.c.bf16 %v402, %v400
      %v469 = vpack.c.bf16 %v403, %v401
      %v470 = vpack.c.bf16 %v406, %v404
      %v471 = vpack.c.bf16 %v407, %v405
      %v472 = vld [vmem:[%s291] sm:$0xf]
      %v473 = vld [vmem:[%s291 + $0x4] sm:$0xf]
      %v474 = vld [vmem:[%s291 + $0x8] sm:$0xf]
      %v475 = vld [vmem:[%s291 + $0xc] sm:$0xf]
      %v476 = vld [vmem:[%s291 + $0x10] sm:$0xf]
      %v477 = vld [vmem:[%s291 + $0x14] sm:$0xf]
      %v478 = vld [vmem:[%s291 + $0x18] sm:$0xf]
      %v479 = vld [vmem:[%s291 + $0x1c] sm:$0xf]
      %v480 = vld [vmem:[%s291 + $0x20] sm:$0xf]
      %v481 = vld [vmem:[%s291 + $0x24] sm:$0xf]
      %v482 = vld [vmem:[%s291 + $0x28] sm:$0xf]
      %v483 = vld [vmem:[%s291 + $0x2c] sm:$0xf]
      %v484 = vld [vmem:[%s291 + $0x30] sm:$0xf]
      %v485 = vld [vmem:[%s291 + $0x34] sm:$0xf]
      %v486 = vld [vmem:[%s291 + $0x38] sm:$0xf]
      %v487 = vld [vmem:[%s291 + $0x3c] sm:$0xf]
      %v488 = vld [vmem:[%s291 + $0x40] sm:$0xf]
      %v489 = vld [vmem:[%s291 + $0x44] sm:$0xf]
      %v490 = vld [vmem:[%s291 + $0x48] sm:$0xf]
      %v491 = vld [vmem:[%s291 + $0x4c] sm:$0xf]
      %v492 = vld [vmem:[%s291 + $0x50] sm:$0xf]
      %v493 = vld [vmem:[%s291 + $0x54] sm:$0xf]
      %v494 = vld [vmem:[%s291 + $0x58] sm:$0xf]
      %v495 = vld [vmem:[%s291 + $0x5c] sm:$0xf]
      %v496 = vld [vmem:[%s291 + $0x60] sm:$0xf]
      %v497 = vld [vmem:[%s291 + $0x64] sm:$0xf]
      %v498 = vld [vmem:[%s291 + $0x68] sm:$0xf]
      %v499 = vld [vmem:[%s291 + $0x6c] sm:$0xf]
      %v500 = vld [vmem:[%s291 + $0x70] sm:$0xf]
      %v501 = vld [vmem:[%s291 + $0x74] sm:$0xf]
      %v502 = vld [vmem:[%s291 + $0x78] sm:$0xf]
      %v503 = vld [vmem:[%s291 + $0x7c] sm:$0xf]
      %v536 = vunpack.c.l.b16 %v472
      %v537 = vunpack.c.l.b16 %v473
      %v538 = vunpack.c.l.b16 %v474
      %v539 = vunpack.c.l.b16 %v475
      %v540 = vunpack.c.l.b16 %v476
      %v541 = vunpack.c.l.b16 %v477
      %v542 = vunpack.c.l.b16 %v478
      %v543 = vunpack.c.l.b16 %v479
      %v544 = vunpack.c.l.b16 %v480
      %v545 = vunpack.c.l.b16 %v481
      %v546 = vunpack.c.l.b16 %v482
      %v547 = vunpack.c.l.b16 %v483
      %v548 = vunpack.c.l.b16 %v484
      %v549 = vunpack.c.l.b16 %v485
      %v550 = vunpack.c.l.b16 %v486
      %v551 = vunpack.c.l.b16 %v487
      %v552 = vunpack.c.l.b16 %v488
      %v553 = vunpack.c.l.b16 %v489
      %v554 = vunpack.c.l.b16 %v490
      %v555 = vunpack.c.l.b16 %v491
      %v556 = vunpack.c.l.b16 %v492
      %v557 = vunpack.c.l.b16 %v493
      %v558 = vunpack.c.l.b16 %v494
      %v559 = vunpack.c.l.b16 %v495
      %v560 = vunpack.c.l.b16 %v496
      %v561 = vunpack.c.l.b16 %v497
      %v562 = vunpack.c.l.b16 %v498
      %v563 = vunpack.c.l.b16 %v499
      %v564 = vunpack.c.l.b16 %v500
      %v565 = vunpack.c.l.b16 %v501
      %v566 = vunpack.c.l.b16 %v502
      %v567 = vunpack.c.l.b16 %v503
      %v568 = vpack.c.b16 %v537, %v536
      %v569 = vpack.c.b16 %v539, %v538
      %v570 = vpack.c.b16 %v541, %v540
      %v571 = vpack.c.b16 %v543, %v542
      %v572 = vpack.c.b16 %v545, %v544
      %v573 = vpack.c.b16 %v547, %v546
      %v574 = vpack.c.b16 %v549, %v548
      %v575 = vpack.c.b16 %v551, %v550
      %v576 = vpack.c.b16 %v553, %v552
      %v577 = vpack.c.b16 %v555, %v554
      %v578 = vpack.c.b16 %v557, %v556
      %v579 = vpack.c.b16 %v559, %v558
      %v580 = vpack.c.b16 %v561, %v560
      %v581 = vpack.c.b16 %v563, %v562
      %v582 = vpack.c.b16 %v565, %v564
      %v583 = vpack.c.b16 %v567, %v566
      %600 = vmatpush.bf16.msra.mxu0 %v575
      %601 = vmatpush.bf16.msra.mxu0 %v574
      %602 = vmatpush.bf16.msra.mxu0 %v573
      %603 = vmatpush.bf16.msra.mxu0 %v572
      %604 = vmatpush.bf16.msra.mxu0 %v571
      %605 = vmatpush.bf16.msra.mxu0 %v570
      %606 = vmatpush.bf16.msra.mxu0 %v569
      %607 = vmatpush.bf16.msra.mxu0 %v568
      %608 = vmatmul.bf16.gmra.mxu0 %v440
      %v609 = vpop.f32.mrf.mxu0
      %v610 = vadd.f32 0.0, %v609
      %v611 = vpop.f32.mrf.mxu0
      %v612 = vadd.f32 0.0, %v611
      %613 = vmatmul.bf16.gmra.mxu0 %v442
      %v614 = vpop.f32.mrf.mxu0
      %v615 = vadd.f32 0.0, %v614
      %v616 = vpop.f32.mrf.mxu0
      %v617 = vadd.f32 0.0, %v616
      %618 = vmatmul.bf16.gmra.mxu0 %v444
      %v619 = vpop.f32.mrf.mxu0
      %v620 = vadd.f32 0.0, %v619
      %v621 = vpop.f32.mrf.mxu0
      %v622 = vadd.f32 0.0, %v621
      %623 = vmatmul.bf16.gmra.mxu0 %v446
      %v624 = vpop.f32.mrf.mxu0
      %v625 = vadd.f32 0.0, %v624
      %v626 = vpop.f32.mrf.mxu0
      %v627 = vadd.f32 0.0, %v626
      %628 = vmatmul.bf16.gmra.mxu0 %v448
      %v629 = vpop.f32.mrf.mxu0
      %v630 = vadd.f32 0.0, %v629
      %v631 = vpop.f32.mrf.mxu0
      %v632 = vadd.f32 0.0, %v631
      %633 = vmatmul.bf16.gmra.mxu0 %v450
      %v634 = vpop.f32.mrf.mxu0
      %v635 = vadd.f32 0.0, %v634
      %v636 = vpop.f32.mrf.mxu0
      %v637 = vadd.f32 0.0, %v636
      %638 = vmatmul.bf16.gmra.mxu0 %v452
      %v639 = vpop.f32.mrf.mxu0
      %v640 = vadd.f32 0.0, %v639
      %v641 = vpop.f32.mrf.mxu0
      %v642 = vadd.f32 0.0, %v641
      %643 = vmatmul.bf16.gmra.mxu0 %v454
      %v644 = vpop.f32.mrf.mxu0
      %v645 = vadd.f32 0.0, %v644
      %v646 = vpop.f32.mrf.mxu0
      %v647 = vadd.f32 0.0, %v646
      %648 = vmatmul.bf16.gmra.mxu0 %v456
      %v649 = vpop.f32.mrf.mxu0
      %v650 = vadd.f32 0.0, %v649
      %v651 = vpop.f32.mrf.mxu0
      %v652 = vadd.f32 0.0, %v651
      %653 = vmatmul.bf16.gmra.mxu0 %v458
      %v654 = vpop.f32.mrf.mxu0
      %v655 = vadd.f32 0.0, %v654
      %v656 = vpop.f32.mrf.mxu0
      %v657 = vadd.f32 0.0, %v656
      %658 = vmatmul.bf16.gmra.mxu0 %v460
      %v659 = vpop.f32.mrf.mxu0
      %v660 = vadd.f32 0.0, %v659
      %v661 = vpop.f32.mrf.mxu0
      %v662 = vadd.f32 0.0, %v661
      %663 = vmatmul.bf16.gmra.mxu0 %v462
      %v664 = vpop.f32.mrf.mxu0
      %v665 = vadd.f32 0.0, %v664
      %v666 = vpop.f32.mrf.mxu0
      %v667 = vadd.f32 0.0, %v666
      %668 = vmatmul.bf16.gmra.mxu0 %v464
      %v669 = vpop.f32.mrf.mxu0
      %v670 = vadd.f32 0.0, %v669
      %v671 = vpop.f32.mrf.mxu0
      %v672 = vadd.f32 0.0, %v671
      %673 = vmatmul.bf16.gmra.mxu0 %v466
      %v674 = vpop.f32.mrf.mxu0
      %v675 = vadd.f32 0.0, %v674
      %v676 = vpop.f32.mrf.mxu0
      %v677 = vadd.f32 0.0, %v676
      %678 = vmatmul.bf16.gmra.mxu0 %v468
      %v679 = vpop.f32.mrf.mxu0
      %v680 = vadd.f32 0.0, %v679
      %v681 = vpop.f32.mrf.mxu0
      %v682 = vadd.f32 0.0, %v681
      %683 = vmatmul.bf16.gmra.mxu0 %v470
      %v684 = vpop.f32.mrf.mxu0
      %v685 = vadd.f32 0.0, %v684
      %v686 = vpop.f32.mrf.mxu0
      %v687 = vadd.f32 0.0, %v686
      %688 = vdwg.mxu0
      %689 = vmatpush.bf16.msra.mxu0 %v583
      %690 = vmatpush.bf16.msra.mxu0 %v582
      %691 = vmatpush.bf16.msra.mxu0 %v581
      %692 = vmatpush.bf16.msra.mxu0 %v580
      %693 = vmatpush.bf16.msra.mxu0 %v579
      %694 = vmatpush.bf16.msra.mxu0 %v578
      %695 = vmatpush.bf16.msra.mxu0 %v577
      %696 = vmatpush.bf16.msra.mxu0 %v576
      %697 = vmatmul.bf16.gmra.mxu0 %v441
      %v698 = vpop.f32.mrf.mxu0
      %v699 = vadd.f32 %v610, %v698
      %v700 = vpop.f32.mrf.mxu0
      %v701 = vadd.f32 %v612, %v700
      %702 = vmatmul.bf16.gmra.mxu0 %v443
      %v703 = vpop.f32.mrf.mxu0
      %v704 = vadd.f32 %v615, %v703
      %v705 = vpop.f32.mrf.mxu0
      %v706 = vadd.f32 %v617, %v705
      %707 = vmatmul.bf16.gmra.mxu0 %v445
      %v708 = vpop.f32.mrf.mxu0
      %v709 = vadd.f32 %v620, %v708
      %v710 = vpop.f32.mrf.mxu0
      %v711 = vadd.f32 %v622, %v710
      %712 = vmatmul.bf16.gmra.mxu0 %v447
      %v713 = vpop.f32.mrf.mxu0
      %v714 = vadd.f32 %v625, %v713
      %v715 = vpop.f32.mrf.mxu0
      %v716 = vadd.f32 %v627, %v715
      %717 = vmatmul.bf16.gmra.mxu0 %v449
      %v718 = vpop.f32.mrf.mxu0
      %v719 = vadd.f32 %v630, %v718
      %v720 = vpop.f32.mrf.mxu0
      %v721 = vadd.f32 %v632, %v720
      %722 = vmatmul.bf16.gmra.mxu0 %v451
      %v723 = vpop.f32.mrf.mxu0
      %v724 = vadd.f32 %v635, %v723
      %v725 = vpop.f32.mrf.mxu0
      %v726 = vadd.f32 %v637, %v725
      %727 = vmatmul.bf16.gmra.mxu0 %v453
      %v728 = vpop.f32.mrf.mxu0
      %v729 = vadd.f32 %v640, %v728
      %v730 = vpop.f32.mrf.mxu0
      %v731 = vadd.f32 %v642, %v730
      %732 = vmatmul.bf16.gmra.mxu0 %v455
      %v733 = vpop.f32.mrf.mxu0
      %v734 = vadd.f32 %v645, %v733
      %v735 = vpop.f32.mrf.mxu0
      %v736 = vadd.f32 %v647, %v735
      %737 = vmatmul.bf16.gmra.mxu0 %v457
      %v738 = vpop.f32.mrf.mxu0
      %v739 = vadd.f32 %v650, %v738
      %v740 = vpop.f32.mrf.mxu0
      %v741 = vadd.f32 %v652, %v740
      %742 = vmatmul.bf16.gmra.mxu0 %v459
      %v743 = vpop.f32.mrf.mxu0
      %v744 = vadd.f32 %v655, %v743
      %v745 = vpop.f32.mrf.mxu0
      %v746 = vadd.f32 %v657, %v745
      %747 = vmatmul.bf16.gmra.mxu0 %v461
      %v748 = vpop.f32.mrf.mxu0
      %v749 = vadd.f32 %v660, %v748
      %v750 = vpop.f32.mrf.mxu0
      %v751 = vadd.f32 %v662, %v750
      %752 = vmatmul.bf16.gmra.mxu0 %v463
      %v753 = vpop.f32.mrf.mxu0
      %v754 = vadd.f32 %v665, %v753
      %v755 = vpop.f32.mrf.mxu0
      %v756 = vadd.f32 %v667, %v755
      %757 = vmatmul.bf16.gmra.mxu0 %v465
      %v758 = vpop.f32.mrf.mxu0
      %v759 = vadd.f32 %v670, %v758
      %v760 = vpop.f32.mrf.mxu0
      %v761 = vadd.f32 %v672, %v760
      %762 = vmatmul.bf16.gmra.mxu0 %v467
      %v763 = vpop.f32.mrf.mxu0
      %v764 = vadd.f32 %v675, %v763
      %v765 = vpop.f32.mrf.mxu0
      %v766 = vadd.f32 %v677, %v765
      %767 = vmatmul.bf16.gmra.mxu0 %v469
      %v768 = vpop.f32.mrf.mxu0
      %v769 = vadd.f32 %v680, %v768
      %v770 = vpop.f32.mrf.mxu0
      %v771 = vadd.f32 %v682, %v770
      %772 = vmatmul.bf16.gmra.mxu0 %v471
      %v773 = vpop.f32.mrf.mxu0
      %v774 = vadd.f32 %v685, %v773
      %v775 = vpop.f32.mrf.mxu0
      %v776 = vadd.f32 %v687, %v775
      %777 = vdwg.mxu0
      %v778 = vadd.f32 %v408, %v699
      %v779 = vadd.f32 %v409, %v701
      %v780 = vadd.f32 %v410, %v704
      %v781 = vadd.f32 %v411, %v706
      %v782 = vadd.f32 %v412, %v709
      %v783 = vadd.f32 %v413, %v711
      %v784 = vadd.f32 %v414, %v714
      %v785 = vadd.f32 %v415, %v716
      %v786 = vadd.f32 %v416, %v719
      %v787 = vadd.f32 %v417, %v721
      %v788 = vadd.f32 %v418, %v724
      %v789 = vadd.f32 %v419, %v726
      %v790 = vadd.f32 %v420, %v729
      %v791 = vadd.f32 %v421, %v731
      %v792 = vadd.f32 %v422, %v734
      %v793 = vadd.f32 %v423, %v736
      %v794 = vadd.f32 %v424, %v739
      %v795 = vadd.f32 %v425, %v741
      %v796 = vadd.f32 %v426, %v744
      %v797 = vadd.f32 %v427, %v746
      %v798 = vadd.f32 %v428, %v749
      %v799 = vadd.f32 %v429, %v751
      %v800 = vadd.f32 %v430, %v754
      %v801 = vadd.f32 %v431, %v756
      %v802 = vadd.f32 %v432, %v759
      %v803 = vadd.f32 %v433, %v761
      %v804 = vadd.f32 %v434, %v764
      %v805 = vadd.f32 %v435, %v766
      %v806 = vadd.f32 %v436, %v769
      %v807 = vadd.f32 %v437, %v771
      %v808 = vadd.f32 %v438, %v774
      %v809 = vadd.f32 %v439, %v776
      %810 = vst [vmem:[#allocation2] sm:$0xff] %v778
      %811 = vst [vmem:[#allocation2 + $0x8] sm:$0xff] %v779
      %812 = vst [vmem:[#allocation2 + $0x10] sm:$0xff] %v780
      %813 = vst [vmem:[#allocation2 + $0x18] sm:$0xff] %v781
      %814 = vst [vmem:[#allocation2 + $0x20] sm:$0xff] %v782
      %815 = vst [vmem:[#allocation2 + $0x28] sm:$0xff] %v783
      %816 = vst [vmem:[#allocation2 + $0x30] sm:$0xff] %v784
      %817 = vst [vmem:[#allocation2 + $0x38] sm:$0xff] %v785
      %818 = vst [vmem:[#allocation2 + $0x40] sm:$0xff] %v786
      %819 = vst [vmem:[#allocation2 + $0x48] sm:$0xff] %v787
      %820 = vst [vmem:[#allocation2 + $0x50] sm:$0xff] %v788
      %821 = vst [vmem:[#allocation2 + $0x58] sm:$0xff] %v789
      %822 = vst [vmem:[#allocation2 + $0x60] sm:$0xff] %v790
      %823 = vst [vmem:[#allocation2 + $0x68] sm:$0xff] %v791
      %824 = vst [vmem:[#allocation2 + $0x70] sm:$0xff] %v792
      %825 = vst [vmem:[#allocation2 + $0x78] sm:$0xff] %v793
      %826 = vst [vmem:[#allocation2 + $0x80] sm:$0xff] %v794
      %827 = vst [vmem:[#allocation2 + $0x88] sm:$0xff] %v795
      %828 = vst [vmem:[#allocation2 + $0x90] sm:$0xff] %v796
      %829 = vst [vmem:[#allocation2 + $0x98] sm:$0xff] %v797
      %830 = vst [vmem:[#allocation2 + $0xa0] sm:$0xff] %v798
      %831 = vst [vmem:[#allocation2 + $0xa8] sm:$0xff] %v799
      %832 = vst [vmem:[#allocation2 + $0xb0] sm:$0xff] %v800
      %833 = vst [vmem:[#allocation2 + $0xb8] sm:$0xff] %v801
      %834 = vst [vmem:[#allocation2 + $0xc0] sm:$0xff] %v802
      %835 = vst [vmem:[#allocation2 + $0xc8] sm:$0xff] %v803
      %836 = vst [vmem:[#allocation2 + $0xd0] sm:$0xff] %v804
      %837 = vst [vmem:[#allocation2 + $0xd8] sm:$0xff] %v805
      %838 = vst [vmem:[#allocation2 + $0xe0] sm:$0xff] %v806
      %839 = vst [vmem:[#allocation2 + $0xe8] sm:$0xff] %v807
      %840 = vst [vmem:[#allocation2 + $0xf0] sm:$0xff] %v808
      %841 = vst [vmem:[#allocation2 + $0xf8] sm:$0xff] %v809
      // Predicated region
      $region41: #{timm_model_forward.21} parent=35 // pred_check
        %p842 = pneg %p308
      $region42: #{timm_model_forward.21} parent=35 // pred_check_branch
        %844 = sbr.rel (%p842) target = $region44
      $region43: #{timm_model_forward.21} parent=35 // pred_region
        %v845 = vld [vmem:[#allocation2] sm:$0xff]
        %v846 = vld [vmem:[#allocation2 + $0x8] sm:$0xff]
        %v847 = vld [vmem:[#allocation2 + $0x10] sm:$0xff]
        %v848 = vld [vmem:[#allocation2 + $0x18] sm:$0xff]
        %v849 = vld [vmem:[#allocation2 + $0x20] sm:$0xff]
        %v850 = vld [vmem:[#allocation2 + $0x28] sm:$0xff]
        %v851 = vld [vmem:[#allocation2 + $0x30] sm:$0xff]
        %v852 = vld [vmem:[#allocation2 + $0x38] sm:$0xff]
        %v853 = vld [vmem:[#allocation2 + $0x40] sm:$0xff]
        %v854 = vld [vmem:[#allocation2 + $0x48] sm:$0xff]
        %v855 = vld [vmem:[#allocation2 + $0x50] sm:$0xff]
        %v856 = vld [vmem:[#allocation2 + $0x58] sm:$0xff]
        %v857 = vld [vmem:[#allocation2 + $0x60] sm:$0xff]
        %v858 = vld [vmem:[#allocation2 + $0x68] sm:$0xff]
        %v859 = vld [vmem:[#allocation2 + $0x70] sm:$0xff]
        %v860 = vld [vmem:[#allocation2 + $0x78] sm:$0xff]
        %v861 = vld [vmem:[#allocation2 + $0x80] sm:$0xff]
        %v862 = vld [vmem:[#allocation2 + $0x88] sm:$0xff]
        %v863 = vld [vmem:[#allocation2 + $0x90] sm:$0xff]
        %v864 = vld [vmem:[#allocation2 + $0x98] sm:$0xff]
        %v865 = vld [vmem:[#allocation2 + $0xa0] sm:$0xff]
        %v866 = vld [vmem:[#allocation2 + $0xa8] sm:$0xff]
        %v867 = vld [vmem:[#allocation2 + $0xb0] sm:$0xff]
        %v868 = vld [vmem:[#allocation2 + $0xb8] sm:$0xff]
        %v869 = vld [vmem:[#allocation2 + $0xc0] sm:$0xff]
        %v870 = vld [vmem:[#allocation2 + $0xc8] sm:$0xff]
        %v871 = vld [vmem:[#allocation2 + $0xd0] sm:$0xff]
        %v872 = vld [vmem:[#allocation2 + $0xd8] sm:$0xff]
        %v873 = vld [vmem:[#allocation2 + $0xe0] sm:$0xff]
        %v874 = vld [vmem:[#allocation2 + $0xe8] sm:$0xff]
        %v875 = vld [vmem:[#allocation2 + $0xf0] sm:$0xff]
        %v876 = vld [vmem:[#allocation2 + $0xf8] sm:$0xff]
        %v877 = vld [vmem:[%s295] sm:$0x1]
        %v879 = vperm.slane %v877, 0
        %v881 = vmul.f32 %v845, %v879
        %v882 = vmul.f32 %v846, %v879
        %v883 = vmul.f32 %v847, %v879
        %v884 = vmul.f32 %v848, %v879
        %v885 = vmul.f32 %v849, %v879
        %v886 = vmul.f32 %v850, %v879
        %v887 = vmul.f32 %v851, %v879
        %v888 = vmul.f32 %v852, %v879
        %v889 = vmul.f32 %v853, %v879
        %v890 = vmul.f32 %v854, %v879
        %v891 = vmul.f32 %v855, %v879
        %v892 = vmul.f32 %v856, %v879
        %v893 = vmul.f32 %v857, %v879
        %v894 = vmul.f32 %v858, %v879
        %v895 = vmul.f32 %v859, %v879
        %v896 = vmul.f32 %v860, %v879
        %v897 = vmul.f32 %v861, %v879
        %v898 = vmul.f32 %v862, %v879
        %v899 = vmul.f32 %v863, %v879
        %v900 = vmul.f32 %v864, %v879
        %v901 = vmul.f32 %v865, %v879
        %v902 = vmul.f32 %v866, %v879
        %v903 = vmul.f32 %v867, %v879
        %v904 = vmul.f32 %v868, %v879
        %v905 = vmul.f32 %v869, %v879
        %v906 = vmul.f32 %v870, %v879
        %v907 = vmul.f32 %v871, %v879
        %v908 = vmul.f32 %v872, %v879
        %v909 = vmul.f32 %v873, %v879
        %v910 = vmul.f32 %v874, %v879
        %v911 = vmul.f32 %v875, %v879
        %v912 = vmul.f32 %v876, %v879
        %v913 = vld [vmem:[%s298] sm:$0x1]
        %v915 = vperm.slane %v913, 0
        %v917 = vadd.f32 %v881, %v915
        %v918 = vadd.f32 %v882, %v915
        %v919 = vadd.f32 %v883, %v915
        %v920 = vadd.f32 %v884, %v915
        %v921 = vadd.f32 %v885, %v915
        %v922 = vadd.f32 %v886, %v915
        %v923 = vadd.f32 %v887, %v915
        %v924 = vadd.f32 %v888, %v915
        %v925 = vadd.f32 %v889, %v915
        %v926 = vadd.f32 %v890, %v915
        %v927 = vadd.f32 %v891, %v915
        %v928 = vadd.f32 %v892, %v915
        %v929 = vadd.f32 %v893, %v915
        %v930 = vadd.f32 %v894, %v915
        %v931 = vadd.f32 %v895, %v915
        %v932 = vadd.f32 %v896, %v915
        %v933 = vadd.f32 %v897, %v915
        %v934 = vadd.f32 %v898, %v915
        %v935 = vadd.f32 %v899, %v915
        %v936 = vadd.f32 %v900, %v915
        %v937 = vadd.f32 %v901, %v915
        %v938 = vadd.f32 %v902, %v915
        %v939 = vadd.f32 %v903, %v915
        %v940 = vadd.f32 %v904, %v915
        %v941 = vadd.f32 %v905, %v915
        %v942 = vadd.f32 %v906, %v915
        %v943 = vadd.f32 %v907, %v915
        %v944 = vadd.f32 %v908, %v915
        %v945 = vadd.f32 %v909, %v915
        %v946 = vadd.f32 %v910, %v915
        %v947 = vadd.f32 %v911, %v915
        %v948 = vadd.f32 %v912, %v915
        %v949 = vmax.f32 %v917, 0.0
        %v950 = vmax.f32 %v918, 0.0
        %v951 = vmax.f32 %v919, 0.0
        %v952 = vmax.f32 %v920, 0.0
        %v953 = vmax.f32 %v921, 0.0
        %v954 = vmax.f32 %v922, 0.0
        %v955 = vmax.f32 %v923, 0.0
        %v956 = vmax.f32 %v924, 0.0
        %v957 = vmax.f32 %v925, 0.0
        %v958 = vmax.f32 %v926, 0.0
        %v959 = vmax.f32 %v927, 0.0
        %v960 = vmax.f32 %v928, 0.0
        %v961 = vmax.f32 %v929, 0.0
        %v962 = vmax.f32 %v930, 0.0
        %v963 = vmax.f32 %v931, 0.0
        %v964 = vmax.f32 %v932, 0.0
        %v965 = vmax.f32 %v933, 0.0
        %v966 = vmax.f32 %v934, 0.0
        %v967 = vmax.f32 %v935, 0.0
        %v968 = vmax.f32 %v936, 0.0
        %v969 = vmax.f32 %v937, 0.0
        %v970 = vmax.f32 %v938, 0.0
        %v971 = vmax.f32 %v939, 0.0
        %v972 = vmax.f32 %v940, 0.0
        %v973 = vmax.f32 %v941, 0.0
        %v974 = vmax.f32 %v942, 0.0
        %v975 = vmax.f32 %v943, 0.0
        %v976 = vmax.f32 %v944, 0.0
        %v977 = vmax.f32 %v945, 0.0
        %v978 = vmax.f32 %v946, 0.0
        %v979 = vmax.f32 %v947, 0.0
        %v980 = vmax.f32 %v948, 0.0
        %981 = vst [vmem:[%s306] sm:$0xff] %v949
        %982 = vst [vmem:[%s306 + $0x8] sm:$0xff] %v950
        %983 = vst [vmem:[%s306 + $0x10] sm:$0xff] %v951
        %984 = vst [vmem:[%s306 + $0x18] sm:$0xff] %v952
        %985 = vst [vmem:[%s306 + $0x20] sm:$0xff] %v953
        %986 = vst [vmem:[%s306 + $0x28] sm:$0xff] %v954
        %987 = vst [vmem:[%s306 + $0x30] sm:$0xff] %v955
        %988 = vst [vmem:[%s306 + $0x38] sm:$0xff] %v956
        %989 = vst [vmem:[%s306 + $0x40] sm:$0xff] %v957
        %990 = vst [vmem:[%s306 + $0x48] sm:$0xff] %v958
        %991 = vst [vmem:[%s306 + $0x50] sm:$0xff] %v959
        %992 = vst [vmem:[%s306 + $0x58] sm:$0xff] %v960
        %993 = vst [vmem:[%s306 + $0x60] sm:$0xff] %v961
        %994 = vst [vmem:[%s306 + $0x68] sm:$0xff] %v962
        %995 = vst [vmem:[%s306 + $0x70] sm:$0xff] %v963
        %996 = vst [vmem:[%s306 + $0x78] sm:$0xff] %v964
        %997 = vst [vmem:[%s306 + $0x80] sm:$0xff] %v965
        %998 = vst [vmem:[%s306 + $0x88] sm:$0xff] %v966
        %999 = vst [vmem:[%s306 + $0x90] sm:$0xff] %v967
        %1000 = vst [vmem:[%s306 + $0x98] sm:$0xff] %v968
        %1001 = vst [vmem:[%s306 + $0xa0] sm:$0xff] %v969
        %1002 = vst [vmem:[%s306 + $0xa8] sm:$0xff] %v970
        %1003 = vst [vmem:[%s306 + $0xb0] sm:$0xff] %v971
        %1004 = vst [vmem:[%s306 + $0xb8] sm:$0xff] %v972
        %1005 = vst [vmem:[%s306 + $0xc0] sm:$0xff] %v973
        %1006 = vst [vmem:[%s306 + $0xc8] sm:$0xff] %v974
        %1007 = vst [vmem:[%s306 + $0xd0] sm:$0xff] %v975
        %1008 = vst [vmem:[%s306 + $0xd8] sm:$0xff] %v976
        %1009 = vst [vmem:[%s306 + $0xe0] sm:$0xff] %v977
        %1010 = vst [vmem:[%s306 + $0xe8] sm:$0xff] %v978
        %1011 = vst [vmem:[%s306 + $0xf0] sm:$0xff] %v979
        %1012 = vst [vmem:[%s306 + $0xf8] sm:$0xff] %v980
      $region44: #{timm_model_forward.21} parent=35 // pred_fallthru
        _
      %s1013 = smul.u32 32, %s20
      %p1014 = scmp.lt.s32.totalorder %s1013, 63
      %s1015 = scalar_select %p1014, %s1013, 63
      %p1016 = scmp.lt.s32.totalorder %s21, 0
      %s1017 = scalar_select %p1016, %s21, 0
      %s1018 = sadd.s32 %s1017, %s1015
      %s1019 = smul.addr %s1018, 8
      %s1020 = scalar_lea.vmem %s4, %s1019
      // Predicated region
      $region45: #{timm_model_forward.21} parent=35 // pred_check
        %p1021 = pneg %p162
      $region46: #{timm_model_forward.21} parent=35 // pred_check_branch
        %1023 = sbr.rel (%p1021) target = $region48
      $region47: #{timm_model_forward.21} parent=35 // pred_region
        %s1024 = smul.u32 32, %s20
      $region48: #{timm_model_forward.21} parent=35 // pred_fallthru
        _
    $region36: #{timm_model_forward.21} parent=5 // pred_fallthru
      _
    %p1025 = scmp.le.s32.totalorder 2, %s10
    // Predicated region
    $region49: #{timm_model_forward.21} parent=5 // pred_check
      %p1026 = pneg %p1025
    $region50: #{timm_model_forward.21} parent=5 // pred_check_branch
      %1028 = sbr.rel (%p1026) target = $region52
    $region51: #{timm_model_forward.21} parent=5 // pred_region
      %s1029 = ssub.s32 %s10, 2
      // Predicated region
      $region53: #{timm_model_forward.21} parent=51 // pred_check
        %p1030 = pneg %p168
      $region54: #{timm_model_forward.21} parent=51 // pred_check_branch
        %1032 = sbr.rel (%p1030) target = $region56
      $region55: #{timm_model_forward.21} parent=51 // pred_region
        %s1033 = smul.u32 32, %s23
        %p1034 = scmp.lt.s32.totalorder %s1033, 63
        %s1035 = scalar_select %p1034, %s1033, 63
        %p1036 = scmp.lt.s32.totalorder %s24, 0
        %s1037 = scalar_select %p1036, %s24, 0
        %s1038 = sadd.s32 %s1037, %s1035
        %s1039 = smul.addr %s1038, 8
        %s1040 = scalar_lea.vmem %s4, %s1039
      $region56: #{timm_model_forward.21} parent=51 // pred_fallthru
        _
    $region52: #{timm_model_forward.21} parent=5 // pred_fallthru
      _
  $region6: #{timm_model_forward.21} parent=0 // loop_footer
    %s14 = sadd.s32 1, %s10
  $region7: #{timm_model_forward.21} parent=0 // loop_footer_branch
    %9 = sbr.rel target = $region3
  $region8: #{timm_model_forward.21} parent=0 // loop_exit
    _

// kernel: timm_model_forward.22
$region0: #{timm_model_forward.22}
  #allocation0 [shape = 'u32[]', space=smem, size = 0x4, offset = 0x4, fixed_abs, tag = 'smem constant byte address 0x4 - core index']
  #allocation1 [shape = 'u32[72,128]{1,0:T(1,128)}', space=vmem, size = 0x9000, scoped, tag = 'internal scratch']
  #allocation2 [shape = 'f32[128,128]{1,0:T(8,128)}', space=vmem, size = 0x10000, scoped, tag = 'scratch operand']
  %s0 = inlined_call_operand.vmem [shape: f32[128,128], index: 0, kind: input, shape index: {}]
  %s1 = inlined_call_operand.vmem [shape: bf16[128,128], index: 1, kind: input, shape index: {}]
  %s2 = inlined_call_operand.vmem [shape: f32[1,128], index: 2, kind: input, shape index: {}]
  %s3 = inlined_call_operand.vmem [shape: f32[1,128], index: 3, kind: input, shape index: {}]
  %s4 = inlined_call_operand.vmem [shape: f32[1,128], index: 4, kind: input, shape index: {}]
  %s5 = inlined_call_operand.vmem [shape: f32[1,128], index: 5, kind: input, shape index: {}]
  %s6 = inlined_call_operand.vmem [shape: f32[128,128], index: 6, kind: output, shape index: {}]
  %s7 = sld [smem:[#allocation0]]
  $region42: #{timm_model_forward.22} parent=0
    _
  %s9 = ssub.s32 1, %s7
  %s10 = scalar_select 0, %s9, %s7
  // Predicated region
  $region2: #{timm_model_forward.22} parent=0 // pred_check
    _
  $region3: #{timm_model_forward.22} parent=0 // pred_check_branch
    %12 = sbr.rel (0) target = $region5
  $region4: #{timm_model_forward.22} parent=0 // pred_region
    _
  $region5: #{timm_model_forward.22} parent=0 // pred_fallthru
    _
  // Predicated region
  $region6: #{timm_model_forward.22} parent=0 // pred_check
    _
  $region7: #{timm_model_forward.22} parent=0 // pred_check_branch
    %14 = sbr.rel (0) target = $region9
  $region8: #{timm_model_forward.22} parent=0 // pred_region
    _
  $region9: #{timm_model_forward.22} parent=0 // pred_fallthru
    _
  // Predicated region
  $region10: #{timm_model_forward.22} parent=0 // pred_check
    _
  $region11: #{timm_model_forward.22} parent=0 // pred_check_branch
    %16 = sbr.rel (0) target = $region13
  $region12: #{timm_model_forward.22} parent=0 // pred_region
    _
  $region13: #{timm_model_forward.22} parent=0 // pred_fallthru
    _
  // Predicated region
  $region14: #{timm_model_forward.22} parent=0 // pred_check
    _
  $region15: #{timm_model_forward.22} parent=0 // pred_check_branch
    %18 = sbr.rel (0) target = $region17
  $region16: #{timm_model_forward.22} parent=0 // pred_region
    _
  $region17: #{timm_model_forward.22} parent=0 // pred_fallthru
    _
  // Predicated region
  $region18: #{timm_model_forward.22} parent=0 // pred_check
    _
  $region19: #{timm_model_forward.22} parent=0 // pred_check_branch
    %20 = sbr.rel (0) target = $region21
  $region20: #{timm_model_forward.22} parent=0 // pred_region
    _
  $region21: #{timm_model_forward.22} parent=0 // pred_fallthru
    _
  // Predicated region
  $region22: #{timm_model_forward.22} parent=0 // pred_check
    _
  $region23: #{timm_model_forward.22} parent=0 // pred_check_branch
    %22 = sbr.rel (0) target = $region25
  $region24: #{timm_model_forward.22} parent=0 // pred_region
    _
  $region25: #{timm_model_forward.22} parent=0 // pred_fallthru
    _
  %p23 = scmp.eq.s32.totalorder 0, 0
  // Predicated region
  $region26: #{timm_model_forward.22} parent=0 // pred_check
    %p24 = pneg %p23
  $region27: #{timm_model_forward.22} parent=0 // pred_check_branch
    %26 = sbr.rel (%p24) target = $region29
  $region28: #{timm_model_forward.22} parent=0 // pred_region
    %27 = vst [vmem:[#allocation2] sm:$0xff] 0.0
    %28 = vst [vmem:[#allocation2 + $0x8] sm:$0xff] 0.0
    %29 = vst [vmem:[#allocation2 + $0x10] sm:$0xff] 0.0
    %30 = vst [vmem:[#allocation2 + $0x18] sm:$0xff] 0.0
    %31 = vst [vmem:[#allocation2 + $0x20] sm:$0xff] 0.0
    %32 = vst [vmem:[#allocation2 + $0x28] sm:$0xff] 0.0
    %33 = vst [vmem:[#allocation2 + $0x30] sm:$0xff] 0.0
    %34 = vst [vmem:[#allocation2 + $0x38] sm:$0xff] 0.0
    %35 = vst [vmem:[#allocation2 + $0x40] sm:$0xff] 0.0
    %36 = vst [vmem:[#allocation2 + $0x48] sm:$0xff] 0.0
    %37 = vst [vmem:[#allocation2 + $0x50] sm:$0xff] 0.0
    %38 = vst [vmem:[#allocation2 + $0x58] sm:$0xff] 0.0
    %39 = vst [vmem:[#allocation2 + $0x60] sm:$0xff] 0.0
    %40 = vst [vmem:[#allocation2 + $0x68] sm:$0xff] 0.0
    %41 = vst [vmem:[#allocation2 + $0x70] sm:$0xff] 0.0
    %42 = vst [vmem:[#allocation2 + $0x78] sm:$0xff] 0.0
  $region29: #{timm_model_forward.22} parent=0 // pred_fallthru
    _
  %v43 = vld [vmem:[%s0] sm:$0xff]
  %v44 = vld [vmem:[%s0 + $0x8] sm:$0xff]
  %v45 = vld [vmem:[%s0 + $0x10] sm:$0xff]
  %v46 = vld [vmem:[%s0 + $0x18] sm:$0xff]
  %v47 = vld [vmem:[%s0 + $0x20] sm:$0xff]
  %v48 = vld [vmem:[%s0 + $0x28] sm:$0xff]
  %v49 = vld [vmem:[%s0 + $0x30] sm:$0xff]
  %v50 = vld [vmem:[%s0 + $0x38] sm:$0xff]
  %v51 = vld [vmem:[%s0 + $0x40] sm:$0xff]
  %v52 = vld [vmem:[%s0 + $0x48] sm:$0xff]
  %v53 = vld [vmem:[%s0 + $0x50] sm:$0xff]
  %v54 = vld [vmem:[%s0 + $0x58] sm:$0xff]
  %v55 = vld [vmem:[%s0 + $0x60] sm:$0xff]
  %v56 = vld [vmem:[%s0 + $0x68] sm:$0xff]
  %v57 = vld [vmem:[%s0 + $0x70] sm:$0xff]
  %v58 = vld [vmem:[%s0 + $0x78] sm:$0xff]
  %v59 = vld [vmem:[%s2] sm:$0x1]
  %v61 = vperm.slane %v59, 0
  %v63 = vmul.f32 %v43, %v61
  %v64 = vmul.f32 %v44, %v61
  %v65 = vmul.f32 %v45, %v61
  %v66 = vmul.f32 %v46, %v61
  %v67 = vmul.f32 %v47, %v61
  %v68 = vmul.f32 %v48, %v61
  %v69 = vmul.f32 %v49, %v61
  %v70 = vmul.f32 %v50, %v61
  %v71 = vmul.f32 %v51, %v61
  %v72 = vmul.f32 %v52, %v61
  %v73 = vmul.f32 %v53, %v61
  %v74 = vmul.f32 %v54, %v61
  %v75 = vmul.f32 %v55, %v61
  %v76 = vmul.f32 %v56, %v61
  %v77 = vmul.f32 %v57, %v61
  %v78 = vmul.f32 %v58, %v61
  %v79 = vld [vmem:[%s3] sm:$0x1]
  %v81 = vperm.slane %v79, 0
  %v83 = vadd.f32 %v63, %v81
  %v84 = vadd.f32 %v64, %v81
  %v85 = vadd.f32 %v65, %v81
  %v86 = vadd.f32 %v66, %v81
  %v87 = vadd.f32 %v67, %v81
  %v88 = vadd.f32 %v68, %v81
  %v89 = vadd.f32 %v69, %v81
  %v90 = vadd.f32 %v70, %v81
  %v91 = vadd.f32 %v71, %v81
  %v92 = vadd.f32 %v72, %v81
  %v93 = vadd.f32 %v73, %v81
  %v94 = vadd.f32 %v74, %v81
  %v95 = vadd.f32 %v75, %v81
  %v96 = vadd.f32 %v76, %v81
  %v97 = vadd.f32 %v77, %v81
  %v98 = vadd.f32 %v78, %v81
  %v99 = vmax.f32 %v83, 0.0
  %v100 = vmax.f32 %v84, 0.0
  %v101 = vmax.f32 %v85, 0.0
  %v102 = vmax.f32 %v86, 0.0
  %v103 = vmax.f32 %v87, 0.0
  %v104 = vmax.f32 %v88, 0.0
  %v105 = vmax.f32 %v89, 0.0
  %v106 = vmax.f32 %v90, 0.0
  %v107 = vmax.f32 %v91, 0.0
  %v108 = vmax.f32 %v92, 0.0
  %v109 = vmax.f32 %v93, 0.0
  %v110 = vmax.f32 %v94, 0.0
  %v111 = vmax.f32 %v95, 0.0
  %v112 = vmax.f32 %v96, 0.0
  %v113 = vmax.f32 %v97, 0.0
  %v114 = vmax.f32 %v98, 0.0
  %v115 = vld [vmem:[#allocation2] sm:$0xff]
  %v116 = vld [vmem:[#allocation2 + $0x8] sm:$0xff]
  %v117 = vld [vmem:[#allocation2 + $0x10] sm:$0xff]
  %v118 = vld [vmem:[#allocation2 + $0x18] sm:$0xff]
  %v119 = vld [vmem:[#allocation2 + $0x20] sm:$0xff]
  %v120 = vld [vmem:[#allocation2 + $0x28] sm:$0xff]
  %v121 = vld [vmem:[#allocation2 + $0x30] sm:$0xff]
  %v122 = vld [vmem:[#allocation2 + $0x38] sm:$0xff]
  %v123 = vld [vmem:[#allocation2 + $0x40] sm:$0xff]
  %v124 = vld [vmem:[#allocation2 + $0x48] sm:$0xff]
  %v125 = vld [vmem:[#allocation2 + $0x50] sm:$0xff]
  %v126 = vld [vmem:[#allocation2 + $0x58] sm:$0xff]
  %v127 = vld [vmem:[#allocation2 + $0x60] sm:$0xff]
  %v128 = vld [vmem:[#allocation2 + $0x68] sm:$0xff]
  %v129 = vld [vmem:[#allocation2 + $0x70] sm:$0xff]
  %v130 = vld [vmem:[#allocation2 + $0x78] sm:$0xff]
  %v131 = vpack.c.bf16 %v100, %v99
  %v132 = vpack.c.bf16 %v102, %v101
  %v133 = vpack.c.bf16 %v104, %v103
  %v134 = vpack.c.bf16 %v106, %v105
  %v135 = vpack.c.bf16 %v108, %v107
  %v136 = vpack.c.bf16 %v110, %v109
  %v137 = vpack.c.bf16 %v112, %v111
  %v138 = vpack.c.bf16 %v114, %v113
  %v139 = vld [vmem:[%s1] sm:$0xf]
  %v140 = vld [vmem:[%s1 + $0x4] sm:$0xf]
  %v141 = vld [vmem:[%s1 + $0x8] sm:$0xf]
  %v142 = vld [vmem:[%s1 + $0xc] sm:$0xf]
  %v143 = vld [vmem:[%s1 + $0x10] sm:$0xf]
  %v144 = vld [vmem:[%s1 + $0x14] sm:$0xf]
  %v145 = vld [vmem:[%s1 + $0x18] sm:$0xf]
  %v146 = vld [vmem:[%s1 + $0x1c] sm:$0xf]
  %v147 = vld [vmem:[%s1 + $0x20] sm:$0xf]
  %v148 = vld [vmem:[%s1 + $0x24] sm:$0xf]
  %v149 = vld [vmem:[%s1 + $0x28] sm:$0xf]
  %v150 = vld [vmem:[%s1 + $0x2c] sm:$0xf]
  %v151 = vld [vmem:[%s1 + $0x30] sm:$0xf]
  %v152 = vld [vmem:[%s1 + $0x34] sm:$0xf]
  %v153 = vld [vmem:[%s1 + $0x38] sm:$0xf]
  %v154 = vld [vmem:[%s1 + $0x3c] sm:$0xf]
  %v171 = vunpack.c.l.b16 %v139
  %v172 = vunpack.c.l.b16 %v140
  %v173 = vunpack.c.l.b16 %v141
  %v174 = vunpack.c.l.b16 %v142
  %v175 = vunpack.c.l.b16 %v143
  %v176 = vunpack.c.l.b16 %v144
  %v177 = vunpack.c.l.b16 %v145
  %v178 = vunpack.c.l.b16 %v146
  %v179 = vunpack.c.l.b16 %v147
  %v180 = vunpack.c.l.b16 %v148
  %v181 = vunpack.c.l.b16 %v149
  %v182 = vunpack.c.l.b16 %v150
  %v183 = vunpack.c.l.b16 %v151
  %v184 = vunpack.c.l.b16 %v152
  %v185 = vunpack.c.l.b16 %v153
  %v186 = vunpack.c.l.b16 %v154
  %v187 = vpack.c.b16 %v172, %v171
  %v188 = vpack.c.b16 %v174, %v173
  %v189 = vpack.c.b16 %v176, %v175
  %v190 = vpack.c.b16 %v178, %v177
  %v191 = vpack.c.b16 %v180, %v179
  %v192 = vpack.c.b16 %v182, %v181
  %v193 = vpack.c.b16 %v184, %v183
  %v194 = vpack.c.b16 %v186, %v185
  %203 = vmatpush.bf16.msra.mxu0 %v194
  %204 = vmatpush.bf16.msra.mxu0 %v193
  %205 = vmatpush.bf16.msra.mxu0 %v192
  %206 = vmatpush.bf16.msra.mxu0 %v191
  %207 = vmatpush.bf16.msra.mxu0 %v190
  %208 = vmatpush.bf16.msra.mxu0 %v189
  %209 = vmatpush.bf16.msra.mxu0 %v188
  %210 = vmatpush.bf16.msra.mxu0 %v187
  %211 = vmatmul.bf16.gmra.mxu0 %v131
  %v212 = vpop.f32.mrf.mxu0
  %v213 = vadd.f32 0.0, %v212
  %v214 = vpop.f32.mrf.mxu0
  %v215 = vadd.f32 0.0, %v214
  %216 = vmatmul.bf16.gmra.mxu0 %v132
  %v217 = vpop.f32.mrf.mxu0
  %v218 = vadd.f32 0.0, %v217
  %v219 = vpop.f32.mrf.mxu0
  %v220 = vadd.f32 0.0, %v219
  %221 = vmatmul.bf16.gmra.mxu0 %v133
  %v222 = vpop.f32.mrf.mxu0
  %v223 = vadd.f32 0.0, %v222
  %v224 = vpop.f32.mrf.mxu0
  %v225 = vadd.f32 0.0, %v224
  %226 = vmatmul.bf16.gmra.mxu0 %v134
  %v227 = vpop.f32.mrf.mxu0
  %v228 = vadd.f32 0.0, %v227
  %v229 = vpop.f32.mrf.mxu0
  %v230 = vadd.f32 0.0, %v229
  %231 = vmatmul.bf16.gmra.mxu0 %v135
  %v232 = vpop.f32.mrf.mxu0
  %v233 = vadd.f32 0.0, %v232
  %v234 = vpop.f32.mrf.mxu0
  %v235 = vadd.f32 0.0, %v234
  %236 = vmatmul.bf16.gmra.mxu0 %v136
  %v237 = vpop.f32.mrf.mxu0
  %v238 = vadd.f32 0.0, %v237
  %v239 = vpop.f32.mrf.mxu0
  %v240 = vadd.f32 0.0, %v239
  %241 = vmatmul.bf16.gmra.mxu0 %v137
  %v242 = vpop.f32.mrf.mxu0
  %v243 = vadd.f32 0.0, %v242
  %v244 = vpop.f32.mrf.mxu0
  %v245 = vadd.f32 0.0, %v244
  %246 = vmatmul.bf16.gmra.mxu0 %v138
  %v247 = vpop.f32.mrf.mxu0
  %v248 = vadd.f32 0.0, %v247
  %v249 = vpop.f32.mrf.mxu0
  %v250 = vadd.f32 0.0, %v249
  %251 = vdwg.mxu0
  %v252 = vadd.f32 %v115, %v213
  %v253 = vadd.f32 %v116, %v215
  %v254 = vadd.f32 %v117, %v218
  %v255 = vadd.f32 %v118, %v220
  %v256 = vadd.f32 %v119, %v223
  %v257 = vadd.f32 %v120, %v225
  %v258 = vadd.f32 %v121, %v228
  %v259 = vadd.f32 %v122, %v230
  %v260 = vadd.f32 %v123, %v233
  %v261 = vadd.f32 %v124, %v235
  %v262 = vadd.f32 %v125, %v238
  %v263 = vadd.f32 %v126, %v240
  %v264 = vadd.f32 %v127, %v243
  %v265 = vadd.f32 %v128, %v245
  %v266 = vadd.f32 %v129, %v248
  %v267 = vadd.f32 %v130, %v250
  %268 = vst [vmem:[#allocation2] sm:$0xff] %v252
  %269 = vst [vmem:[#allocation2 + $0x8] sm:$0xff] %v253
  %270 = vst [vmem:[#allocation2 + $0x10] sm:$0xff] %v254
  %271 = vst [vmem:[#allocation2 + $0x18] sm:$0xff] %v255
  %272 = vst [vmem:[#allocation2 + $0x20] sm:$0xff] %v256
  %273 = vst [vmem:[#allocation2 + $0x28] sm:$0xff] %v257
  %274 = vst [vmem:[#allocation2 + $0x30] sm:$0xff] %v258
  %275 = vst [vmem:[#allocation2 + $0x38] sm:$0xff] %v259
  %276 = vst [vmem:[#allocation2 + $0x40] sm:$0xff] %v260
  %277 = vst [vmem:[#allocation2 + $0x48] sm:$0xff] %v261
  %278 = vst [vmem:[#allocation2 + $0x50] sm:$0xff] %v262
  %279 = vst [vmem:[#allocation2 + $0x58] sm:$0xff] %v263
  %280 = vst [vmem:[#allocation2 + $0x60] sm:$0xff] %v264
  %281 = vst [vmem:[#allocation2 + $0x68] sm:$0xff] %v265
  %282 = vst [vmem:[#allocation2 + $0x70] sm:$0xff] %v266
  %283 = vst [vmem:[#allocation2 + $0x78] sm:$0xff] %v267
  // Predicated region
  $region30: #{timm_model_forward.22} parent=0 // pred_check
    %p284 = pneg %p23
  $region31: #{timm_model_forward.22} parent=0 // pred_check_branch
    %286 = sbr.rel (%p284) target = $region33
  $region32: #{timm_model_forward.22} parent=0 // pred_region
    %v287 = vld [vmem:[#allocation2] sm:$0xff]
    %v288 = vld [vmem:[#allocation2 + $0x8] sm:$0xff]
    %v289 = vld [vmem:[#allocation2 + $0x10] sm:$0xff]
    %v290 = vld [vmem:[#allocation2 + $0x18] sm:$0xff]
    %v291 = vld [vmem:[#allocation2 + $0x20] sm:$0xff]
    %v292 = vld [vmem:[#allocation2 + $0x28] sm:$0xff]
    %v293 = vld [vmem:[#allocation2 + $0x30] sm:$0xff]
    %v294 = vld [vmem:[#allocation2 + $0x38] sm:$0xff]
    %v295 = vld [vmem:[#allocation2 + $0x40] sm:$0xff]
    %v296 = vld [vmem:[#allocation2 + $0x48] sm:$0xff]
    %v297 = vld [vmem:[#allocation2 + $0x50] sm:$0xff]
    %v298 = vld [vmem:[#allocation2 + $0x58] sm:$0xff]
    %v299 = vld [vmem:[#allocation2 + $0x60] sm:$0xff]
    %v300 = vld [vmem:[#allocation2 + $0x68] sm:$0xff]
    %v301 = vld [vmem:[#allocation2 + $0x70] sm:$0xff]
    %v302 = vld [vmem:[#allocation2 + $0x78] sm:$0xff]
    %v303 = vld [vmem:[%s4] sm:$0x1]
    %v305 = vperm.slane %v303, 0
    %v307 = vmul.f32 %v287, %v305
    %v308 = vmul.f32 %v288, %v305
    %v309 = vmul.f32 %v289, %v305
    %v310 = vmul.f32 %v290, %v305
    %v311 = vmul.f32 %v291, %v305
    %v312 = vmul.f32 %v292, %v305
    %v313 = vmul.f32 %v293, %v305
    %v314 = vmul.f32 %v294, %v305
    %v315 = vmul.f32 %v295, %v305
    %v316 = vmul.f32 %v296, %v305
    %v317 = vmul.f32 %v297, %v305
    %v318 = vmul.f32 %v298, %v305
    %v319 = vmul.f32 %v299, %v305
    %v320 = vmul.f32 %v300, %v305
    %v321 = vmul.f32 %v301, %v305
    %v322 = vmul.f32 %v302, %v305
    %v323 = vld [vmem:[%s5] sm:$0x1]
    %v325 = vperm.slane %v323, 0
    %v327 = vadd.f32 %v307, %v325
    %v328 = vadd.f32 %v308, %v325
    %v329 = vadd.f32 %v309, %v325
    %v330 = vadd.f32 %v310, %v325
    %v331 = vadd.f32 %v311, %v325
    %v332 = vadd.f32 %v312, %v325
    %v333 = vadd.f32 %v313, %v325
    %v334 = vadd.f32 %v314, %v325
    %v335 = vadd.f32 %v315, %v325
    %v336 = vadd.f32 %v316, %v325
    %v337 = vadd.f32 %v317, %v325
    %v338 = vadd.f32 %v318, %v325
    %v339 = vadd.f32 %v319, %v325
    %v340 = vadd.f32 %v320, %v325
    %v341 = vadd.f32 %v321, %v325
    %v342 = vadd.f32 %v322, %v325
    %v343 = vmax.f32 %v327, 0.0
    %v344 = vmax.f32 %v328, 0.0
    %v345 = vmax.f32 %v329, 0.0
    %v346 = vmax.f32 %v330, 0.0
    %v347 = vmax.f32 %v331, 0.0
    %v348 = vmax.f32 %v332, 0.0
    %v349 = vmax.f32 %v333, 0.0
    %v350 = vmax.f32 %v334, 0.0
    %v351 = vmax.f32 %v335, 0.0
    %v352 = vmax.f32 %v336, 0.0
    %v353 = vmax.f32 %v337, 0.0
    %v354 = vmax.f32 %v338, 0.0
    %v355 = vmax.f32 %v339, 0.0
    %v356 = vmax.f32 %v340, 0.0
    %v357 = vmax.f32 %v341, 0.0
    %v358 = vmax.f32 %v342, 0.0
    %359 = vst [vmem:[%s6] sm:$0xff] %v343
    %360 = vst [vmem:[%s6 + $0x8] sm:$0xff] %v344
    %361 = vst [vmem:[%s6 + $0x10] sm:$0xff] %v345
    %362 = vst [vmem:[%s6 + $0x18] sm:$0xff] %v346
    %363 = vst [vmem:[%s6 + $0x20] sm:$0xff] %v347
    %364 = vst [vmem:[%s6 + $0x28] sm:$0xff] %v348
    %365 = vst [vmem:[%s6 + $0x30] sm:$0xff] %v349
    %366 = vst [vmem:[%s6 + $0x38] sm:$0xff] %v350
    %367 = vst [vmem:[%s6 + $0x40] sm:$0xff] %v351
    %368 = vst [vmem:[%s6 + $0x48] sm:$0xff] %v352
    %369 = vst [vmem:[%s6 + $0x50] sm:$0xff] %v353
    %370 = vst [vmem:[%s6 + $0x58] sm:$0xff] %v354
    %371 = vst [vmem:[%s6 + $0x60] sm:$0xff] %v355
    %372 = vst [vmem:[%s6 + $0x68] sm:$0xff] %v356
    %373 = vst [vmem:[%s6 + $0x70] sm:$0xff] %v357
    %374 = vst [vmem:[%s6 + $0x78] sm:$0xff] %v358
  $region33: #{timm_model_forward.22} parent=0 // pred_fallthru
    _
  // Predicated region
  $region34: #{timm_model_forward.22} parent=0 // pred_check
    _
  $region35: #{timm_model_forward.22} parent=0 // pred_check_branch
    %376 = sbr.rel (0) target = $region37
  $region36: #{timm_model_forward.22} parent=0 // pred_region
    _
  $region37: #{timm_model_forward.22} parent=0 // pred_fallthru
    _
  // Predicated region
  $region38: #{timm_model_forward.22} parent=0 // pred_check
    _
  $region39: #{timm_model_forward.22} parent=0 // pred_check_branch
    %378 = sbr.rel (0) target = $region41
  $region40: #{timm_model_forward.22} parent=0 // pred_region
    _
  $region41: #{timm_model_forward.22} parent=0 // pred_fallthru
    _

// kernel: timm_model_forward.23
$region0: #{timm_model_forward.23}
  #allocation0 [shape = 'u32[]', space=smem, size = 0x4, offset = 0x4, fixed_abs, tag = 'smem constant byte address 0x4 - core index']
  #allocation1 [shape = 'u32[72,128]{1,0:T(1,128)}', space=vmem, size = 0x9000, scoped, tag = 'internal scratch']
  #allocation2 [shape = 'f32[128,128]{1,0:T(8,128)}', space=vmem, size = 0x10000, scoped, tag = 'scratch operand']
  %s0 = inlined_call_operand.vmem [shape: f32[128,384], index: 0, kind: input, shape index: {}]
  %s1 = inlined_call_operand.vmem [shape: bf16[384,128], index: 1, kind: input, shape index: {}]
  %s2 = inlined_call_operand.vmem [shape: f32[128,128], index: 2, kind: output, shape index: {}]
  %s3 = sld [smem:[#allocation0]]
  $region87: #{timm_model_forward.23} parent=0
    _
  %s5 = ssub.s32 1, %s3
  %s6 = scalar_select 0, %s5, %s3
  $region1: #{timm_model_forward.23} parent=0
    #allocation3 [shape = 'u8[131072]{0}', space=vmem, size = 0x20000, scoped, tag = 'input window, operand 0']
    loop: start=0, step=1, limit=5
    $region2: #{timm_model_forward.23} parent=1 // loop_pre_header
      _
    $region3: #{timm_model_forward.23} parent=1 // loop_header
      %s8 = sphi 0, %s12
      %p9 = scmp.ge.s32.totalorder %s8, 5
      %s15 = sphi 0, %s34
      %s16 = sphi 0, %s30
      %s17 = sphi 0, %s26
      %s18 = sphi 0, %s15
      %s19 = sphi 0, %s16
      %s20 = sphi 0, %s17
      %s21 = sphi 0, %s18
      %s22 = sphi 0, %s19
      %s23 = sphi 0, %s20
      %s39 = sphi 0, %s41
      %s42 = sphi 0, %s39
      %s43 = sphi 0, %s42
      %s59 = sphi 0, %s43
      %s67 = sphi 0, %s69
      %s70 = sphi 0, %s67
      %s71 = sphi 0, %s70
      %s87 = sphi 0, %s71
      %s95 = sphi 0, %s97
      %s98 = sphi 0, %s95
      %s99 = sphi 0, %s98
      %s115 = sphi 0, %s99
    $region4: #{timm_model_forward.23} parent=1 // loop_header_branch
      %11 = sbr.rel (%p9) target = $region8
    $region5: #{timm_model_forward.23} parent=1 // loop_body
      %s13 = ssub.s32 %s8, 1
      %s14 = ssub.s32 %s8, 2
      %s24 = sadd.s32 1, %s17
      %p25 = scmp.ge.s32.totalorder %s24, 3
      %s26 = scalar_select %p25, 0, %s24
      %s27 = sadd.s32 1, %s16
      %s28 = scalar_select %p25, %s27, %s16
      %p29 = scmp.ge.s32.totalorder %s28, 1
      %s30 = scalar_select %p29, 0, %s28
      %s31 = sadd.s32 1, %s15
      %s32 = scalar_select %p29, %s31, %s15
      %p33 = scmp.ge.s32.totalorder %s32, 1
      %s34 = scalar_select %p33, 0, %s32
      %s35 = ssub.s32 %s15, %s34
      %s36 = ssub.s32 %s17, %s26
      %s37 = sor.u32 %s35, %s36
      %p38 = scmp.eq.s32.totalorder %s37, 0
      %s40 = sadd.s32 %s39, 1
      %s41 = scalar_select %p38, %s39, %s40
      %p44 = pneg %p38
      %p45 = scmp.eq.s32.totalorder %s8, 2
      %p46 = por %p44, %p45
      %p47 = scmp.ne.s32.totalorder %s39, %s42
      %p48 = scmp.eq.s32.totalorder %s8, 0
      %p49 = por %p47, %p48
      %p50 = scmp.ne.s32.totalorder %s39, %s42
      %p51 = scmp.eq.s32.totalorder %s13, 2
      %p52 = por %p50, %p51
      %p53 = scmp.ne.s32.totalorder %s42, %s43
      %p54 = scmp.eq.s32.totalorder %s13, 0
      %p55 = por %p53, %p54
      %p56 = scmp.ne.s32.totalorder %s42, %s43
      %p57 = scmp.eq.s32.totalorder %s14, 2
      %p58 = por %p56, %p57
      %p60 = scmp.ne.s32.totalorder %s43, %s59
      %p61 = scmp.eq.s32.totalorder %s14, 0
      %p62 = por %p60, %p61
      %s63 = ssub.s32 %s17, %s26
      %s64 = ssub.s32 %s16, %s30
      %s65 = sor.u32 %s63, %s64
      %p66 = scmp.eq.s32.totalorder %s65, 0
      %s68 = sadd.s32 %s67, 1
      %s69 = scalar_select %p66, %s67, %s68
      %p72 = pneg %p66
      %p73 = scmp.eq.s32.totalorder %s8, 2
      %p74 = por %p72, %p73
      %p75 = scmp.ne.s32.totalorder %s67, %s70
      %p76 = scmp.eq.s32.totalorder %s8, 0
      %p77 = por %p75, %p76
      %p78 = scmp.ne.s32.totalorder %s67, %s70
      %p79 = scmp.eq.s32.totalorder %s13, 2
      %p80 = por %p78, %p79
      %p81 = scmp.ne.s32.totalorder %s70, %s71
      %p82 = scmp.eq.s32.totalorder %s13, 0
      %p83 = por %p81, %p82
      %p84 = scmp.ne.s32.totalorder %s70, %s71
      %p85 = scmp.eq.s32.totalorder %s14, 2
      %p86 = por %p84, %p85
      %p88 = scmp.ne.s32.totalorder %s71, %s87
      %p89 = scmp.eq.s32.totalorder %s14, 0
      %p90 = por %p88, %p89
      %s91 = ssub.s32 %s15, %s34
      %s92 = ssub.s32 %s16, %s30
      %s93 = sor.u32 %s91, %s92
      %p94 = scmp.eq.s32.totalorder %s93, 0
      %s96 = sadd.s32 %s95, 1
      %s97 = scalar_select %p94, %s95, %s96
      %p100 = pneg %p94
      %p101 = scmp.eq.s32.totalorder %s8, 2
      %p102 = por %p100, %p101
      %p103 = scmp.ne.s32.totalorder %s95, %s98
      %p104 = scmp.eq.s32.totalorder %s8, 0
      %p105 = por %p103, %p104
      %p106 = scmp.ne.s32.totalorder %s95, %s98
      %p107 = scmp.eq.s32.totalorder %s13, 2
      %p108 = por %p106, %p107
      %p109 = scmp.ne.s32.totalorder %s98, %s99
      %p110 = scmp.eq.s32.totalorder %s13, 0
      %p111 = por %p109, %p110
      %p112 = scmp.ne.s32.totalorder %s98, %s99
      %p113 = scmp.eq.s32.totalorder %s14, 2
      %p114 = por %p112, %p113
      %p116 = scmp.ne.s32.totalorder %s99, %s115
      %p117 = scmp.eq.s32.totalorder %s14, 0
      %p118 = por %p116, %p117
      %p119 = scmp.le.s32.totalorder 1, %s8
      %p120 = scmp.lt.s32.totalorder %s8, 4
      %p121 = pnand %p119, %p120
      %p122 = pneg %p121
      // Predicated region
      $region9: #{timm_model_forward.23} parent=5 // pred_check
        _
      $region10: #{timm_model_forward.23} parent=5 // pred_check_branch
        %124 = sbr.rel (%p121) target = $region12
      $region11: #{timm_model_forward.23} parent=5 // pred_region
        %s125 = ssub.s32 %s8, 1
      $region12: #{timm_model_forward.23} parent=5 // pred_fallthru
        _
      %p126 = scmp.lt.s32.totalorder %s8, 3
      // Predicated region
      $region13: #{timm_model_forward.23} parent=5 // pred_check
        %p127 = pneg %p126
      $region14: #{timm_model_forward.23} parent=5 // pred_check_branch
        %129 = sbr.rel (%p127) target = $region16
      $region15: #{timm_model_forward.23} parent=5 // pred_region
        // Predicated region
        $region17: #{timm_model_forward.23} parent=15 // pred_check
          %p130 = pneg %p49
        $region18: #{timm_model_forward.23} parent=15 // pred_check_branch
          %132 = sbr.rel (%p130) target = $region20
        $region19: #{timm_model_forward.23} parent=15 // pred_region
          %s133 = sand.u32 %s39, 1
          %s134 = sand.u32 %s39, 1
          %s135 = smul.addr %s134, 128
          %s136 = scalar_lea.vmem [#allocation3], %s135
          %s137 = smul.u32 16, %s15
          %s138 = smul.addr %s137, 3
          %s139 = sadd.s32 %s17, %s138
          %s140 = smul.addr %s139, 8
          %s141 = scalar_lea.vmem %s0, %s140
          // Predicated region
          $region21: #{timm_model_forward.23} parent=19 // pred_check
            _
          $region22: #{timm_model_forward.23} parent=19 // pred_check_branch
            %143 = sbr.rel (0) target = $region24
          $region23: #{timm_model_forward.23} parent=19 // pred_region
            // Predicated region
            $region25: #{timm_model_forward.23} parent=23 // pred_check
              _
            $region26: #{timm_model_forward.23} parent=23 // pred_check_branch
              %145 = sbr.rel (0) target = $region28
            $region27: #{timm_model_forward.23} parent=23 // pred_region
              // Predicated region
              $region40: #{timm_model_forward.23} parent=27 // pred_check
                _
              $region41: #{timm_model_forward.23} parent=27 // pred_check_branch
                %191 = sbr.rel (0) target = $region43
              $region42: #{timm_model_forward.23} parent=27 // pred_region
                loop: start=0, step=1, limit=1
                $region44: #{timm_model_forward.23} parent=42 // loop_pre_header
                  _
                $region45: #{timm_model_forward.23} parent=42 // loop_header
                  %s193 = sphi 0, %s197
                  %p194 = scmp.ge.s32.totalorder %s193, 1
                  %s198 = sphi %s141, %s141
                  %s199 = sphi %s136, %s136
                $region46: #{timm_model_forward.23} parent=42 // loop_header_branch
                  %196 = sbr.rel (%p194) target = $region50
                $region47: #{timm_model_forward.23} parent=42 // loop_body
                  %v200 = vld [vmem:[%s198] sm:$0xff]
                  %201 = vst [vmem:[%s199] sm:$0xff] %v200
                  %v202 = vld [vmem:[%s198 + $0x18] sm:$0xff]
                  %203 = vst [vmem:[%s199 + $0x8] sm:$0xff] %v202
                  %v204 = vld [vmem:[%s198 + $0x30] sm:$0xff]
                  %205 = vst [vmem:[%s199 + $0x10] sm:$0xff] %v204
                  %v206 = vld [vmem:[%s198 + $0x48] sm:$0xff]
                  %207 = vst [vmem:[%s199 + $0x18] sm:$0xff] %v206
                  %v208 = vld [vmem:[%s198 + $0x60] sm:$0xff]
                  %209 = vst [vmem:[%s199 + $0x20] sm:$0xff] %v208
                  %v210 = vld [vmem:[%s198 + $0x78] sm:$0xff]
                  %211 = vst [vmem:[%s199 + $0x28] sm:$0xff] %v210
                  %v212 = vld [vmem:[%s198 + $0x90] sm:$0xff]
                  %213 = vst [vmem:[%s199 + $0x30] sm:$0xff] %v212
                  %v214 = vld [vmem:[%s198 + $0xa8] sm:$0xff]
                  %215 = vst [vmem:[%s199 + $0x38] sm:$0xff] %v214
                  %v216 = vld [vmem:[%s198 + $0xc0] sm:$0xff]
                  %217 = vst [vmem:[%s199 + $0x40] sm:$0xff] %v216
                  %v218 = vld [vmem:[%s198 + $0xd8] sm:$0xff]
                  %219 = vst [vmem:[%s199 + $0x48] sm:$0xff] %v218
                  %v220 = vld [vmem:[%s198 + $0xf0] sm:$0xff]
                  %221 = vst [vmem:[%s199 + $0x50] sm:$0xff] %v220
                  %v222 = vld [vmem:[%s198 + $0x108] sm:$0xff]
                  %223 = vst [vmem:[%s199 + $0x58] sm:$0xff] %v222
                  %v224 = vld [vmem:[%s198 + $0x120] sm:$0xff]
                  %225 = vst [vmem:[%s199 + $0x60] sm:$0xff] %v224
                  %v226 = vld [vmem:[%s198 + $0x138] sm:$0xff]
                  %227 = vst [vmem:[%s199 + $0x68] sm:$0xff] %v226
                  %v228 = vld [vmem:[%s198 + $0x150] sm:$0xff]
                  %229 = vst [vmem:[%s199 + $0x70] sm:$0xff] %v228
                  %v230 = vld [vmem:[%s198 + $0x168] sm:$0xff]
                  %231 = vst [vmem:[%s199 + $0x78] sm:$0xff] %v230
                $region48: #{timm_model_forward.23} parent=42 // loop_footer
                  %s197 = sadd.s32 1, %s193
                $region49: #{timm_model_forward.23} parent=42 // loop_footer_branch
                  %192 = sbr.rel target = $region45
                $region50: #{timm_model_forward.23} parent=42 // loop_exit
                  _
              $region43: #{timm_model_forward.23} parent=27 // pred_fallthru
                _
              // Predicated region
              $region51: #{timm_model_forward.23} parent=27 // pred_check
                _
              $region52: #{timm_model_forward.23} parent=27 // pred_check_branch
                %233 = sbr.rel target = $region54
              $region53: #{timm_model_forward.23} parent=27 // pred_region
                _
              $region54: #{timm_model_forward.23} parent=27 // pred_fallthru
                _
            $region28: #{timm_model_forward.23} parent=23 // pred_fallthru
              _
            // Predicated region
            $region29: #{timm_model_forward.23} parent=23 // pred_check
              _
            $region30: #{timm_model_forward.23} parent=23 // pred_check_branch
              %147 = sbr.rel target = $region32
            $region31: #{timm_model_forward.23} parent=23 // pred_region
              %s149 = ssub.s32 256, 1
              loop: start=0, step=1, limit=1
              $region33: #{timm_model_forward.23} parent=31 // loop_pre_header
                _
              $region34: #{timm_model_forward.23} parent=31 // loop_header
                %s151 = sphi 0, %s155
                %p152 = scmp.ge.s32.totalorder %s151, 1
                %s156 = sphi %s141, %s141
                %s157 = sphi %s136, %s136
              $region35: #{timm_model_forward.23} parent=31 // loop_header_branch
                %154 = sbr.rel (%p152) target = $region39
              $region36: #{timm_model_forward.23} parent=31 // loop_body
                %v158 = vld [vmem:[%s156] sm:%s149]
                %159 = vst [vmem:[%s157] sm:%s149] %v158
                %v160 = vld [vmem:[%s156 + $0x18] sm:%s149]
                %161 = vst [vmem:[%s157 + $0x8] sm:%s149] %v160
                %v162 = vld [vmem:[%s156 + $0x30] sm:%s149]
                %163 = vst [vmem:[%s157 + $0x10] sm:%s149] %v162
                %v164 = vld [vmem:[%s156 + $0x48] sm:%s149]
                %165 = vst [vmem:[%s157 + $0x18] sm:%s149] %v164
                %v166 = vld [vmem:[%s156 + $0x60] sm:%s149]
                %167 = vst [vmem:[%s157 + $0x20] sm:%s149] %v166
                %v168 = vld [vmem:[%s156 + $0x78] sm:%s149]
                %169 = vst [vmem:[%s157 + $0x28] sm:%s149] %v168
                %v170 = vld [vmem:[%s156 + $0x90] sm:%s149]
                %171 = vst [vmem:[%s157 + $0x30] sm:%s149] %v170
                %v172 = vld [vmem:[%s156 + $0xa8] sm:%s149]
                %173 = vst [vmem:[%s157 + $0x38] sm:%s149] %v172
                %v174 = vld [vmem:[%s156 + $0xc0] sm:%s149]
                %175 = vst [vmem:[%s157 + $0x40] sm:%s149] %v174
                %v176 = vld [vmem:[%s156 + $0xd8] sm:%s149]
                %177 = vst [vmem:[%s157 + $0x48] sm:%s149] %v176
                %v178 = vld [vmem:[%s156 + $0xf0] sm:%s149]
                %179 = vst [vmem:[%s157 + $0x50] sm:%s149] %v178
                %v180 = vld [vmem:[%s156 + $0x108] sm:%s149]
                %181 = vst [vmem:[%s157 + $0x58] sm:%s149] %v180
                %v182 = vld [vmem:[%s156 + $0x120] sm:%s149]
                %183 = vst [vmem:[%s157 + $0x60] sm:%s149] %v182
                %v184 = vld [vmem:[%s156 + $0x138] sm:%s149]
                %185 = vst [vmem:[%s157 + $0x68] sm:%s149] %v184
                %v186 = vld [vmem:[%s156 + $0x150] sm:%s149]
                %187 = vst [vmem:[%s157 + $0x70] sm:%s149] %v186
                %v188 = vld [vmem:[%s156 + $0x168] sm:%s149]
                %189 = vst [vmem:[%s157 + $0x78] sm:%s149] %v188
              $region37: #{timm_model_forward.23} parent=31 // loop_footer
                %s155 = sadd.s32 1, %s151
              $region38: #{timm_model_forward.23} parent=31 // loop_footer_branch
                %150 = sbr.rel target = $region34
              $region39: #{timm_model_forward.23} parent=31 // loop_exit
                _
            $region32: #{timm_model_forward.23} parent=23 // pred_fallthru
              _
          $region24: #{timm_model_forward.23} parent=19 // pred_fallthru
            _
          %234 = vnop
        $region20: #{timm_model_forward.23} parent=15 // pred_fallthru
          _
        // Predicated region
        $region55: #{timm_model_forward.23} parent=15 // pred_check
          %p235 = pneg %p77
        $region56: #{timm_model_forward.23} parent=15 // pred_check_branch
          %237 = sbr.rel (%p235) target = $region58
        $region57: #{timm_model_forward.23} parent=15 // pred_region
          %s238 = smul.u32 16, %s17
          %p239 = scmp.lt.s32.totalorder %s238, 47
          %s240 = scalar_select %p239, %s238, 47
          %p241 = scmp.lt.s32.totalorder %s16, 0
          %s242 = scalar_select %p241, %s16, 0
          %s243 = sadd.s32 %s242, %s240
          %s244 = smul.addr %s243, 4
          %s245 = scalar_lea.vmem %s1, %s244
          %s246 = smul.u32 16, %s17
        $region58: #{timm_model_forward.23} parent=15 // pred_fallthru
          _
      $region16: #{timm_model_forward.23} parent=5 // pred_fallthru
        _
      %p247 = scmp.le.s32.totalorder 1, %s8
      %p248 = scmp.lt.s32.totalorder %s8, 4
      %p249 = pnand %p247, %p248
      %p250 = pneg %p249
      // Predicated region
      $region59: #{timm_model_forward.23} parent=5 // pred_check
        _
      $region60: #{timm_model_forward.23} parent=5 // pred_check_branch
        %252 = sbr.rel (%p249) target = $region62
      $region61: #{timm_model_forward.23} parent=5 // pred_region
        %s253 = ssub.s32 %s8, 1
        %s254 = sand.u32 %s42, 1
        %s255 = sand.u32 %s42, 1
        %s256 = smul.addr %s255, 128
        %s257 = scalar_lea.vmem [#allocation3], %s256
        // Predicated region
        $region63: #{timm_model_forward.23} parent=61 // pred_check
          %p258 = pneg %p55
        $region64: #{timm_model_forward.23} parent=61 // pred_check_branch
          %260 = sbr.rel (%p258) target = $region66
        $region65: #{timm_model_forward.23} parent=61 // pred_region
          _
        $region66: #{timm_model_forward.23} parent=61 // pred_fallthru
          _
        %s261 = sand.u32 %s42, 1
        %s262 = sand.u32 %s42, 1
        %s263 = smul.addr %s262, 128
        %s264 = scalar_lea.vmem [#allocation3], %s263
        %p265 = pneg %p55
        %p266 = pneg %p52
        %s267 = smul.u32 16, %s20
        %p268 = scmp.lt.s32.totalorder %s267, 47
        %s269 = scalar_select %p268, %s267, 47
        %p270 = scmp.lt.s32.totalorder %s19, 0
        %s271 = scalar_select %p270, %s19, 0
        %s272 = sadd.s32 %s271, %s269
        %s273 = smul.addr %s272, 4
        %s274 = scalar_lea.vmem %s1, %s273
        %p275 = pneg %p83
        %p276 = pneg %p80
        %p277 = pneg %p111
        %p278 = pneg %p108
        %s279 = smul.u32 16, %s18
        %p280 = scmp.lt.s32.totalorder %s279, 15
        %s281 = scalar_select %p280, %s279, 15
        %p282 = scmp.lt.s32.totalorder %s19, 0
        %s283 = scalar_select %p282, %s19, 0
        %s284 = sadd.s32 %s283, %s281
        %s285 = smul.addr %s284, 8
        %s286 = scalar_lea.vmem %s2, %s285
        %s287 = smul.u32 16, %s18
        %s288 = smul.u32 16, %s20
        %p289 = scmp.lt.s32.totalorder %s288, 47
        %s290 = scalar_select %p289, %s288, 47
        %p291 = scmp.lt.s32.totalorder %s19, 0
        %s292 = scalar_select %p291, %s19, 0
        %s293 = sadd.s32 %s292, %s290
        %s294 = smul.addr %s293, 4
        %s295 = scalar_lea.vmem %s1, %s294
        %s296 = smul.u32 16, %s20
        %s297 = smul.u32 16, %s18
        %p298 = scmp.lt.s32.totalorder %s297, 15
        %s299 = scalar_select %p298, %s297, 15
        %p300 = scmp.lt.s32.totalorder %s19, 0
        %s301 = scalar_select %p300, %s19, 0
        %s302 = sadd.s32 %s301, %s299
        %s303 = smul.addr %s302, 8
        %s304 = scalar_lea.vmem %s2, %s303
        %s305 = smul.u32 16, %s18
        %p306 = scmp.eq.s32.totalorder %s20, 0
        // Predicated region
        $region67: #{timm_model_forward.23} parent=61 // pred_check
          %p307 = pneg %p306
        $region68: #{timm_model_forward.23} parent=61 // pred_check_branch
          %309 = sbr.rel (%p307) target = $region70
        $region69: #{timm_model_forward.23} parent=61 // pred_region
          %310 = vst [vmem:[#allocation2] sm:$0xff] 0.0
          %311 = vst [vmem:[#allocation2 + $0x8] sm:$0xff] 0.0
          %312 = vst [vmem:[#allocation2 + $0x10] sm:$0xff] 0.0
          %313 = vst [vmem:[#allocation2 + $0x18] sm:$0xff] 0.0
          %314 = vst [vmem:[#allocation2 + $0x20] sm:$0xff] 0.0
          %315 = vst [vmem:[#allocation2 + $0x28] sm:$0xff] 0.0
          %316 = vst [vmem:[#allocation2 + $0x30] sm:$0xff] 0.0
          %317 = vst [vmem:[#allocation2 + $0x38] sm:$0xff] 0.0
          %318 = vst [vmem:[#allocation2 + $0x40] sm:$0xff] 0.0
          %319 = vst [vmem:[#allocation2 + $0x48] sm:$0xff] 0.0
          %320 = vst [vmem:[#allocation2 + $0x50] sm:$0xff] 0.0
          %321 = vst [vmem:[#allocation2 + $0x58] sm:$0xff] 0.0
          %322 = vst [vmem:[#allocation2 + $0x60] sm:$0xff] 0.0
          %323 = vst [vmem:[#allocation2 + $0x68] sm:$0xff] 0.0
          %324 = vst [vmem:[#allocation2 + $0x70] sm:$0xff] 0.0
          %325 = vst [vmem:[#allocation2 + $0x78] sm:$0xff] 0.0
        $region70: #{timm_model_forward.23} parent=61 // pred_fallthru
          _
        %v326 = vld [vmem:[%s257] sm:$0xff]
        %v327 = vld [vmem:[%s257 + $0x8] sm:$0xff]
        %v328 = vld [vmem:[%s257 + $0x10] sm:$0xff]
        %v329 = vld [vmem:[%s257 + $0x18] sm:$0xff]
        %v330 = vld [vmem:[%s257 + $0x20] sm:$0xff]
        %v331 = vld [vmem:[%s257 + $0x28] sm:$0xff]
        %v332 = vld [vmem:[%s257 + $0x30] sm:$0xff]
        %v333 = vld [vmem:[%s257 + $0x38] sm:$0xff]
        %v334 = vld [vmem:[%s257 + $0x40] sm:$0xff]
        %v335 = vld [vmem:[%s257 + $0x48] sm:$0xff]
        %v336 = vld [vmem:[%s257 + $0x50] sm:$0xff]
        %v337 = vld [vmem:[%s257 + $0x58] sm:$0xff]
        %v338 = vld [vmem:[%s257 + $0x60] sm:$0xff]
        %v339 = vld [vmem:[%s257 + $0x68] sm:$0xff]
        %v340 = vld [vmem:[%s257 + $0x70] sm:$0xff]
        %v341 = vld [vmem:[%s257 + $0x78] sm:$0xff]
        %v342 = vld [vmem:[#allocation2] sm:$0xff]
        %v343 = vld [vmem:[#allocation2 + $0x8] sm:$0xff]
        %v344 = vld [vmem:[#allocation2 + $0x10] sm:$0xff]
        %v345 = vld [vmem:[#allocation2 + $0x18] sm:$0xff]
        %v346 = vld [vmem:[#allocation2 + $0x20] sm:$0xff]
        %v347 = vld [vmem:[#allocation2 + $0x28] sm:$0xff]
        %v348 = vld [vmem:[#allocation2 + $0x30] sm:$0xff]
        %v349 = vld [vmem:[#allocation2 + $0x38] sm:$0xff]
        %v350 = vld [vmem:[#allocation2 + $0x40] sm:$0xff]
        %v351 = vld [vmem:[#allocation2 + $0x48] sm:$0xff]
        %v352 = vld [vmem:[#allocation2 + $0x50] sm:$0xff]
        %v353 = vld [vmem:[#allocation2 + $0x58] sm:$0xff]
        %v354 = vld [vmem:[#allocation2 + $0x60] sm:$0xff]
        %v355 = vld [vmem:[#allocation2 + $0x68] sm:$0xff]
        %v356 = vld [vmem:[#allocation2 + $0x70] sm:$0xff]
        %v357 = vld [vmem:[#allocation2 + $0x78] sm:$0xff]
        %v358 = vpack.c.bf16 %v327, %v326
        %v359 = vpack.c.bf16 %v329, %v328
        %v360 = vpack.c.bf16 %v331, %v330
        %v361 = vpack.c.bf16 %v333, %v332
        %v362 = vpack.c.bf16 %v335, %v334
        %v363 = vpack.c.bf16 %v337, %v336
        %v364 = vpack.c.bf16 %v339, %v338
        %v365 = vpack.c.bf16 %v341, %v340
        %v366 = vld [vmem:[%s295] sm:$0xf]
        %v367 = vld [vmem:[%s295 + $0x4] sm:$0xf]
        %v368 = vld [vmem:[%s295 + $0x8] sm:$0xf]
        %v369 = vld [vmem:[%s295 + $0xc] sm:$0xf]
        %v370 = vld [vmem:[%s295 + $0x10] sm:$0xf]
        %v371 = vld [vmem:[%s295 + $0x14] sm:$0xf]
        %v372 = vld [vmem:[%s295 + $0x18] sm:$0xf]
        %v373 = vld [vmem:[%s295 + $0x1c] sm:$0xf]
        %v374 = vld [vmem:[%s295 + $0x20] sm:$0xf]
        %v375 = vld [vmem:[%s295 + $0x24] sm:$0xf]
        %v376 = vld [vmem:[%s295 + $0x28] sm:$0xf]
        %v377 = vld [vmem:[%s295 + $0x2c] sm:$0xf]
        %v378 = vld [vmem:[%s295 + $0x30] sm:$0xf]
        %v379 = vld [vmem:[%s295 + $0x34] sm:$0xf]
        %v380 = vld [vmem:[%s295 + $0x38] sm:$0xf]
        %v381 = vld [vmem:[%s295 + $0x3c] sm:$0xf]
        %v398 = vunpack.c.l.b16 %v366
        %v399 = vunpack.c.l.b16 %v367
        %v400 = vunpack.c.l.b16 %v368
        %v401 = vunpack.c.l.b16 %v369
        %v402 = vunpack.c.l.b16 %v370
        %v403 = vunpack.c.l.b16 %v371
        %v404 = vunpack.c.l.b16 %v372
        %v405 = vunpack.c.l.b16 %v373
        %v406 = vunpack.c.l.b16 %v374
        %v407 = vunpack.c.l.b16 %v375
        %v408 = vunpack.c.l.b16 %v376
        %v409 = vunpack.c.l.b16 %v377
        %v410 = vunpack.c.l.b16 %v378
        %v411 = vunpack.c.l.b16 %v379
        %v412 = vunpack.c.l.b16 %v380
        %v413 = vunpack.c.l.b16 %v381
        %v414 = vpack.c.b16 %v399, %v398
        %v415 = vpack.c.b16 %v401, %v400
        %v416 = vpack.c.b16 %v403, %v402
        %v417 = vpack.c.b16 %v405, %v404
        %v418 = vpack.c.b16 %v407, %v406
        %v419 = vpack.c.b16 %v409, %v408
        %v420 = vpack.c.b16 %v411, %v410
        %v421 = vpack.c.b16 %v413, %v412
        %430 = vmatpush.bf16.msra.mxu0 %v421
        %431 = vmatpush.bf16.msra.mxu0 %v420
        %432 = vmatpush.bf16.msra.mxu0 %v419
        %433 = vmatpush.bf16.msra.mxu0 %v418
        %434 = vmatpush.bf16.msra.mxu0 %v417
        %435 = vmatpush.bf16.msra.mxu0 %v416
        %436 = vmatpush.bf16.msra.mxu0 %v415
        %437 = vmatpush.bf16.msra.mxu0 %v414
        %438 = vmatmul.bf16.gmra.mxu0 %v358
        %v439 = vpop.f32.mrf.mxu0
        %v440 = vadd.f32 0.0, %v439
        %v441 = vpop.f32.mrf.mxu0
        %v442 = vadd.f32 0.0, %v441
        %443 = vmatmul.bf16.gmra.mxu0 %v359
        %v444 = vpop.f32.mrf.mxu0
        %v445 = vadd.f32 0.0, %v444
        %v446 = vpop.f32.mrf.mxu0
        %v447 = vadd.f32 0.0, %v446
        %448 = vmatmul.bf16.gmra.mxu0 %v360
        %v449 = vpop.f32.mrf.mxu0
        %v450 = vadd.f32 0.0, %v449
        %v451 = vpop.f32.mrf.mxu0
        %v452 = vadd.f32 0.0, %v451
        %453 = vmatmul.bf16.gmra.mxu0 %v361
        %v454 = vpop.f32.mrf.mxu0
        %v455 = vadd.f32 0.0, %v454
        %v456 = vpop.f32.mrf.mxu0
        %v457 = vadd.f32 0.0, %v456
        %458 = vmatmul.bf16.gmra.mxu0 %v362
        %v459 = vpop.f32.mrf.mxu0
        %v460 = vadd.f32 0.0, %v459
        %v461 = vpop.f32.mrf.mxu0
        %v462 = vadd.f32 0.0, %v461
        %463 = vmatmul.bf16.gmra.mxu0 %v363
        %v464 = vpop.f32.mrf.mxu0
        %v465 = vadd.f32 0.0, %v464
        %v466 = vpop.f32.mrf.mxu0
        %v467 = vadd.f32 0.0, %v466
        %468 = vmatmul.bf16.gmra.mxu0 %v364
        %v469 = vpop.f32.mrf.mxu0
        %v470 = vadd.f32 0.0, %v469
        %v471 = vpop.f32.mrf.mxu0
        %v472 = vadd.f32 0.0, %v471
        %473 = vmatmul.bf16.gmra.mxu0 %v365
        %v474 = vpop.f32.mrf.mxu0
        %v475 = vadd.f32 0.0, %v474
        %v476 = vpop.f32.mrf.mxu0
        %v477 = vadd.f32 0.0, %v476
        %478 = vdwg.mxu0
        %v479 = vadd.f32 %v342, %v440
        %v480 = vadd.f32 %v343, %v442
        %v481 = vadd.f32 %v344, %v445
        %v482 = vadd.f32 %v345, %v447
        %v483 = vadd.f32 %v346, %v450
        %v484 = vadd.f32 %v347, %v452
        %v485 = vadd.f32 %v348, %v455
        %v486 = vadd.f32 %v349, %v457
        %v487 = vadd.f32 %v350, %v460
        %v488 = vadd.f32 %v351, %v462
        %v489 = vadd.f32 %v352, %v465
        %v490 = vadd.f32 %v353, %v467
        %v491 = vadd.f32 %v354, %v470
        %v492 = vadd.f32 %v355, %v472
        %v493 = vadd.f32 %v356, %v475
        %v494 = vadd.f32 %v357, %v477
        %495 = vst [vmem:[#allocation2] sm:$0xff] %v479
        %496 = vst [vmem:[#allocation2 + $0x8] sm:$0xff] %v480
        %497 = vst [vmem:[#allocation2 + $0x10] sm:$0xff] %v481
        %498 = vst [vmem:[#allocation2 + $0x18] sm:$0xff] %v482
        %499 = vst [vmem:[#allocation2 + $0x20] sm:$0xff] %v483
        %500 = vst [vmem:[#allocation2 + $0x28] sm:$0xff] %v484
        %501 = vst [vmem:[#allocation2 + $0x30] sm:$0xff] %v485
        %502 = vst [vmem:[#allocation2 + $0x38] sm:$0xff] %v486
        %503 = vst [vmem:[#allocation2 + $0x40] sm:$0xff] %v487
        %504 = vst [vmem:[#allocation2 + $0x48] sm:$0xff] %v488
        %505 = vst [vmem:[#allocation2 + $0x50] sm:$0xff] %v489
        %506 = vst [vmem:[#allocation2 + $0x58] sm:$0xff] %v490
        %507 = vst [vmem:[#allocation2 + $0x60] sm:$0xff] %v491
        %508 = vst [vmem:[#allocation2 + $0x68] sm:$0xff] %v492
        %509 = vst [vmem:[#allocation2 + $0x70] sm:$0xff] %v493
        %510 = vst [vmem:[#allocation2 + $0x78] sm:$0xff] %v494
        %p511 = scmp.eq.s32.totalorder %s20, 2
        // Predicated region
        $region71: #{timm_model_forward.23} parent=61 // pred_check
          %p512 = pneg %p511
        $region72: #{timm_model_forward.23} parent=61 // pred_check_branch
          %514 = sbr.rel (%p512) target = $region74
        $region73: #{timm_model_forward.23} parent=61 // pred_region
          %v515 = vld [vmem:[#allocation2] sm:$0xff]
          %v516 = vld [vmem:[#allocation2 + $0x8] sm:$0xff]
          %v517 = vld [vmem:[#allocation2 + $0x10] sm:$0xff]
          %v518 = vld [vmem:[#allocation2 + $0x18] sm:$0xff]
          %v519 = vld [vmem:[#allocation2 + $0x20] sm:$0xff]
          %v520 = vld [vmem:[#allocation2 + $0x28] sm:$0xff]
          %v521 = vld [vmem:[#allocation2 + $0x30] sm:$0xff]
          %v522 = vld [vmem:[#allocation2 + $0x38] sm:$0xff]
          %v523 = vld [vmem:[#allocation2 + $0x40] sm:$0xff]
          %v524 = vld [vmem:[#allocation2 + $0x48] sm:$0xff]
          %v525 = vld [vmem:[#allocation2 + $0x50] sm:$0xff]
          %v526 = vld [vmem:[#allocation2 + $0x58] sm:$0xff]
          %v527 = vld [vmem:[#allocation2 + $0x60] sm:$0xff]
          %v528 = vld [vmem:[#allocation2 + $0x68] sm:$0xff]
          %v529 = vld [vmem:[#allocation2 + $0x70] sm:$0xff]
          %v530 = vld [vmem:[#allocation2 + $0x78] sm:$0xff]
          %531 = vst [vmem:[%s304] sm:$0xff] %v515
          %532 = vst [vmem:[%s304 + $0x8] sm:$0xff] %v516
          %533 = vst [vmem:[%s304 + $0x10] sm:$0xff] %v517
          %534 = vst [vmem:[%s304 + $0x18] sm:$0xff] %v518
          %535 = vst [vmem:[%s304 + $0x20] sm:$0xff] %v519
          %536 = vst [vmem:[%s304 + $0x28] sm:$0xff] %v520
          %537 = vst [vmem:[%s304 + $0x30] sm:$0xff] %v521
          %538 = vst [vmem:[%s304 + $0x38] sm:$0xff] %v522
          %539 = vst [vmem:[%s304 + $0x40] sm:$0xff] %v523
          %540 = vst [vmem:[%s304 + $0x48] sm:$0xff] %v524
          %541 = vst [vmem:[%s304 + $0x50] sm:$0xff] %v525
          %542 = vst [vmem:[%s304 + $0x58] sm:$0xff] %v526
          %543 = vst [vmem:[%s304 + $0x60] sm:$0xff] %v527
          %544 = vst [vmem:[%s304 + $0x68] sm:$0xff] %v528
          %545 = vst [vmem:[%s304 + $0x70] sm:$0xff] %v529
          %546 = vst [vmem:[%s304 + $0x78] sm:$0xff] %v530
        $region74: #{timm_model_forward.23} parent=61 // pred_fallthru
          _
        %s547 = smul.u32 16, %s18
        %p548 = scmp.lt.s32.totalorder %s547, 15
        %s549 = scalar_select %p548, %s547, 15
        %p550 = scmp.lt.s32.totalorder %s19, 0
        %s551 = scalar_select %p550, %s19, 0
        %s552 = sadd.s32 %s551, %s549
        %s553 = smul.addr %s552, 8
        %s554 = scalar_lea.vmem %s2, %s553
        // Predicated region
        $region75: #{timm_model_forward.23} parent=61 // pred_check
          %p555 = pneg %p108
        $region76: #{timm_model_forward.23} parent=61 // pred_check_branch
          %557 = sbr.rel (%p555) target = $region78
        $region77: #{timm_model_forward.23} parent=61 // pred_region
          %s558 = smul.u32 16, %s18
        $region78: #{timm_model_forward.23} parent=61 // pred_fallthru
          _
        // Predicated region
        $region79: #{timm_model_forward.23} parent=61 // pred_check
          %p559 = pneg %p108
        $region80: #{timm_model_forward.23} parent=61 // pred_check_branch
          %561 = sbr.rel (%p559) target = $region82
        $region81: #{timm_model_forward.23} parent=61 // pred_region
          %s562 = smul.u32 16, %s18
          %p563 = scmp.lt.s32.totalorder %s562, 15
          %s564 = scalar_select %p563, %s562, 15
          %p565 = scmp.lt.s32.totalorder %s19, 0
          %s566 = scalar_select %p565, %s19, 0
          %s567 = sadd.s32 %s566, %s564
          %s568 = smul.addr %s567, 8
          %s569 = scalar_lea.vmem %s2, %s568
        $region82: #{timm_model_forward.23} parent=61 // pred_fallthru
          _
      $region62: #{timm_model_forward.23} parent=5 // pred_fallthru
        _
      %p570 = scmp.le.s32.totalorder 2, %s8
      // Predicated region
      $region83: #{timm_model_forward.23} parent=5 // pred_check
        %p571 = pneg %p570
      $region84: #{timm_model_forward.23} parent=5 // pred_check_branch
        %573 = sbr.rel (%p571) target = $region86
      $region85: #{timm_model_forward.23} parent=5 // pred_region
        %s574 = ssub.s32 %s8, 2
      $region86: #{timm_model_forward.23} parent=5 // pred_fallthru
        _
    $region6: #{timm_model_forward.23} parent=1 // loop_footer
      %s12 = sadd.s32 1, %s8
    $region7: #{timm_model_forward.23} parent=1 // loop_footer_branch
      %7 = sbr.rel target = $region3
    $region8: #{timm_model_forward.23} parent=1 // loop_exit
      _

// kernel: timm_model_forward.26
$region0: #{timm_model_forward.26}
  #allocation0 [shape = 'u32[]', space=smem, size = 0x4, offset = 0x4, fixed_abs, tag = 'smem constant byte address 0x4 - core index']
  #allocation1 [shape = 'u32[72,128]{1,0:T(1,128)}', space=vmem, size = 0x9000, scoped, tag = 'internal scratch']
  #allocation2 [shape = 'f32[128,128]{1,0:T(8,128)}', space=vmem, size = 0x10000, scoped, tag = 'scratch operand']
  %s0 = inlined_call_operand.vmem [shape: f32[128,128], index: 0, kind: input, shape index: {}]
  %s1 = inlined_call_operand.vmem [shape: bf16[128,128], index: 1, kind: input, shape index: {}]
  %s2 = inlined_call_operand.vmem [shape: f32[1,128], index: 2, kind: input, shape index: {}]
  %s3 = inlined_call_operand.vmem [shape: f32[1,128], index: 3, kind: input, shape index: {}]
  %s4 = inlined_call_operand.vmem [shape: f32[128,128], index: 4, kind: output, shape index: {}]
  %s5 = sld [smem:[#allocation0]]
  $region34: #{timm_model_forward.26} parent=0
    _
  %s7 = ssub.s32 1, %s5
  %s8 = scalar_select 0, %s7, %s5
  // Predicated region
  $region2: #{timm_model_forward.26} parent=0 // pred_check
    _
  $region3: #{timm_model_forward.26} parent=0 // pred_check_branch
    %10 = sbr.rel (0) target = $region5
  $region4: #{timm_model_forward.26} parent=0 // pred_region
    _
  $region5: #{timm_model_forward.26} parent=0 // pred_fallthru
    _
  // Predicated region
  $region6: #{timm_model_forward.26} parent=0 // pred_check
    _
  $region7: #{timm_model_forward.26} parent=0 // pred_check_branch
    %12 = sbr.rel (0) target = $region9
  $region8: #{timm_model_forward.26} parent=0 // pred_region
    _
  $region9: #{timm_model_forward.26} parent=0 // pred_fallthru
    _
  // Predicated region
  $region10: #{timm_model_forward.26} parent=0 // pred_check
    _
  $region11: #{timm_model_forward.26} parent=0 // pred_check_branch
    %14 = sbr.rel (0) target = $region13
  $region12: #{timm_model_forward.26} parent=0 // pred_region
    _
  $region13: #{timm_model_forward.26} parent=0 // pred_fallthru
    _
  // Predicated region
  $region14: #{timm_model_forward.26} parent=0 // pred_check
    _
  $region15: #{timm_model_forward.26} parent=0 // pred_check_branch
    %16 = sbr.rel (0) target = $region17
  $region16: #{timm_model_forward.26} parent=0 // pred_region
    _
  $region17: #{timm_model_forward.26} parent=0 // pred_fallthru
    _
  %p17 = scmp.eq.s32.totalorder 0, 0
  // Predicated region
  $region18: #{timm_model_forward.26} parent=0 // pred_check
    %p18 = pneg %p17
  $region19: #{timm_model_forward.26} parent=0 // pred_check_branch
    %20 = sbr.rel (%p18) target = $region21
  $region20: #{timm_model_forward.26} parent=0 // pred_region
    %21 = vst [vmem:[#allocation2] sm:$0xff] 0.0
    %22 = vst [vmem:[#allocation2 + $0x8] sm:$0xff] 0.0
    %23 = vst [vmem:[#allocation2 + $0x10] sm:$0xff] 0.0
    %24 = vst [vmem:[#allocation2 + $0x18] sm:$0xff] 0.0
    %25 = vst [vmem:[#allocation2 + $0x20] sm:$0xff] 0.0
    %26 = vst [vmem:[#allocation2 + $0x28] sm:$0xff] 0.0
    %27 = vst [vmem:[#allocation2 + $0x30] sm:$0xff] 0.0
    %28 = vst [vmem:[#allocation2 + $0x38] sm:$0xff] 0.0
    %29 = vst [vmem:[#allocation2 + $0x40] sm:$0xff] 0.0
    %30 = vst [vmem:[#allocation2 + $0x48] sm:$0xff] 0.0
    %31 = vst [vmem:[#allocation2 + $0x50] sm:$0xff] 0.0
    %32 = vst [vmem:[#allocation2 + $0x58] sm:$0xff] 0.0
    %33 = vst [vmem:[#allocation2 + $0x60] sm:$0xff] 0.0
    %34 = vst [vmem:[#allocation2 + $0x68] sm:$0xff] 0.0
    %35 = vst [vmem:[#allocation2 + $0x70] sm:$0xff] 0.0
    %36 = vst [vmem:[#allocation2 + $0x78] sm:$0xff] 0.0
  $region21: #{timm_model_forward.26} parent=0 // pred_fallthru
    _
  %v37 = vld [vmem:[%s0] sm:$0xff]
  %v38 = vld [vmem:[%s0 + $0x8] sm:$0xff]
  %v39 = vld [vmem:[%s0 + $0x10] sm:$0xff]
  %v40 = vld [vmem:[%s0 + $0x18] sm:$0xff]
  %v41 = vld [vmem:[%s0 + $0x20] sm:$0xff]
  %v42 = vld [vmem:[%s0 + $0x28] sm:$0xff]
  %v43 = vld [vmem:[%s0 + $0x30] sm:$0xff]
  %v44 = vld [vmem:[%s0 + $0x38] sm:$0xff]
  %v45 = vld [vmem:[%s0 + $0x40] sm:$0xff]
  %v46 = vld [vmem:[%s0 + $0x48] sm:$0xff]
  %v47 = vld [vmem:[%s0 + $0x50] sm:$0xff]
  %v48 = vld [vmem:[%s0 + $0x58] sm:$0xff]
  %v49 = vld [vmem:[%s0 + $0x60] sm:$0xff]
  %v50 = vld [vmem:[%s0 + $0x68] sm:$0xff]
  %v51 = vld [vmem:[%s0 + $0x70] sm:$0xff]
  %v52 = vld [vmem:[%s0 + $0x78] sm:$0xff]
  %v53 = vld [vmem:[%s2] sm:$0x1]
  %v55 = vperm.slane %v53, 0
  %v57 = vmul.f32 %v37, %v55
  %v58 = vmul.f32 %v38, %v55
  %v59 = vmul.f32 %v39, %v55
  %v60 = vmul.f32 %v40, %v55
  %v61 = vmul.f32 %v41, %v55
  %v62 = vmul.f32 %v42, %v55
  %v63 = vmul.f32 %v43, %v55
  %v64 = vmul.f32 %v44, %v55
  %v65 = vmul.f32 %v45, %v55
  %v66 = vmul.f32 %v46, %v55
  %v67 = vmul.f32 %v47, %v55
  %v68 = vmul.f32 %v48, %v55
  %v69 = vmul.f32 %v49, %v55
  %v70 = vmul.f32 %v50, %v55
  %v71 = vmul.f32 %v51, %v55
  %v72 = vmul.f32 %v52, %v55
  %v73 = vld [vmem:[%s3] sm:$0x1]
  %v75 = vperm.slane %v73, 0
  %v77 = vadd.f32 %v57, %v75
  %v78 = vadd.f32 %v58, %v75
  %v79 = vadd.f32 %v59, %v75
  %v80 = vadd.f32 %v60, %v75
  %v81 = vadd.f32 %v61, %v75
  %v82 = vadd.f32 %v62, %v75
  %v83 = vadd.f32 %v63, %v75
  %v84 = vadd.f32 %v64, %v75
  %v85 = vadd.f32 %v65, %v75
  %v86 = vadd.f32 %v66, %v75
  %v87 = vadd.f32 %v67, %v75
  %v88 = vadd.f32 %v68, %v75
  %v89 = vadd.f32 %v69, %v75
  %v90 = vadd.f32 %v70, %v75
  %v91 = vadd.f32 %v71, %v75
  %v92 = vadd.f32 %v72, %v75
  %v93 = vmax.f32 %v77, 0.0
  %v94 = vmax.f32 %v78, 0.0
  %v95 = vmax.f32 %v79, 0.0
  %v96 = vmax.f32 %v80, 0.0
  %v97 = vmax.f32 %v81, 0.0
  %v98 = vmax.f32 %v82, 0.0
  %v99 = vmax.f32 %v83, 0.0
  %v100 = vmax.f32 %v84, 0.0
  %v101 = vmax.f32 %v85, 0.0
  %v102 = vmax.f32 %v86, 0.0
  %v103 = vmax.f32 %v87, 0.0
  %v104 = vmax.f32 %v88, 0.0
  %v105 = vmax.f32 %v89, 0.0
  %v106 = vmax.f32 %v90, 0.0
  %v107 = vmax.f32 %v91, 0.0
  %v108 = vmax.f32 %v92, 0.0
  %v109 = vld [vmem:[#allocation2] sm:$0xff]
  %v110 = vld [vmem:[#allocation2 + $0x8] sm:$0xff]
  %v111 = vld [vmem:[#allocation2 + $0x10] sm:$0xff]
  %v112 = vld [vmem:[#allocation2 + $0x18] sm:$0xff]
  %v113 = vld [vmem:[#allocation2 + $0x20] sm:$0xff]
  %v114 = vld [vmem:[#allocation2 + $0x28] sm:$0xff]
  %v115 = vld [vmem:[#allocation2 + $0x30] sm:$0xff]
  %v116 = vld [vmem:[#allocation2 + $0x38] sm:$0xff]
  %v117 = vld [vmem:[#allocation2 + $0x40] sm:$0xff]
  %v118 = vld [vmem:[#allocation2 + $0x48] sm:$0xff]
  %v119 = vld [vmem:[#allocation2 + $0x50] sm:$0xff]
  %v120 = vld [vmem:[#allocation2 + $0x58] sm:$0xff]
  %v121 = vld [vmem:[#allocation2 + $0x60] sm:$0xff]
  %v122 = vld [vmem:[#allocation2 + $0x68] sm:$0xff]
  %v123 = vld [vmem:[#allocation2 + $0x70] sm:$0xff]
  %v124 = vld [vmem:[#allocation2 + $0x78] sm:$0xff]
  %v125 = vpack.c.bf16 %v94, %v93
  %v126 = vpack.c.bf16 %v96, %v95
  %v127 = vpack.c.bf16 %v98, %v97
  %v128 = vpack.c.bf16 %v100, %v99
  %v129 = vpack.c.bf16 %v102, %v101
  %v130 = vpack.c.bf16 %v104, %v103
  %v131 = vpack.c.bf16 %v106, %v105
  %v132 = vpack.c.bf16 %v108, %v107
  %v133 = vld [vmem:[%s1] sm:$0xf]
  %v134 = vld [vmem:[%s1 + $0x4] sm:$0xf]
  %v135 = vld [vmem:[%s1 + $0x8] sm:$0xf]
  %v136 = vld [vmem:[%s1 + $0xc] sm:$0xf]
  %v137 = vld [vmem:[%s1 + $0x10] sm:$0xf]
  %v138 = vld [vmem:[%s1 + $0x14] sm:$0xf]
  %v139 = vld [vmem:[%s1 + $0x18] sm:$0xf]
  %v140 = vld [vmem:[%s1 + $0x1c] sm:$0xf]
  %v141 = vld [vmem:[%s1 + $0x20] sm:$0xf]
  %v142 = vld [vmem:[%s1 + $0x24] sm:$0xf]
  %v143 = vld [vmem:[%s1 + $0x28] sm:$0xf]
  %v144 = vld [vmem:[%s1 + $0x2c] sm:$0xf]
  %v145 = vld [vmem:[%s1 + $0x30] sm:$0xf]
  %v146 = vld [vmem:[%s1 + $0x34] sm:$0xf]
  %v147 = vld [vmem:[%s1 + $0x38] sm:$0xf]
  %v148 = vld [vmem:[%s1 + $0x3c] sm:$0xf]
  %v165 = vunpack.c.l.b16 %v133
  %v166 = vunpack.c.l.b16 %v134
  %v167 = vunpack.c.l.b16 %v135
  %v168 = vunpack.c.l.b16 %v136
  %v169 = vunpack.c.l.b16 %v137
  %v170 = vunpack.c.l.b16 %v138
  %v171 = vunpack.c.l.b16 %v139
  %v172 = vunpack.c.l.b16 %v140
  %v173 = vunpack.c.l.b16 %v141
  %v174 = vunpack.c.l.b16 %v142
  %v175 = vunpack.c.l.b16 %v143
  %v176 = vunpack.c.l.b16 %v144
  %v177 = vunpack.c.l.b16 %v145
  %v178 = vunpack.c.l.b16 %v146
  %v179 = vunpack.c.l.b16 %v147
  %v180 = vunpack.c.l.b16 %v148
  %v181 = vpack.c.b16 %v166, %v165
  %v182 = vpack.c.b16 %v168, %v167
  %v183 = vpack.c.b16 %v170, %v169
  %v184 = vpack.c.b16 %v172, %v171
  %v185 = vpack.c.b16 %v174, %v173
  %v186 = vpack.c.b16 %v176, %v175
  %v187 = vpack.c.b16 %v178, %v177
  %v188 = vpack.c.b16 %v180, %v179
  %197 = vmatpush.bf16.msra.mxu0 %v188
  %198 = vmatpush.bf16.msra.mxu0 %v187
  %199 = vmatpush.bf16.msra.mxu0 %v186
  %200 = vmatpush.bf16.msra.mxu0 %v185
  %201 = vmatpush.bf16.msra.mxu0 %v184
  %202 = vmatpush.bf16.msra.mxu0 %v183
  %203 = vmatpush.bf16.msra.mxu0 %v182
  %204 = vmatpush.bf16.msra.mxu0 %v181
  %205 = vmatmul.bf16.gmra.mxu0 %v125
  %v206 = vpop.f32.mrf.mxu0
  %v207 = vadd.f32 0.0, %v206
  %v208 = vpop.f32.mrf.mxu0
  %v209 = vadd.f32 0.0, %v208
  %210 = vmatmul.bf16.gmra.mxu0 %v126
  %v211 = vpop.f32.mrf.mxu0
  %v212 = vadd.f32 0.0, %v211
  %v213 = vpop.f32.mrf.mxu0
  %v214 = vadd.f32 0.0, %v213
  %215 = vmatmul.bf16.gmra.mxu0 %v127
  %v216 = vpop.f32.mrf.mxu0
  %v217 = vadd.f32 0.0, %v216
  %v218 = vpop.f32.mrf.mxu0
  %v219 = vadd.f32 0.0, %v218
  %220 = vmatmul.bf16.gmra.mxu0 %v128
  %v221 = vpop.f32.mrf.mxu0
  %v222 = vadd.f32 0.0, %v221
  %v223 = vpop.f32.mrf.mxu0
  %v224 = vadd.f32 0.0, %v223
  %225 = vmatmul.bf16.gmra.mxu0 %v129
  %v226 = vpop.f32.mrf.mxu0
  %v227 = vadd.f32 0.0, %v226
  %v228 = vpop.f32.mrf.mxu0
  %v229 = vadd.f32 0.0, %v228
  %230 = vmatmul.bf16.gmra.mxu0 %v130
  %v231 = vpop.f32.mrf.mxu0
  %v232 = vadd.f32 0.0, %v231
  %v233 = vpop.f32.mrf.mxu0
  %v234 = vadd.f32 0.0, %v233
  %235 = vmatmul.bf16.gmra.mxu0 %v131
  %v236 = vpop.f32.mrf.mxu0
  %v237 = vadd.f32 0.0, %v236
  %v238 = vpop.f32.mrf.mxu0
  %v239 = vadd.f32 0.0, %v238
  %240 = vmatmul.bf16.gmra.mxu0 %v132
  %v241 = vpop.f32.mrf.mxu0
  %v242 = vadd.f32 0.0, %v241
  %v243 = vpop.f32.mrf.mxu0
  %v244 = vadd.f32 0.0, %v243
  %245 = vdwg.mxu0
  %v246 = vadd.f32 %v109, %v207
  %v247 = vadd.f32 %v110, %v209
  %v248 = vadd.f32 %v111, %v212
  %v249 = vadd.f32 %v112, %v214
  %v250 = vadd.f32 %v113, %v217
  %v251 = vadd.f32 %v114, %v219
  %v252 = vadd.f32 %v115, %v222
  %v253 = vadd.f32 %v116, %v224
  %v254 = vadd.f32 %v117, %v227
  %v255 = vadd.f32 %v118, %v229
  %v256 = vadd.f32 %v119, %v232
  %v257 = vadd.f32 %v120, %v234
  %v258 = vadd.f32 %v121, %v237
  %v259 = vadd.f32 %v122, %v239
  %v260 = vadd.f32 %v123, %v242
  %v261 = vadd.f32 %v124, %v244
  %262 = vst [vmem:[#allocation2] sm:$0xff] %v246
  %263 = vst [vmem:[#allocation2 + $0x8] sm:$0xff] %v247
  %264 = vst [vmem:[#allocation2 + $0x10] sm:$0xff] %v248
  %265 = vst [vmem:[#allocation2 + $0x18] sm:$0xff] %v249
  %266 = vst [vmem:[#allocation2 + $0x20] sm:$0xff] %v250
  %267 = vst [vmem:[#allocation2 + $0x28] sm:$0xff] %v251
  %268 = vst [vmem:[#allocation2 + $0x30] sm:$0xff] %v252
  %269 = vst [vmem:[#allocation2 + $0x38] sm:$0xff] %v253
  %270 = vst [vmem:[#allocation2 + $0x40] sm:$0xff] %v254
  %271 = vst [vmem:[#allocation2 + $0x48] sm:$0xff] %v255
  %272 = vst [vmem:[#allocation2 + $0x50] sm:$0xff] %v256
  %273 = vst [vmem:[#allocation2 + $0x58] sm:$0xff] %v257
  %274 = vst [vmem:[#allocation2 + $0x60] sm:$0xff] %v258
  %275 = vst [vmem:[#allocation2 + $0x68] sm:$0xff] %v259
  %276 = vst [vmem:[#allocation2 + $0x70] sm:$0xff] %v260
  %277 = vst [vmem:[#allocation2 + $0x78] sm:$0xff] %v261
  // Predicated region
  $region22: #{timm_model_forward.26} parent=0 // pred_check
    %p278 = pneg %p17
  $region23: #{timm_model_forward.26} parent=0 // pred_check_branch
    %280 = sbr.rel (%p278) target = $region25
  $region24: #{timm_model_forward.26} parent=0 // pred_region
    %v281 = vld [vmem:[#allocation2] sm:$0xff]
    %v282 = vld [vmem:[#allocation2 + $0x8] sm:$0xff]
    %v283 = vld [vmem:[#allocation2 + $0x10] sm:$0xff]
    %v284 = vld [vmem:[#allocation2 + $0x18] sm:$0xff]
    %v285 = vld [vmem:[#allocation2 + $0x20] sm:$0xff]
    %v286 = vld [vmem:[#allocation2 + $0x28] sm:$0xff]
    %v287 = vld [vmem:[#allocation2 + $0x30] sm:$0xff]
    %v288 = vld [vmem:[#allocation2 + $0x38] sm:$0xff]
    %v289 = vld [vmem:[#allocation2 + $0x40] sm:$0xff]
    %v290 = vld [vmem:[#allocation2 + $0x48] sm:$0xff]
    %v291 = vld [vmem:[#allocation2 + $0x50] sm:$0xff]
    %v292 = vld [vmem:[#allocation2 + $0x58] sm:$0xff]
    %v293 = vld [vmem:[#allocation2 + $0x60] sm:$0xff]
    %v294 = vld [vmem:[#allocation2 + $0x68] sm:$0xff]
    %v295 = vld [vmem:[#allocation2 + $0x70] sm:$0xff]
    %v296 = vld [vmem:[#allocation2 + $0x78] sm:$0xff]
    %297 = vst [vmem:[%s4] sm:$0xff] %v281
    %298 = vst [vmem:[%s4 + $0x8] sm:$0xff] %v282
    %299 = vst [vmem:[%s4 + $0x10] sm:$0xff] %v283
    %300 = vst [vmem:[%s4 + $0x18] sm:$0xff] %v284
    %301 = vst [vmem:[%s4 + $0x20] sm:$0xff] %v285
    %302 = vst [vmem:[%s4 + $0x28] sm:$0xff] %v286
    %303 = vst [vmem:[%s4 + $0x30] sm:$0xff] %v287
    %304 = vst [vmem:[%s4 + $0x38] sm:$0xff] %v288
    %305 = vst [vmem:[%s4 + $0x40] sm:$0xff] %v289
    %306 = vst [vmem:[%s4 + $0x48] sm:$0xff] %v290
    %307 = vst [vmem:[%s4 + $0x50] sm:$0xff] %v291
    %308 = vst [vmem:[%s4 + $0x58] sm:$0xff] %v292
    %309 = vst [vmem:[%s4 + $0x60] sm:$0xff] %v293
    %310 = vst [vmem:[%s4 + $0x68] sm:$0xff] %v294
    %311 = vst [vmem:[%s4 + $0x70] sm:$0xff] %v295
    %312 = vst [vmem:[%s4 + $0x78] sm:$0xff] %v296
  $region25: #{timm_model_forward.26} parent=0 // pred_fallthru
    _
  // Predicated region
  $region26: #{timm_model_forward.26} parent=0 // pred_check
    _
  $region27: #{timm_model_forward.26} parent=0 // pred_check_branch
    %314 = sbr.rel (0) target = $region29
  $region28: #{timm_model_forward.26} parent=0 // pred_region
    _
  $region29: #{timm_model_forward.26} parent=0 // pred_fallthru
    _
  // Predicated region
  $region30: #{timm_model_forward.26} parent=0 // pred_check
    _
  $region31: #{timm_model_forward.26} parent=0 // pred_check_branch
    %316 = sbr.rel (0) target = $region33
  $region32: #{timm_model_forward.26} parent=0 // pred_region
    _
  $region33: #{timm_model_forward.26} parent=0 // pred_fallthru
    _

// kernel: timm_model_forward.27
$region0: #{timm_model_forward.27}
  #allocation0 [shape = 'u32[]', space=smem, size = 0x4, offset = 0x4, fixed_abs, tag = 'smem constant byte address 0x4 - core index']
  #allocation1 [shape = 'u32[72,128]{1,0:T(1,128)}', space=vmem, size = 0x9000, scoped, tag = 'internal scratch']
  #allocation2 [shape = 'f32[32,128]{1,0:T(8,128)}', space=vmem, size = 0x4000, scoped, tag = 'scratch operand']
  %s0 = inlined_call_operand.vmem [shape: f32[32,128], index: 0, kind: input, shape index: {}]
  %s1 = inlined_call_operand.vmem [shape: bf16[128,128], index: 1, kind: input, shape index: {}]
  %s2 = inlined_call_operand.vmem [shape: f32[1,128], index: 2, kind: input, shape index: {}]
  %s3 = inlined_call_operand.vmem [shape: f32[1,128], index: 3, kind: input, shape index: {}]
  %s4 = inlined_call_operand.vmem [shape: f32[1,128], index: 4, kind: input, shape index: {}]
  %s5 = inlined_call_operand.vmem [shape: f32[1,128], index: 5, kind: input, shape index: {}]
  %s6 = inlined_call_operand.vmem [shape: f32[32,128], index: 6, kind: output, shape index: {}]
  %s7 = sld [smem:[#allocation0]]
  $region42: #{timm_model_forward.27} parent=0
    _
  %s9 = ssub.s32 1, %s7
  %s10 = scalar_select 0, %s9, %s7
  // Predicated region
  $region2: #{timm_model_forward.27} parent=0 // pred_check
    _
  $region3: #{timm_model_forward.27} parent=0 // pred_check_branch
    %12 = sbr.rel (0) target = $region5
  $region4: #{timm_model_forward.27} parent=0 // pred_region
    _
  $region5: #{timm_model_forward.27} parent=0 // pred_fallthru
    _
  // Predicated region
  $region6: #{timm_model_forward.27} parent=0 // pred_check
    _
  $region7: #{timm_model_forward.27} parent=0 // pred_check_branch
    %14 = sbr.rel (0) target = $region9
  $region8: #{timm_model_forward.27} parent=0 // pred_region
    _
  $region9: #{timm_model_forward.27} parent=0 // pred_fallthru
    _
  // Predicated region
  $region10: #{timm_model_forward.27} parent=0 // pred_check
    _
  $region11: #{timm_model_forward.27} parent=0 // pred_check_branch
    %16 = sbr.rel (0) target = $region13
  $region12: #{timm_model_forward.27} parent=0 // pred_region
    _
  $region13: #{timm_model_forward.27} parent=0 // pred_fallthru
    _
  // Predicated region
  $region14: #{timm_model_forward.27} parent=0 // pred_check
    _
  $region15: #{timm_model_forward.27} parent=0 // pred_check_branch
    %18 = sbr.rel (0) target = $region17
  $region16: #{timm_model_forward.27} parent=0 // pred_region
    _
  $region17: #{timm_model_forward.27} parent=0 // pred_fallthru
    _
  // Predicated region
  $region18: #{timm_model_forward.27} parent=0 // pred_check
    _
  $region19: #{timm_model_forward.27} parent=0 // pred_check_branch
    %20 = sbr.rel (0) target = $region21
  $region20: #{timm_model_forward.27} parent=0 // pred_region
    _
  $region21: #{timm_model_forward.27} parent=0 // pred_fallthru
    _
  // Predicated region
  $region22: #{timm_model_forward.27} parent=0 // pred_check
    _
  $region23: #{timm_model_forward.27} parent=0 // pred_check_branch
    %22 = sbr.rel (0) target = $region25
  $region24: #{timm_model_forward.27} parent=0 // pred_region
    _
  $region25: #{timm_model_forward.27} parent=0 // pred_fallthru
    _
  %p23 = scmp.eq.s32.totalorder 0, 0
  // Predicated region
  $region26: #{timm_model_forward.27} parent=0 // pred_check
    %p24 = pneg %p23
  $region27: #{timm_model_forward.27} parent=0 // pred_check_branch
    %26 = sbr.rel (%p24) target = $region29
  $region28: #{timm_model_forward.27} parent=0 // pred_region
    %27 = vst [vmem:[#allocation2] sm:$0xff] 0.0
    %28 = vst [vmem:[#allocation2 + $0x8] sm:$0xff] 0.0
    %29 = vst [vmem:[#allocation2 + $0x10] sm:$0xff] 0.0
    %30 = vst [vmem:[#allocation2 + $0x18] sm:$0xff] 0.0
  $region29: #{timm_model_forward.27} parent=0 // pred_fallthru
    _
  %v31 = vld [vmem:[%s0] sm:$0xff]
  %v32 = vld [vmem:[%s0 + $0x8] sm:$0xff]
  %v33 = vld [vmem:[%s0 + $0x10] sm:$0xff]
  %v34 = vld [vmem:[%s0 + $0x18] sm:$0xff]
  %v35 = vld [vmem:[%s2] sm:$0x1]
  %v37 = vperm.slane %v35, 0
  %v39 = vmul.f32 %v31, %v37
  %v40 = vmul.f32 %v32, %v37
  %v41 = vmul.f32 %v33, %v37
  %v42 = vmul.f32 %v34, %v37
  %v43 = vld [vmem:[%s3] sm:$0x1]
  %v45 = vperm.slane %v43, 0
  %v47 = vadd.f32 %v39, %v45
  %v48 = vadd.f32 %v40, %v45
  %v49 = vadd.f32 %v41, %v45
  %v50 = vadd.f32 %v42, %v45
  %v51 = vmax.f32 %v47, 0.0
  %v52 = vmax.f32 %v48, 0.0
  %v53 = vmax.f32 %v49, 0.0
  %v54 = vmax.f32 %v50, 0.0
  %v55 = vld [vmem:[#allocation2] sm:$0xff]
  %v56 = vld [vmem:[#allocation2 + $0x8] sm:$0xff]
  %v57 = vld [vmem:[#allocation2 + $0x10] sm:$0xff]
  %v58 = vld [vmem:[#allocation2 + $0x18] sm:$0xff]
  %v59 = vpack.c.bf16 %v52, %v51
  %v60 = vpack.c.bf16 %v54, %v53
  %v61 = vld [vmem:[%s1] sm:$0xf]
  %v62 = vld [vmem:[%s1 + $0x4] sm:$0xf]
  %v63 = vld [vmem:[%s1 + $0x8] sm:$0xf]
  %v64 = vld [vmem:[%s1 + $0xc] sm:$0xf]
  %v65 = vld [vmem:[%s1 + $0x10] sm:$0xf]
  %v66 = vld [vmem:[%s1 + $0x14] sm:$0xf]
  %v67 = vld [vmem:[%s1 + $0x18] sm:$0xf]
  %v68 = vld [vmem:[%s1 + $0x1c] sm:$0xf]
  %v69 = vld [vmem:[%s1 + $0x20] sm:$0xf]
  %v70 = vld [vmem:[%s1 + $0x24] sm:$0xf]
  %v71 = vld [vmem:[%s1 + $0x28] sm:$0xf]
  %v72 = vld [vmem:[%s1 + $0x2c] sm:$0xf]
  %v73 = vld [vmem:[%s1 + $0x30] sm:$0xf]
  %v74 = vld [vmem:[%s1 + $0x34] sm:$0xf]
  %v75 = vld [vmem:[%s1 + $0x38] sm:$0xf]
  %v76 = vld [vmem:[%s1 + $0x3c] sm:$0xf]
  %v93 = vunpack.c.l.b16 %v61
  %v94 = vunpack.c.l.b16 %v62
  %v95 = vunpack.c.l.b16 %v63
  %v96 = vunpack.c.l.b16 %v64
  %v97 = vunpack.c.l.b16 %v65
  %v98 = vunpack.c.l.b16 %v66
  %v99 = vunpack.c.l.b16 %v67
  %v100 = vunpack.c.l.b16 %v68
  %v101 = vunpack.c.l.b16 %v69
  %v102 = vunpack.c.l.b16 %v70
  %v103 = vunpack.c.l.b16 %v71
  %v104 = vunpack.c.l.b16 %v72
  %v105 = vunpack.c.l.b16 %v73
  %v106 = vunpack.c.l.b16 %v74
  %v107 = vunpack.c.l.b16 %v75
  %v108 = vunpack.c.l.b16 %v76
  %v109 = vpack.c.b16 %v94, %v93
  %v110 = vpack.c.b16 %v96, %v95
  %v111 = vpack.c.b16 %v98, %v97
  %v112 = vpack.c.b16 %v100, %v99
  %v113 = vpack.c.b16 %v102, %v101
  %v114 = vpack.c.b16 %v104, %v103
  %v115 = vpack.c.b16 %v106, %v105
  %v116 = vpack.c.b16 %v108, %v107
  %125 = vmatpush.bf16.msra.mxu0 %v116
  %126 = vmatpush.bf16.msra.mxu0 %v115
  %127 = vmatpush.bf16.msra.mxu0 %v114
  %128 = vmatpush.bf16.msra.mxu0 %v113
  %129 = vmatpush.bf16.msra.mxu0 %v112
  %130 = vmatpush.bf16.msra.mxu0 %v111
  %131 = vmatpush.bf16.msra.mxu0 %v110
  %132 = vmatpush.bf16.msra.mxu0 %v109
  %133 = vmatmul.bf16.gmra.mxu0 %v59
  %v134 = vpop.f32.mrf.mxu0
  %v135 = vadd.f32 0.0, %v134
  %v136 = vpop.f32.mrf.mxu0
  %v137 = vadd.f32 0.0, %v136
  %138 = vmatmul.bf16.gmra.mxu0 %v60
  %v139 = vpop.f32.mrf.mxu0
  %v140 = vadd.f32 0.0, %v139
  %v141 = vpop.f32.mrf.mxu0
  %v142 = vadd.f32 0.0, %v141
  %143 = vdwg.mxu0
  %v144 = vadd.f32 %v55, %v135
  %v145 = vadd.f32 %v56, %v137
  %v146 = vadd.f32 %v57, %v140
  %v147 = vadd.f32 %v58, %v142
  %148 = vst [vmem:[#allocation2] sm:$0xff] %v144
  %149 = vst [vmem:[#allocation2 + $0x8] sm:$0xff] %v145
  %150 = vst [vmem:[#allocation2 + $0x10] sm:$0xff] %v146
  %151 = vst [vmem:[#allocation2 + $0x18] sm:$0xff] %v147
  // Predicated region
  $region30: #{timm_model_forward.27} parent=0 // pred_check
    %p152 = pneg %p23
  $region31: #{timm_model_forward.27} parent=0 // pred_check_branch
    %154 = sbr.rel (%p152) target = $region33
  $region32: #{timm_model_forward.27} parent=0 // pred_region
    %v155 = vld [vmem:[#allocation2] sm:$0xff]
    %v156 = vld [vmem:[#allocation2 + $0x8] sm:$0xff]
    %v157 = vld [vmem:[#allocation2 + $0x10] sm:$0xff]
    %v158 = vld [vmem:[#allocation2 + $0x18] sm:$0xff]
    %v159 = vld [vmem:[%s4] sm:$0x1]
    %v161 = vperm.slane %v159, 0
    %v163 = vmul.f32 %v155, %v161
    %v164 = vmul.f32 %v156, %v161
    %v165 = vmul.f32 %v157, %v161
    %v166 = vmul.f32 %v158, %v161
    %v167 = vld [vmem:[%s5] sm:$0x1]
    %v169 = vperm.slane %v167, 0
    %v171 = vadd.f32 %v163, %v169
    %v172 = vadd.f32 %v164, %v169
    %v173 = vadd.f32 %v165, %v169
    %v174 = vadd.f32 %v166, %v169
    %v175 = vmax.f32 %v171, 0.0
    %v176 = vmax.f32 %v172, 0.0
    %v177 = vmax.f32 %v173, 0.0
    %v178 = vmax.f32 %v174, 0.0
    %179 = vst [vmem:[%s6] sm:$0xff] %v175
    %180 = vst [vmem:[%s6 + $0x8] sm:$0xff] %v176
    %181 = vst [vmem:[%s6 + $0x10] sm:$0xff] %v177
    %182 = vst [vmem:[%s6 + $0x18] sm:$0xff] %v178
  $region33: #{timm_model_forward.27} parent=0 // pred_fallthru
    _
  // Predicated region
  $region34: #{timm_model_forward.27} parent=0 // pred_check
    _
  $region35: #{timm_model_forward.27} parent=0 // pred_check_branch
    %184 = sbr.rel (0) target = $region37
  $region36: #{timm_model_forward.27} parent=0 // pred_region
    _
  $region37: #{timm_model_forward.27} parent=0 // pred_fallthru
    _
  // Predicated region
  $region38: #{timm_model_forward.27} parent=0 // pred_check
    _
  $region39: #{timm_model_forward.27} parent=0 // pred_check_branch
    %186 = sbr.rel (0) target = $region41
  $region40: #{timm_model_forward.27} parent=0 // pred_region
    _
  $region41: #{timm_model_forward.27} parent=0 // pred_fallthru
    _

// kernel: timm_model_forward.28
$region0: #{timm_model_forward.28}
  #allocation0 [shape = 'u32[]', space=smem, size = 0x4, offset = 0x4, fixed_abs, tag = 'smem constant byte address 0x4 - core index']
  #allocation1 [shape = 'u32[72,128]{1,0:T(1,128)}', space=vmem, size = 0x9000, scoped, tag = 'internal scratch']
  #allocation2 [shape = 'f32[32,128]{1,0:T(8,128)}', space=vmem, size = 0x4000, scoped, tag = 'scratch operand']
  %s0 = inlined_call_operand.vmem [shape: f32[32,384], index: 0, kind: input, shape index: {}]
  %s1 = inlined_call_operand.vmem [shape: bf16[384,128], index: 1, kind: input, shape index: {}]
  %s2 = inlined_call_operand.vmem [shape: f32[32,128], index: 2, kind: output, shape index: {}]
  %s3 = sld [smem:[#allocation0]]
  $region87: #{timm_model_forward.28} parent=0
    _
  %s5 = ssub.s32 1, %s3
  %s6 = scalar_select 0, %s5, %s3
  $region1: #{timm_model_forward.28} parent=0
    #allocation3 [shape = 'u8[32768]{0}', space=vmem, size = 0x8000, scoped, tag = 'input window, operand 0']
    loop: start=0, step=1, limit=5
    $region2: #{timm_model_forward.28} parent=1 // loop_pre_header
      _
    $region3: #{timm_model_forward.28} parent=1 // loop_header
      %s8 = sphi 0, %s12
      %p9 = scmp.ge.s32.totalorder %s8, 5
      %s15 = sphi 0, %s34
      %s16 = sphi 0, %s30
      %s17 = sphi 0, %s26
      %s18 = sphi 0, %s15
      %s19 = sphi 0, %s16
      %s20 = sphi 0, %s17
      %s21 = sphi 0, %s18
      %s22 = sphi 0, %s19
      %s23 = sphi 0, %s20
      %s39 = sphi 0, %s41
      %s42 = sphi 0, %s39
      %s43 = sphi 0, %s42
      %s59 = sphi 0, %s43
      %s67 = sphi 0, %s69
      %s70 = sphi 0, %s67
      %s71 = sphi 0, %s70
      %s87 = sphi 0, %s71
      %s95 = sphi 0, %s97
      %s98 = sphi 0, %s95
      %s99 = sphi 0, %s98
      %s115 = sphi 0, %s99
    $region4: #{timm_model_forward.28} parent=1 // loop_header_branch
      %11 = sbr.rel (%p9) target = $region8
    $region5: #{timm_model_forward.28} parent=1 // loop_body
      %s13 = ssub.s32 %s8, 1
      %s14 = ssub.s32 %s8, 2
      %s24 = sadd.s32 1, %s17
      %p25 = scmp.ge.s32.totalorder %s24, 3
      %s26 = scalar_select %p25, 0, %s24
      %s27 = sadd.s32 1, %s16
      %s28 = scalar_select %p25, %s27, %s16
      %p29 = scmp.ge.s32.totalorder %s28, 1
      %s30 = scalar_select %p29, 0, %s28
      %s31 = sadd.s32 1, %s15
      %s32 = scalar_select %p29, %s31, %s15
      %p33 = scmp.ge.s32.totalorder %s32, 1
      %s34 = scalar_select %p33, 0, %s32
      %s35 = ssub.s32 %s15, %s34
      %s36 = ssub.s32 %s17, %s26
      %s37 = sor.u32 %s35, %s36
      %p38 = scmp.eq.s32.totalorder %s37, 0
      %s40 = sadd.s32 %s39, 1
      %s41 = scalar_select %p38, %s39, %s40
      %p44 = pneg %p38
      %p45 = scmp.eq.s32.totalorder %s8, 2
      %p46 = por %p44, %p45
      %p47 = scmp.ne.s32.totalorder %s39, %s42
      %p48 = scmp.eq.s32.totalorder %s8, 0
      %p49 = por %p47, %p48
      %p50 = scmp.ne.s32.totalorder %s39, %s42
      %p51 = scmp.eq.s32.totalorder %s13, 2
      %p52 = por %p50, %p51
      %p53 = scmp.ne.s32.totalorder %s42, %s43
      %p54 = scmp.eq.s32.totalorder %s13, 0
      %p55 = por %p53, %p54
      %p56 = scmp.ne.s32.totalorder %s42, %s43
      %p57 = scmp.eq.s32.totalorder %s14, 2
      %p58 = por %p56, %p57
      %p60 = scmp.ne.s32.totalorder %s43, %s59
      %p61 = scmp.eq.s32.totalorder %s14, 0
      %p62 = por %p60, %p61
      %s63 = ssub.s32 %s17, %s26
      %s64 = ssub.s32 %s16, %s30
      %s65 = sor.u32 %s63, %s64
      %p66 = scmp.eq.s32.totalorder %s65, 0
      %s68 = sadd.s32 %s67, 1
      %s69 = scalar_select %p66, %s67, %s68
      %p72 = pneg %p66
      %p73 = scmp.eq.s32.totalorder %s8, 2
      %p74 = por %p72, %p73
      %p75 = scmp.ne.s32.totalorder %s67, %s70
      %p76 = scmp.eq.s32.totalorder %s8, 0
      %p77 = por %p75, %p76
      %p78 = scmp.ne.s32.totalorder %s67, %s70
      %p79 = scmp.eq.s32.totalorder %s13, 2
      %p80 = por %p78, %p79
      %p81 = scmp.ne.s32.totalorder %s70, %s71
      %p82 = scmp.eq.s32.totalorder %s13, 0
      %p83 = por %p81, %p82
      %p84 = scmp.ne.s32.totalorder %s70, %s71
      %p85 = scmp.eq.s32.totalorder %s14, 2
      %p86 = por %p84, %p85
      %p88 = scmp.ne.s32.totalorder %s71, %s87
      %p89 = scmp.eq.s32.totalorder %s14, 0
      %p90 = por %p88, %p89
      %s91 = ssub.s32 %s15, %s34
      %s92 = ssub.s32 %s16, %s30
      %s93 = sor.u32 %s91, %s92
      %p94 = scmp.eq.s32.totalorder %s93, 0
      %s96 = sadd.s32 %s95, 1
      %s97 = scalar_select %p94, %s95, %s96
      %p100 = pneg %p94
      %p101 = scmp.eq.s32.totalorder %s8, 2
      %p102 = por %p100, %p101
      %p103 = scmp.ne.s32.totalorder %s95, %s98
      %p104 = scmp.eq.s32.totalorder %s8, 0
      %p105 = por %p103, %p104
      %p106 = scmp.ne.s32.totalorder %s95, %s98
      %p107 = scmp.eq.s32.totalorder %s13, 2
      %p108 = por %p106, %p107
      %p109 = scmp.ne.s32.totalorder %s98, %s99
      %p110 = scmp.eq.s32.totalorder %s13, 0
      %p111 = por %p109, %p110
      %p112 = scmp.ne.s32.totalorder %s98, %s99
      %p113 = scmp.eq.s32.totalorder %s14, 2
      %p114 = por %p112, %p113
      %p116 = scmp.ne.s32.totalorder %s99, %s115
      %p117 = scmp.eq.s32.totalorder %s14, 0
      %p118 = por %p116, %p117
      %p119 = scmp.le.s32.totalorder 1, %s8
      %p120 = scmp.lt.s32.totalorder %s8, 4
      %p121 = pnand %p119, %p120
      %p122 = pneg %p121
      // Predicated region
      $region9: #{timm_model_forward.28} parent=5 // pred_check
        _
      $region10: #{timm_model_forward.28} parent=5 // pred_check_branch
        %124 = sbr.rel (%p121) target = $region12
      $region11: #{timm_model_forward.28} parent=5 // pred_region
        %s125 = ssub.s32 %s8, 1
      $region12: #{timm_model_forward.28} parent=5 // pred_fallthru
        _
      %p126 = scmp.lt.s32.totalorder %s8, 3
      // Predicated region
      $region13: #{timm_model_forward.28} parent=5 // pred_check
        %p127 = pneg %p126
      $region14: #{timm_model_forward.28} parent=5 // pred_check_branch
        %129 = sbr.rel (%p127) target = $region16
      $region15: #{timm_model_forward.28} parent=5 // pred_region
        // Predicated region
        $region17: #{timm_model_forward.28} parent=15 // pred_check
          %p130 = pneg %p49
        $region18: #{timm_model_forward.28} parent=15 // pred_check_branch
          %132 = sbr.rel (%p130) target = $region20
        $region19: #{timm_model_forward.28} parent=15 // pred_region
          %s133 = sand.u32 %s39, 1
          %s134 = sand.u32 %s39, 1
          %s135 = smul.addr %s134, 32
          %s136 = scalar_lea.vmem [#allocation3], %s135
          %s137 = smul.u32 4, %s15
          %s138 = smul.addr %s137, 3
          %s139 = sadd.s32 %s17, %s138
          %s140 = smul.addr %s139, 8
          %s141 = scalar_lea.vmem %s0, %s140
          // Predicated region
          $region21: #{timm_model_forward.28} parent=19 // pred_check
            _
          $region22: #{timm_model_forward.28} parent=19 // pred_check_branch
            %143 = sbr.rel (0) target = $region24
          $region23: #{timm_model_forward.28} parent=19 // pred_region
            // Predicated region
            $region25: #{timm_model_forward.28} parent=23 // pred_check
              _
            $region26: #{timm_model_forward.28} parent=23 // pred_check_branch
              %145 = sbr.rel (0) target = $region28
            $region27: #{timm_model_forward.28} parent=23 // pred_region
              // Predicated region
              $region40: #{timm_model_forward.28} parent=27 // pred_check
                _
              $region41: #{timm_model_forward.28} parent=27 // pred_check_branch
                %167 = sbr.rel (0) target = $region43
              $region42: #{timm_model_forward.28} parent=27 // pred_region
                loop: start=0, step=1, limit=1
                $region44: #{timm_model_forward.28} parent=42 // loop_pre_header
                  _
                $region45: #{timm_model_forward.28} parent=42 // loop_header
                  %s169 = sphi 0, %s173
                  %p170 = scmp.ge.s32.totalorder %s169, 1
                  %s174 = sphi %s141, %s141
                  %s175 = sphi %s136, %s136
                $region46: #{timm_model_forward.28} parent=42 // loop_header_branch
                  %172 = sbr.rel (%p170) target = $region50
                $region47: #{timm_model_forward.28} parent=42 // loop_body
                  %v176 = vld [vmem:[%s174] sm:$0xff]
                  %177 = vst [vmem:[%s175] sm:$0xff] %v176
                  %v178 = vld [vmem:[%s174 + $0x18] sm:$0xff]
                  %179 = vst [vmem:[%s175 + $0x8] sm:$0xff] %v178
                  %v180 = vld [vmem:[%s174 + $0x30] sm:$0xff]
                  %181 = vst [vmem:[%s175 + $0x10] sm:$0xff] %v180
                  %v182 = vld [vmem:[%s174 + $0x48] sm:$0xff]
                  %183 = vst [vmem:[%s175 + $0x18] sm:$0xff] %v182
                $region48: #{timm_model_forward.28} parent=42 // loop_footer
                  %s173 = sadd.s32 1, %s169
                $region49: #{timm_model_forward.28} parent=42 // loop_footer_branch
                  %168 = sbr.rel target = $region45
                $region50: #{timm_model_forward.28} parent=42 // loop_exit
                  _
              $region43: #{timm_model_forward.28} parent=27 // pred_fallthru
                _
              // Predicated region
              $region51: #{timm_model_forward.28} parent=27 // pred_check
                _
              $region52: #{timm_model_forward.28} parent=27 // pred_check_branch
                %185 = sbr.rel target = $region54
              $region53: #{timm_model_forward.28} parent=27 // pred_region
                _
              $region54: #{timm_model_forward.28} parent=27 // pred_fallthru
                _
            $region28: #{timm_model_forward.28} parent=23 // pred_fallthru
              _
            // Predicated region
            $region29: #{timm_model_forward.28} parent=23 // pred_check
              _
            $region30: #{timm_model_forward.28} parent=23 // pred_check_branch
              %147 = sbr.rel target = $region32
            $region31: #{timm_model_forward.28} parent=23 // pred_region
              %s149 = ssub.s32 256, 1
              loop: start=0, step=1, limit=1
              $region33: #{timm_model_forward.28} parent=31 // loop_pre_header
                _
              $region34: #{timm_model_forward.28} parent=31 // loop_header
                %s151 = sphi 0, %s155
                %p152 = scmp.ge.s32.totalorder %s151, 1
                %s156 = sphi %s141, %s141
                %s157 = sphi %s136, %s136
              $region35: #{timm_model_forward.28} parent=31 // loop_header_branch
                %154 = sbr.rel (%p152) target = $region39
              $region36: #{timm_model_forward.28} parent=31 // loop_body
                %v158 = vld [vmem:[%s156] sm:%s149]
                %159 = vst [vmem:[%s157] sm:%s149] %v158
                %v160 = vld [vmem:[%s156 + $0x18] sm:%s149]
                %161 = vst [vmem:[%s157 + $0x8] sm:%s149] %v160
                %v162 = vld [vmem:[%s156 + $0x30] sm:%s149]
                %163 = vst [vmem:[%s157 + $0x10] sm:%s149] %v162
                %v164 = vld [vmem:[%s156 + $0x48] sm:%s149]
                %165 = vst [vmem:[%s157 + $0x18] sm:%s149] %v164
              $region37: #{timm_model_forward.28} parent=31 // loop_footer
                %s155 = sadd.s32 1, %s151
              $region38: #{timm_model_forward.28} parent=31 // loop_footer_branch
                %150 = sbr.rel target = $region34
              $region39: #{timm_model_forward.28} parent=31 // loop_exit
                _
            $region32: #{timm_model_forward.28} parent=23 // pred_fallthru
              _
          $region24: #{timm_model_forward.28} parent=19 // pred_fallthru
            _
          %186 = vnop
        $region20: #{timm_model_forward.28} parent=15 // pred_fallthru
          _
        // Predicated region
        $region55: #{timm_model_forward.28} parent=15 // pred_check
          %p187 = pneg %p77
        $region56: #{timm_model_forward.28} parent=15 // pred_check_branch
          %189 = sbr.rel (%p187) target = $region58
        $region57: #{timm_model_forward.28} parent=15 // pred_region
          %s190 = smul.u32 16, %s17
          %p191 = scmp.lt.s32.totalorder %s190, 47
          %s192 = scalar_select %p191, %s190, 47
          %p193 = scmp.lt.s32.totalorder %s16, 0
          %s194 = scalar_select %p193, %s16, 0
          %s195 = sadd.s32 %s194, %s192
          %s196 = smul.addr %s195, 4
          %s197 = scalar_lea.vmem %s1, %s196
          %s198 = smul.u32 16, %s17
        $region58: #{timm_model_forward.28} parent=15 // pred_fallthru
          _
      $region16: #{timm_model_forward.28} parent=5 // pred_fallthru
        _
      %p199 = scmp.le.s32.totalorder 1, %s8
      %p200 = scmp.lt.s32.totalorder %s8, 4
      %p201 = pnand %p199, %p200
      %p202 = pneg %p201
      // Predicated region
      $region59: #{timm_model_forward.28} parent=5 // pred_check
        _
      $region60: #{timm_model_forward.28} parent=5 // pred_check_branch
        %204 = sbr.rel (%p201) target = $region62
      $region61: #{timm_model_forward.28} parent=5 // pred_region
        %s205 = ssub.s32 %s8, 1
        %s206 = sand.u32 %s42, 1
        %s207 = sand.u32 %s42, 1
        %s208 = smul.addr %s207, 32
        %s209 = scalar_lea.vmem [#allocation3], %s208
        // Predicated region
        $region63: #{timm_model_forward.28} parent=61 // pred_check
          %p210 = pneg %p55
        $region64: #{timm_model_forward.28} parent=61 // pred_check_branch
          %212 = sbr.rel (%p210) target = $region66
        $region65: #{timm_model_forward.28} parent=61 // pred_region
          _
        $region66: #{timm_model_forward.28} parent=61 // pred_fallthru
          _
        %s213 = sand.u32 %s42, 1
        %s214 = sand.u32 %s42, 1
        %s215 = smul.addr %s214, 32
        %s216 = scalar_lea.vmem [#allocation3], %s215
        %p217 = pneg %p55
        %p218 = pneg %p52
        %s219 = smul.u32 16, %s20
        %p220 = scmp.lt.s32.totalorder %s219, 47
        %s221 = scalar_select %p220, %s219, 47
        %p222 = scmp.lt.s32.totalorder %s19, 0
        %s223 = scalar_select %p222, %s19, 0
        %s224 = sadd.s32 %s223, %s221
        %s225 = smul.addr %s224, 4
        %s226 = scalar_lea.vmem %s1, %s225
        %p227 = pneg %p83
        %p228 = pneg %p80
        %p229 = pneg %p111
        %p230 = pneg %p108
        %s231 = smul.u32 4, %s18
        %p232 = scmp.lt.s32.totalorder %s231, 3
        %s233 = scalar_select %p232, %s231, 3
        %p234 = scmp.lt.s32.totalorder %s19, 0
        %s235 = scalar_select %p234, %s19, 0
        %s236 = sadd.s32 %s235, %s233
        %s237 = smul.addr %s236, 8
        %s238 = scalar_lea.vmem %s2, %s237
        %s239 = smul.u32 4, %s18
        %s240 = smul.u32 16, %s20
        %p241 = scmp.lt.s32.totalorder %s240, 47
        %s242 = scalar_select %p241, %s240, 47
        %p243 = scmp.lt.s32.totalorder %s19, 0
        %s244 = scalar_select %p243, %s19, 0
        %s245 = sadd.s32 %s244, %s242
        %s246 = smul.addr %s245, 4
        %s247 = scalar_lea.vmem %s1, %s246
        %s248 = smul.u32 16, %s20
        %s249 = smul.u32 4, %s18
        %p250 = scmp.lt.s32.totalorder %s249, 3
        %s251 = scalar_select %p250, %s249, 3
        %p252 = scmp.lt.s32.totalorder %s19, 0
        %s253 = scalar_select %p252, %s19, 0
        %s254 = sadd.s32 %s253, %s251
        %s255 = smul.addr %s254, 8
        %s256 = scalar_lea.vmem %s2, %s255
        %s257 = smul.u32 4, %s18
        %p258 = scmp.eq.s32.totalorder %s20, 0
        // Predicated region
        $region67: #{timm_model_forward.28} parent=61 // pred_check
          %p259 = pneg %p258
        $region68: #{timm_model_forward.28} parent=61 // pred_check_branch
          %261 = sbr.rel (%p259) target = $region70
        $region69: #{timm_model_forward.28} parent=61 // pred_region
          %262 = vst [vmem:[#allocation2] sm:$0xff] 0.0
          %263 = vst [vmem:[#allocation2 + $0x8] sm:$0xff] 0.0
          %264 = vst [vmem:[#allocation2 + $0x10] sm:$0xff] 0.0
          %265 = vst [vmem:[#allocation2 + $0x18] sm:$0xff] 0.0
        $region70: #{timm_model_forward.28} parent=61 // pred_fallthru
          _
        %v266 = vld [vmem:[%s209] sm:$0xff]
        %v267 = vld [vmem:[%s209 + $0x8] sm:$0xff]
        %v268 = vld [vmem:[%s209 + $0x10] sm:$0xff]
        %v269 = vld [vmem:[%s209 + $0x18] sm:$0xff]
        %v270 = vld [vmem:[#allocation2] sm:$0xff]
        %v271 = vld [vmem:[#allocation2 + $0x8] sm:$0xff]
        %v272 = vld [vmem:[#allocation2 + $0x10] sm:$0xff]
        %v273 = vld [vmem:[#allocation2 + $0x18] sm:$0xff]
        %v274 = vpack.c.bf16 %v267, %v266
        %v275 = vpack.c.bf16 %v269, %v268
        %v276 = vld [vmem:[%s247] sm:$0xf]
        %v277 = vld [vmem:[%s247 + $0x4] sm:$0xf]
        %v278 = vld [vmem:[%s247 + $0x8] sm:$0xf]
        %v279 = vld [vmem:[%s247 + $0xc] sm:$0xf]
        %v280 = vld [vmem:[%s247 + $0x10] sm:$0xf]
        %v281 = vld [vmem:[%s247 + $0x14] sm:$0xf]
        %v282 = vld [vmem:[%s247 + $0x18] sm:$0xf]
        %v283 = vld [vmem:[%s247 + $0x1c] sm:$0xf]
        %v284 = vld [vmem:[%s247 + $0x20] sm:$0xf]
        %v285 = vld [vmem:[%s247 + $0x24] sm:$0xf]
        %v286 = vld [vmem:[%s247 + $0x28] sm:$0xf]
        %v287 = vld [vmem:[%s247 + $0x2c] sm:$0xf]
        %v288 = vld [vmem:[%s247 + $0x30] sm:$0xf]
        %v289 = vld [vmem:[%s247 + $0x34] sm:$0xf]
        %v290 = vld [vmem:[%s247 + $0x38] sm:$0xf]
        %v291 = vld [vmem:[%s247 + $0x3c] sm:$0xf]
        %v308 = vunpack.c.l.b16 %v276
        %v309 = vunpack.c.l.b16 %v277
        %v310 = vunpack.c.l.b16 %v278
        %v311 = vunpack.c.l.b16 %v279
        %v312 = vunpack.c.l.b16 %v280
        %v313 = vunpack.c.l.b16 %v281
        %v314 = vunpack.c.l.b16 %v282
        %v315 = vunpack.c.l.b16 %v283
        %v316 = vunpack.c.l.b16 %v284
        %v317 = vunpack.c.l.b16 %v285
        %v318 = vunpack.c.l.b16 %v286
        %v319 = vunpack.c.l.b16 %v287
        %v320 = vunpack.c.l.b16 %v288
        %v321 = vunpack.c.l.b16 %v289
        %v322 = vunpack.c.l.b16 %v290
        %v323 = vunpack.c.l.b16 %v291
        %v324 = vpack.c.b16 %v309, %v308
        %v325 = vpack.c.b16 %v311, %v310
        %v326 = vpack.c.b16 %v313, %v312
        %v327 = vpack.c.b16 %v315, %v314
        %v328 = vpack.c.b16 %v317, %v316
        %v329 = vpack.c.b16 %v319, %v318
        %v330 = vpack.c.b16 %v321, %v320
        %v331 = vpack.c.b16 %v323, %v322
        %340 = vmatpush.bf16.msra.mxu0 %v331
        %341 = vmatpush.bf16.msra.mxu0 %v330
        %342 = vmatpush.bf16.msra.mxu0 %v329
        %343 = vmatpush.bf16.msra.mxu0 %v328
        %344 = vmatpush.bf16.msra.mxu0 %v327
        %345 = vmatpush.bf16.msra.mxu0 %v326
        %346 = vmatpush.bf16.msra.mxu0 %v325
        %347 = vmatpush.bf16.msra.mxu0 %v324
        %348 = vmatmul.bf16.gmra.mxu0 %v274
        %v349 = vpop.f32.mrf.mxu0
        %v350 = vadd.f32 0.0, %v349
        %v351 = vpop.f32.mrf.mxu0
        %v352 = vadd.f32 0.0, %v351
        %353 = vmatmul.bf16.gmra.mxu0 %v275
        %v354 = vpop.f32.mrf.mxu0
        %v355 = vadd.f32 0.0, %v354
        %v356 = vpop.f32.mrf.mxu0
        %v357 = vadd.f32 0.0, %v356
        %358 = vdwg.mxu0
        %v359 = vadd.f32 %v270, %v350
        %v360 = vadd.f32 %v271, %v352
        %v361 = vadd.f32 %v272, %v355
        %v362 = vadd.f32 %v273, %v357
        %363 = vst [vmem:[#allocation2] sm:$0xff] %v359
        %364 = vst [vmem:[#allocation2 + $0x8] sm:$0xff] %v360
        %365 = vst [vmem:[#allocation2 + $0x10] sm:$0xff] %v361
        %366 = vst [vmem:[#allocation2 + $0x18] sm:$0xff] %v362
        %p367 = scmp.eq.s32.totalorder %s20, 2
        // Predicated region
        $region71: #{timm_model_forward.28} parent=61 // pred_check
          %p368 = pneg %p367
        $region72: #{timm_model_forward.28} parent=61 // pred_check_branch
          %370 = sbr.rel (%p368) target = $region74
        $region73: #{timm_model_forward.28} parent=61 // pred_region
          %v371 = vld [vmem:[#allocation2] sm:$0xff]
          %v372 = vld [vmem:[#allocation2 + $0x8] sm:$0xff]
          %v373 = vld [vmem:[#allocation2 + $0x10] sm:$0xff]
          %v374 = vld [vmem:[#allocation2 + $0x18] sm:$0xff]
          %375 = vst [vmem:[%s256] sm:$0xff] %v371
          %376 = vst [vmem:[%s256 + $0x8] sm:$0xff] %v372
          %377 = vst [vmem:[%s256 + $0x10] sm:$0xff] %v373
          %378 = vst [vmem:[%s256 + $0x18] sm:$0xff] %v374
        $region74: #{timm_model_forward.28} parent=61 // pred_fallthru
          _
        %s379 = smul.u32 4, %s18
        %p380 = scmp.lt.s32.totalorder %s379, 3
        %s381 = scalar_select %p380, %s379, 3
        %p382 = scmp.lt.s32.totalorder %s19, 0
        %s383 = scalar_select %p382, %s19, 0
        %s384 = sadd.s32 %s383, %s381
        %s385 = smul.addr %s384, 8
        %s386 = scalar_lea.vmem %s2, %s385
        // Predicated region
        $region75: #{timm_model_forward.28} parent=61 // pred_check
          %p387 = pneg %p108
        $region76: #{timm_model_forward.28} parent=61 // pred_check_branch
          %389 = sbr.rel (%p387) target = $region78
        $region77: #{timm_model_forward.28} parent=61 // pred_region
          %s390 = smul.u32 4, %s18
        $region78: #{timm_model_forward.28} parent=61 // pred_fallthru
          _
        // Predicated region
        $region79: #{timm_model_forward.28} parent=61 // pred_check
          %p391 = pneg %p108
        $region80: #{timm_model_forward.28} parent=61 // pred_check_branch
          %393 = sbr.rel (%p391) target = $region82
        $region81: #{timm_model_forward.28} parent=61 // pred_region
          %s394 = smul.u32 4, %s18
          %p395 = scmp.lt.s32.totalorder %s394, 3
          %s396 = scalar_select %p395, %s394, 3
          %p397 = scmp.lt.s32.totalorder %s19, 0
          %s398 = scalar_select %p397, %s19, 0
          %s399 = sadd.s32 %s398, %s396
          %s400 = smul.addr %s399, 8
          %s401 = scalar_lea.vmem %s2, %s400
        $region82: #{timm_model_forward.28} parent=61 // pred_fallthru
          _
      $region62: #{timm_model_forward.28} parent=5 // pred_fallthru
        _
      %p402 = scmp.le.s32.totalorder 2, %s8
      // Predicated region
      $region83: #{timm_model_forward.28} parent=5 // pred_check
        %p403 = pneg %p402
      $region84: #{timm_model_forward.28} parent=5 // pred_check_branch
        %405 = sbr.rel (%p403) target = $region86
      $region85: #{timm_model_forward.28} parent=5 // pred_region
        %s406 = ssub.s32 %s8, 2
      $region86: #{timm_model_forward.28} parent=5 // pred_fallthru
        _
    $region6: #{timm_model_forward.28} parent=1 // loop_footer
      %s12 = sadd.s32 1, %s8
    $region7: #{timm_model_forward.28} parent=1 // loop_footer_branch
      %7 = sbr.rel target = $region3
    $region8: #{timm_model_forward.28} parent=1 // loop_exit
      _

// kernel: timm_model_forward.31
$region0: #{timm_model_forward.31}
  #allocation0 [shape = 'u32[]', space=smem, size = 0x4, offset = 0x4, fixed_abs, tag = 'smem constant byte address 0x4 - core index']
  #allocation1 [shape = 'u32[72,128]{1,0:T(1,128)}', space=vmem, size = 0x9000, scoped, tag = 'internal scratch']
  #allocation2 [shape = 'f32[32,128]{1,0:T(8,128)}', space=vmem, size = 0x4000, scoped, tag = 'scratch operand']
  %s0 = inlined_call_operand.vmem [shape: f32[32,128], index: 0, kind: input, shape index: {}]
  %s1 = inlined_call_operand.vmem [shape: bf16[128,128], index: 1, kind: input, shape index: {}]
  %s2 = inlined_call_operand.vmem [shape: f32[1,128], index: 2, kind: input, shape index: {}]
  %s3 = inlined_call_operand.vmem [shape: f32[1,128], index: 3, kind: input, shape index: {}]
  %s4 = inlined_call_operand.vmem [shape: f32[32,128], index: 4, kind: output, shape index: {}]
  %s5 = sld [smem:[#allocation0]]
  $region34: #{timm_model_forward.31} parent=0
    _
  %s7 = ssub.s32 1, %s5
  %s8 = scalar_select 0, %s7, %s5
  // Predicated region
  $region2: #{timm_model_forward.31} parent=0 // pred_check
    _
  $region3: #{timm_model_forward.31} parent=0 // pred_check_branch
    %10 = sbr.rel (0) target = $region5
  $region4: #{timm_model_forward.31} parent=0 // pred_region
    _
  $region5: #{timm_model_forward.31} parent=0 // pred_fallthru
    _
  // Predicated region
  $region6: #{timm_model_forward.31} parent=0 // pred_check
    _
  $region7: #{timm_model_forward.31} parent=0 // pred_check_branch
    %12 = sbr.rel (0) target = $region9
  $region8: #{timm_model_forward.31} parent=0 // pred_region
    _
  $region9: #{timm_model_forward.31} parent=0 // pred_fallthru
    _
  // Predicated region
  $region10: #{timm_model_forward.31} parent=0 // pred_check
    _
  $region11: #{timm_model_forward.31} parent=0 // pred_check_branch
    %14 = sbr.rel (0) target = $region13
  $region12: #{timm_model_forward.31} parent=0 // pred_region
    _
  $region13: #{timm_model_forward.31} parent=0 // pred_fallthru
    _
  // Predicated region
  $region14: #{timm_model_forward.31} parent=0 // pred_check
    _
  $region15: #{timm_model_forward.31} parent=0 // pred_check_branch
    %16 = sbr.rel (0) target = $region17
  $region16: #{timm_model_forward.31} parent=0 // pred_region
    _
  $region17: #{timm_model_forward.31} parent=0 // pred_fallthru
    _
  %p17 = scmp.eq.s32.totalorder 0, 0
  // Predicated region
  $region18: #{timm_model_forward.31} parent=0 // pred_check
    %p18 = pneg %p17
  $region19: #{timm_model_forward.31} parent=0 // pred_check_branch
    %20 = sbr.rel (%p18) target = $region21
  $region20: #{timm_model_forward.31} parent=0 // pred_region
    %21 = vst [vmem:[#allocation2] sm:$0xff] 0.0
    %22 = vst [vmem:[#allocation2 + $0x8] sm:$0xff] 0.0
    %23 = vst [vmem:[#allocation2 + $0x10] sm:$0xff] 0.0
    %24 = vst [vmem:[#allocation2 + $0x18] sm:$0xff] 0.0
  $region21: #{timm_model_forward.31} parent=0 // pred_fallthru
    _
  %v25 = vld [vmem:[%s0] sm:$0xff]
  %v26 = vld [vmem:[%s0 + $0x8] sm:$0xff]
  %v27 = vld [vmem:[%s0 + $0x10] sm:$0xff]
  %v28 = vld [vmem:[%s0 + $0x18] sm:$0xff]
  %v29 = vld [vmem:[%s2] sm:$0x1]
  %v31 = vperm.slane %v29, 0
  %v33 = vmul.f32 %v25, %v31
  %v34 = vmul.f32 %v26, %v31
  %v35 = vmul.f32 %v27, %v31
  %v36 = vmul.f32 %v28, %v31
  %v37 = vld [vmem:[%s3] sm:$0x1]
  %v39 = vperm.slane %v37, 0
  %v41 = vadd.f32 %v33, %v39
  %v42 = vadd.f32 %v34, %v39
  %v43 = vadd.f32 %v35, %v39
  %v44 = vadd.f32 %v36, %v39
  %v45 = vmax.f32 %v41, 0.0
  %v46 = vmax.f32 %v42, 0.0
  %v47 = vmax.f32 %v43, 0.0
  %v48 = vmax.f32 %v44, 0.0
  %v49 = vld [vmem:[#allocation2] sm:$0xff]
  %v50 = vld [vmem:[#allocation2 + $0x8] sm:$0xff]
  %v51 = vld [vmem:[#allocation2 + $0x10] sm:$0xff]
  %v52 = vld [vmem:[#allocation2 + $0x18] sm:$0xff]
  %v53 = vpack.c.bf16 %v46, %v45
  %v54 = vpack.c.bf16 %v48, %v47
  %v55 = vld [vmem:[%s1] sm:$0xf]
  %v56 = vld [vmem:[%s1 + $0x4] sm:$0xf]
  %v57 = vld [vmem:[%s1 + $0x8] sm:$0xf]
  %v58 = vld [vmem:[%s1 + $0xc] sm:$0xf]
  %v59 = vld [vmem:[%s1 + $0x10] sm:$0xf]
  %v60 = vld [vmem:[%s1 + $0x14] sm:$0xf]
  %v61 = vld [vmem:[%s1 + $0x18] sm:$0xf]
  %v62 = vld [vmem:[%s1 + $0x1c] sm:$0xf]
  %v63 = vld [vmem:[%s1 + $0x20] sm:$0xf]
  %v64 = vld [vmem:[%s1 + $0x24] sm:$0xf]
  %v65 = vld [vmem:[%s1 + $0x28] sm:$0xf]
  %v66 = vld [vmem:[%s1 + $0x2c] sm:$0xf]
  %v67 = vld [vmem:[%s1 + $0x30] sm:$0xf]
  %v68 = vld [vmem:[%s1 + $0x34] sm:$0xf]
  %v69 = vld [vmem:[%s1 + $0x38] sm:$0xf]
  %v70 = vld [vmem:[%s1 + $0x3c] sm:$0xf]
  %v87 = vunpack.c.l.b16 %v55
  %v88 = vunpack.c.l.b16 %v56
  %v89 = vunpack.c.l.b16 %v57
  %v90 = vunpack.c.l.b16 %v58
  %v91 = vunpack.c.l.b16 %v59
  %v92 = vunpack.c.l.b16 %v60
  %v93 = vunpack.c.l.b16 %v61
  %v94 = vunpack.c.l.b16 %v62
  %v95 = vunpack.c.l.b16 %v63
  %v96 = vunpack.c.l.b16 %v64
  %v97 = vunpack.c.l.b16 %v65
  %v98 = vunpack.c.l.b16 %v66
  %v99 = vunpack.c.l.b16 %v67
  %v100 = vunpack.c.l.b16 %v68
  %v101 = vunpack.c.l.b16 %v69
  %v102 = vunpack.c.l.b16 %v70
  %v103 = vpack.c.b16 %v88, %v87
  %v104 = vpack.c.b16 %v90, %v89
  %v105 = vpack.c.b16 %v92, %v91
  %v106 = vpack.c.b16 %v94, %v93
  %v107 = vpack.c.b16 %v96, %v95
  %v108 = vpack.c.b16 %v98, %v97
  %v109 = vpack.c.b16 %v100, %v99
  %v110 = vpack.c.b16 %v102, %v101
  %119 = vmatpush.bf16.msra.mxu0 %v110
  %120 = vmatpush.bf16.msra.mxu0 %v109
  %121 = vmatpush.bf16.msra.mxu0 %v108
  %122 = vmatpush.bf16.msra.mxu0 %v107
  %123 = vmatpush.bf16.msra.mxu0 %v106
  %124 = vmatpush.bf16.msra.mxu0 %v105
  %125 = vmatpush.bf16.msra.mxu0 %v104
  %126 = vmatpush.bf16.msra.mxu0 %v103
  %127 = vmatmul.bf16.gmra.mxu0 %v53
  %v128 = vpop.f32.mrf.mxu0
  %v129 = vadd.f32 0.0, %v128
  %v130 = vpop.f32.mrf.mxu0
  %v131 = vadd.f32 0.0, %v130
  %132 = vmatmul.bf16.gmra.mxu0 %v54
  %v133 = vpop.f32.mrf.mxu0
  %v134 = vadd.f32 0.0, %v133
  %v135 = vpop.f32.mrf.mxu0
  %v136 = vadd.f32 0.0, %v135
  %137 = vdwg.mxu0
  %v138 = vadd.f32 %v49, %v129
  %v139 = vadd.f32 %v50, %v131
  %v140 = vadd.f32 %v51, %v134
  %v141 = vadd.f32 %v52, %v136
  %142 = vst [vmem:[#allocation2] sm:$0xff] %v138
  %143 = vst [vmem:[#allocation2 + $0x8] sm:$0xff] %v139
  %144 = vst [vmem:[#allocation2 + $0x10] sm:$0xff] %v140
  %145 = vst [vmem:[#allocation2 + $0x18] sm:$0xff] %v141
  // Predicated region
  $region22: #{timm_model_forward.31} parent=0 // pred_check
    %p146 = pneg %p17
  $region23: #{timm_model_forward.31} parent=0 // pred_check_branch
    %148 = sbr.rel (%p146) target = $region25
  $region24: #{timm_model_forward.31} parent=0 // pred_region
    %v149 = vld [vmem:[#allocation2] sm:$0xff]
    %v150 = vld [vmem:[#allocation2 + $0x8] sm:$0xff]
    %v151 = vld [vmem:[#allocation2 + $0x10] sm:$0xff]
    %v152 = vld [vmem:[#allocation2 + $0x18] sm:$0xff]
    %153 = vst [vmem:[%s4] sm:$0xff] %v149
    %154 = vst [vmem:[%s4 + $0x8] sm:$0xff] %v150
    %155 = vst [vmem:[%s4 + $0x10] sm:$0xff] %v151
    %156 = vst [vmem:[%s4 + $0x18] sm:$0xff] %v152
  $region25: #{timm_model_forward.31} parent=0 // pred_fallthru
    _
  // Predicated region
  $region26: #{timm_model_forward.31} parent=0 // pred_check
    _
  $region27: #{timm_model_forward.31} parent=0 // pred_check_branch
    %158 = sbr.rel (0) target = $region29
  $region28: #{timm_model_forward.31} parent=0 // pred_region
    _
  $region29: #{timm_model_forward.31} parent=0 // pred_fallthru
    _
  // Predicated region
  $region30: #{timm_model_forward.31} parent=0 // pred_check
    _
  $region31: #{timm_model_forward.31} parent=0 // pred_check_branch
    %160 = sbr.rel (0) target = $region33
  $region32: #{timm_model_forward.31} parent=0 // pred_region
    _
  $region33: #{timm_model_forward.31} parent=0 // pred_fallthru
    _

// kernel: timm_model_forward.32
$region0: #{timm_model_forward.32}
  #allocation0 [shape = 'u32[]', space=smem, size = 0x4, offset = 0x4, fixed_abs, tag = 'smem constant byte address 0x4 - core index']
  #allocation1 [shape = 'u32[72,128]{1,0:T(1,128)}', space=vmem, size = 0x9000, scoped, tag = 'internal scratch']
  #allocation2 [shape = 'f32[8,128]{1,0:T(8,128)}', space=vmem, size = 0x1000, scoped, tag = 'scratch operand']
  %s0 = inlined_call_operand.vmem [shape: f32[8,128], index: 0, kind: input, shape index: {}]
  %s1 = inlined_call_operand.vmem [shape: bf16[128,128], index: 1, kind: input, shape index: {}]
  %s2 = inlined_call_operand.vmem [shape: f32[1,128], index: 2, kind: input, shape index: {}]
  %s3 = inlined_call_operand.vmem [shape: f32[1,128], index: 3, kind: input, shape index: {}]
  %s4 = inlined_call_operand.vmem [shape: f32[1,128], index: 4, kind: input, shape index: {}]
  %s5 = inlined_call_operand.vmem [shape: f32[1,128], index: 5, kind: input, shape index: {}]
  %s6 = inlined_call_operand.vmem [shape: f32[8,128], index: 6, kind: output, shape index: {}]
  %s7 = sld [smem:[#allocation0]]
  $region42: #{timm_model_forward.32} parent=0
    _
  %s9 = ssub.s32 1, %s7
  %s10 = scalar_select 0, %s9, %s7
  // Predicated region
  $region2: #{timm_model_forward.32} parent=0 // pred_check
    _
  $region3: #{timm_model_forward.32} parent=0 // pred_check_branch
    %12 = sbr.rel (0) target = $region5
  $region4: #{timm_model_forward.32} parent=0 // pred_region
    _
  $region5: #{timm_model_forward.32} parent=0 // pred_fallthru
    _
  // Predicated region
  $region6: #{timm_model_forward.32} parent=0 // pred_check
    _
  $region7: #{timm_model_forward.32} parent=0 // pred_check_branch
    %14 = sbr.rel (0) target = $region9
  $region8: #{timm_model_forward.32} parent=0 // pred_region
    _
  $region9: #{timm_model_forward.32} parent=0 // pred_fallthru
    _
  // Predicated region
  $region10: #{timm_model_forward.32} parent=0 // pred_check
    _
  $region11: #{timm_model_forward.32} parent=0 // pred_check_branch
    %16 = sbr.rel (0) target = $region13
  $region12: #{timm_model_forward.32} parent=0 // pred_region
    _
  $region13: #{timm_model_forward.32} parent=0 // pred_fallthru
    _
  // Predicated region
  $region14: #{timm_model_forward.32} parent=0 // pred_check
    _
  $region15: #{timm_model_forward.32} parent=0 // pred_check_branch
    %18 = sbr.rel (0) target = $region17
  $region16: #{timm_model_forward.32} parent=0 // pred_region
    _
  $region17: #{timm_model_forward.32} parent=0 // pred_fallthru
    _
  // Predicated region
  $region18: #{timm_model_forward.32} parent=0 // pred_check
    _
  $region19: #{timm_model_forward.32} parent=0 // pred_check_branch
    %20 = sbr.rel (0) target = $region21
  $region20: #{timm_model_forward.32} parent=0 // pred_region
    _
  $region21: #{timm_model_forward.32} parent=0 // pred_fallthru
    _
  // Predicated region
  $region22: #{timm_model_forward.32} parent=0 // pred_check
    _
  $region23: #{timm_model_forward.32} parent=0 // pred_check_branch
    %22 = sbr.rel (0) target = $region25
  $region24: #{timm_model_forward.32} parent=0 // pred_region
    _
  $region25: #{timm_model_forward.32} parent=0 // pred_fallthru
    _
  %p23 = scmp.eq.s32.totalorder 0, 0
  // Predicated region
  $region26: #{timm_model_forward.32} parent=0 // pred_check
    %p24 = pneg %p23
  $region27: #{timm_model_forward.32} parent=0 // pred_check_branch
    %26 = sbr.rel (%p24) target = $region29
  $region28: #{timm_model_forward.32} parent=0 // pred_region
    %27 = vst [vmem:[#allocation2] sm:$0xff] 0.0
  $region29: #{timm_model_forward.32} parent=0 // pred_fallthru
    _
  %v28 = vld [vmem:[%s0] sm:$0xff]
  %v29 = vld [vmem:[%s2] sm:$0x1]
  %v31 = vperm.slane %v29, 0
  %v33 = vmul.f32 %v28, %v31
  %v34 = vld [vmem:[%s3] sm:$0x1]
  %v36 = vperm.slane %v34, 0
  %v38 = vadd.f32 %v33, %v36
  %v39 = vmax.f32 %v38, 0.0
  %v40 = vld [vmem:[#allocation2] sm:$0xff]
  %v41 = vpack.c.bf16 %v39, %v39
  %v42 = vld [vmem:[%s1] sm:$0xf]
  %v43 = vld [vmem:[%s1 + $0x4] sm:$0xf]
  %v44 = vld [vmem:[%s1 + $0x8] sm:$0xf]
  %v45 = vld [vmem:[%s1 + $0xc] sm:$0xf]
  %v46 = vld [vmem:[%s1 + $0x10] sm:$0xf]
  %v47 = vld [vmem:[%s1 + $0x14] sm:$0xf]
  %v48 = vld [vmem:[%s1 + $0x18] sm:$0xf]
  %v49 = vld [vmem:[%s1 + $0x1c] sm:$0xf]
  %v50 = vld [vmem:[%s1 + $0x20] sm:$0xf]
  %v51 = vld [vmem:[%s1 + $0x24] sm:$0xf]
  %v52 = vld [vmem:[%s1 + $0x28] sm:$0xf]
  %v53 = vld [vmem:[%s1 + $0x2c] sm:$0xf]
  %v54 = vld [vmem:[%s1 + $0x30] sm:$0xf]
  %v55 = vld [vmem:[%s1 + $0x34] sm:$0xf]
  %v56 = vld [vmem:[%s1 + $0x38] sm:$0xf]
  %v57 = vld [vmem:[%s1 + $0x3c] sm:$0xf]
  %v74 = vunpack.c.l.b16 %v42
  %v75 = vunpack.c.l.b16 %v43
  %v76 = vunpack.c.l.b16 %v44
  %v77 = vunpack.c.l.b16 %v45
  %v78 = vunpack.c.l.b16 %v46
  %v79 = vunpack.c.l.b16 %v47
  %v80 = vunpack.c.l.b16 %v48
  %v81 = vunpack.c.l.b16 %v49
  %v82 = vunpack.c.l.b16 %v50
  %v83 = vunpack.c.l.b16 %v51
  %v84 = vunpack.c.l.b16 %v52
  %v85 = vunpack.c.l.b16 %v53
  %v86 = vunpack.c.l.b16 %v54
  %v87 = vunpack.c.l.b16 %v55
  %v88 = vunpack.c.l.b16 %v56
  %v89 = vunpack.c.l.b16 %v57
  %v90 = vpack.c.b16 %v75, %v74
  %v91 = vpack.c.b16 %v77, %v76
  %v92 = vpack.c.b16 %v79, %v78
  %v93 = vpack.c.b16 %v81, %v80
  %v94 = vpack.c.b16 %v83, %v82
  %v95 = vpack.c.b16 %v85, %v84
  %v96 = vpack.c.b16 %v87, %v86
  %v97 = vpack.c.b16 %v89, %v88
  %106 = vmatpush.bf16.msra.mxu0 %v97
  %107 = vmatpush.bf16.msra.mxu0 %v96
  %108 = vmatpush.bf16.msra.mxu0 %v95
  %109 = vmatpush.bf16.msra.mxu0 %v94
  %110 = vmatpush.bf16.msra.mxu0 %v93
  %111 = vmatpush.bf16.msra.mxu0 %v92
  %112 = vmatpush.bf16.msra.mxu0 %v91
  %113 = vmatpush.bf16.msra.mxu0 %v90
  %114 = vmatmul.bf16.gmra.mxu0 %v41
  %v115 = vpop.f32.mrf.mxu0
  %v116 = vadd.f32 0.0, %v115
  %v117 = vpop.f32.mrf.mxu0
  %118 = vdwg.mxu0
  %v119 = vadd.f32 %v40, %v116
  %120 = vst [vmem:[#allocation2] sm:$0xff] %v119
  // Predicated region
  $region30: #{timm_model_forward.32} parent=0 // pred_check
    %p121 = pneg %p23
  $region31: #{timm_model_forward.32} parent=0 // pred_check_branch
    %123 = sbr.rel (%p121) target = $region33
  $region32: #{timm_model_forward.32} parent=0 // pred_region
    %v124 = vld [vmem:[#allocation2] sm:$0xff]
    %v125 = vld [vmem:[%s4] sm:$0x1]
    %v127 = vperm.slane %v125, 0
    %v129 = vmul.f32 %v124, %v127
    %v130 = vld [vmem:[%s5] sm:$0x1]
    %v132 = vperm.slane %v130, 0
    %v134 = vadd.f32 %v129, %v132
    %v135 = vmax.f32 %v134, 0.0
    %136 = vst [vmem:[%s6] sm:$0xff] %v135
  $region33: #{timm_model_forward.32} parent=0 // pred_fallthru
    _
  // Predicated region
  $region34: #{timm_model_forward.32} parent=0 // pred_check
    _
  $region35: #{timm_model_forward.32} parent=0 // pred_check_branch
    %138 = sbr.rel (0) target = $region37
  $region36: #{timm_model_forward.32} parent=0 // pred_region
    _
  $region37: #{timm_model_forward.32} parent=0 // pred_fallthru
    _
  // Predicated region
  $region38: #{timm_model_forward.32} parent=0 // pred_check
    _
  $region39: #{timm_model_forward.32} parent=0 // pred_check_branch
    %140 = sbr.rel (0) target = $region41
  $region40: #{timm_model_forward.32} parent=0 // pred_region
    _
  $region41: #{timm_model_forward.32} parent=0 // pred_fallthru
    _

// kernel: timm_model_forward.33
$region0: #{timm_model_forward.33}
  #allocation0 [shape = 'u32[]', space=smem, size = 0x4, offset = 0x4, fixed_abs, tag = 'smem constant byte address 0x4 - core index']
  #allocation1 [shape = 'u32[72,128]{1,0:T(1,128)}', space=vmem, size = 0x9000, scoped, tag = 'internal scratch']
  #allocation2 [shape = 'f32[8,128]{1,0:T(8,128)}', space=vmem, size = 0x1000, scoped, tag = 'scratch operand']
  %s0 = inlined_call_operand.vmem [shape: f32[8,384], index: 0, kind: input, shape index: {}]
  %s1 = inlined_call_operand.vmem [shape: bf16[384,128], index: 1, kind: input, shape index: {}]
  %s2 = inlined_call_operand.vmem [shape: f32[8,128], index: 2, kind: output, shape index: {}]
  %s3 = sld [smem:[#allocation0]]
  $region49: #{timm_model_forward.33} parent=0
    _
  %s5 = ssub.s32 1, %s3
  %s6 = scalar_select 0, %s5, %s3
  loop: start=0, step=1, limit=5
  $region2: #{timm_model_forward.33} parent=0 // loop_pre_header
    _
  $region3: #{timm_model_forward.33} parent=0 // loop_header
    %s8 = sphi 0, %s12
    %p9 = scmp.ge.s32.totalorder %s8, 5
    %s15 = sphi 0, %s34
    %s16 = sphi 0, %s30
    %s17 = sphi 0, %s26
    %s18 = sphi 0, %s15
    %s19 = sphi 0, %s16
    %s20 = sphi 0, %s17
    %s21 = sphi 0, %s18
    %s22 = sphi 0, %s19
    %s23 = sphi 0, %s20
    %s39 = sphi 0, %s41
    %s42 = sphi 0, %s39
    %s43 = sphi 0, %s42
    %s59 = sphi 0, %s43
    %s67 = sphi 0, %s69
    %s70 = sphi 0, %s67
    %s71 = sphi 0, %s70
    %s87 = sphi 0, %s71
    %s95 = sphi 0, %s97
    %s98 = sphi 0, %s95
    %s99 = sphi 0, %s98
    %s115 = sphi 0, %s99
  $region4: #{timm_model_forward.33} parent=0 // loop_header_branch
    %11 = sbr.rel (%p9) target = $region8
  $region5: #{timm_model_forward.33} parent=0 // loop_body
    %s13 = ssub.s32 %s8, 1
    %s14 = ssub.s32 %s8, 2
    %s24 = sadd.s32 1, %s17
    %p25 = scmp.ge.s32.totalorder %s24, 3
    %s26 = scalar_select %p25, 0, %s24
    %s27 = sadd.s32 1, %s16
    %s28 = scalar_select %p25, %s27, %s16
    %p29 = scmp.ge.s32.totalorder %s28, 1
    %s30 = scalar_select %p29, 0, %s28
    %s31 = sadd.s32 1, %s15
    %s32 = scalar_select %p29, %s31, %s15
    %p33 = scmp.ge.s32.totalorder %s32, 1
    %s34 = scalar_select %p33, 0, %s32
    %s35 = ssub.s32 %s15, %s34
    %s36 = ssub.s32 %s17, %s26
    %s37 = sor.u32 %s35, %s36
    %p38 = scmp.eq.s32.totalorder %s37, 0
    %s40 = sadd.s32 %s39, 1
    %s41 = scalar_select %p38, %s39, %s40
    %p44 = pneg %p38
    %p45 = scmp.eq.s32.totalorder %s8, 2
    %p46 = por %p44, %p45
    %p47 = scmp.ne.s32.totalorder %s39, %s42
    %p48 = scmp.eq.s32.totalorder %s8, 0
    %p49 = por %p47, %p48
    %p50 = scmp.ne.s32.totalorder %s39, %s42
    %p51 = scmp.eq.s32.totalorder %s13, 2
    %p52 = por %p50, %p51
    %p53 = scmp.ne.s32.totalorder %s42, %s43
    %p54 = scmp.eq.s32.totalorder %s13, 0
    %p55 = por %p53, %p54
    %p56 = scmp.ne.s32.totalorder %s42, %s43
    %p57 = scmp.eq.s32.totalorder %s14, 2
    %p58 = por %p56, %p57
    %p60 = scmp.ne.s32.totalorder %s43, %s59
    %p61 = scmp.eq.s32.totalorder %s14, 0
    %p62 = por %p60, %p61
    %s63 = ssub.s32 %s17, %s26
    %s64 = ssub.s32 %s16, %s30
    %s65 = sor.u32 %s63, %s64
    %p66 = scmp.eq.s32.totalorder %s65, 0
    %s68 = sadd.s32 %s67, 1
    %s69 = scalar_select %p66, %s67, %s68
    %p72 = pneg %p66
    %p73 = scmp.eq.s32.totalorder %s8, 2
    %p74 = por %p72, %p73
    %p75 = scmp.ne.s32.totalorder %s67, %s70
    %p76 = scmp.eq.s32.totalorder %s8, 0
    %p77 = por %p75, %p76
    %p78 = scmp.ne.s32.totalorder %s67, %s70
    %p79 = scmp.eq.s32.totalorder %s13, 2
    %p80 = por %p78, %p79
    %p81 = scmp.ne.s32.totalorder %s70, %s71
    %p82 = scmp.eq.s32.totalorder %s13, 0
    %p83 = por %p81, %p82
    %p84 = scmp.ne.s32.totalorder %s70, %s71
    %p85 = scmp.eq.s32.totalorder %s14, 2
    %p86 = por %p84, %p85
    %p88 = scmp.ne.s32.totalorder %s71, %s87
    %p89 = scmp.eq.s32.totalorder %s14, 0
    %p90 = por %p88, %p89
    %s91 = ssub.s32 %s15, %s34
    %s92 = ssub.s32 %s16, %s30
    %s93 = sor.u32 %s91, %s92
    %p94 = scmp.eq.s32.totalorder %s93, 0
    %s96 = sadd.s32 %s95, 1
    %s97 = scalar_select %p94, %s95, %s96
    %p100 = pneg %p94
    %p101 = scmp.eq.s32.totalorder %s8, 2
    %p102 = por %p100, %p101
    %p103 = scmp.ne.s32.totalorder %s95, %s98
    %p104 = scmp.eq.s32.totalorder %s8, 0
    %p105 = por %p103, %p104
    %p106 = scmp.ne.s32.totalorder %s95, %s98
    %p107 = scmp.eq.s32.totalorder %s13, 2
    %p108 = por %p106, %p107
    %p109 = scmp.ne.s32.totalorder %s98, %s99
    %p110 = scmp.eq.s32.totalorder %s13, 0
    %p111 = por %p109, %p110
    %p112 = scmp.ne.s32.totalorder %s98, %s99
    %p113 = scmp.eq.s32.totalorder %s14, 2
    %p114 = por %p112, %p113
    %p116 = scmp.ne.s32.totalorder %s99, %s115
    %p117 = scmp.eq.s32.totalorder %s14, 0
    %p118 = por %p116, %p117
    %p119 = scmp.le.s32.totalorder 1, %s8
    %p120 = scmp.lt.s32.totalorder %s8, 4
    %p121 = pnand %p119, %p120
    %p122 = pneg %p121
    // Predicated region
    $region9: #{timm_model_forward.33} parent=5 // pred_check
      _
    $region10: #{timm_model_forward.33} parent=5 // pred_check_branch
      %124 = sbr.rel (%p121) target = $region12
    $region11: #{timm_model_forward.33} parent=5 // pred_region
      %s125 = ssub.s32 %s8, 1
    $region12: #{timm_model_forward.33} parent=5 // pred_fallthru
      _
    %p126 = scmp.lt.s32.totalorder %s8, 3
    // Predicated region
    $region13: #{timm_model_forward.33} parent=5 // pred_check
      %p127 = pneg %p126
    $region14: #{timm_model_forward.33} parent=5 // pred_check_branch
      %129 = sbr.rel (%p127) target = $region16
    $region15: #{timm_model_forward.33} parent=5 // pred_region
      // Predicated region
      $region17: #{timm_model_forward.33} parent=15 // pred_check
        %p130 = pneg %p49
      $region18: #{timm_model_forward.33} parent=15 // pred_check_branch
        %132 = sbr.rel (%p130) target = $region20
      $region19: #{timm_model_forward.33} parent=15 // pred_region
        %p133 = scmp.lt.s32.totalorder %s15, 0
        %s134 = scalar_select %p133, %s15, 0
        %p135 = scmp.lt.s32.totalorder %s17, 2
        %s136 = scalar_select %p135, %s17, 2
        %s137 = smul.addr %s134, 3
        %s138 = sadd.s32 %s136, %s137
        %s139 = smul.addr %s138, 8
        %s140 = scalar_lea.vmem %s0, %s139
      $region20: #{timm_model_forward.33} parent=15 // pred_fallthru
        _
      // Predicated region
      $region21: #{timm_model_forward.33} parent=15 // pred_check
        %p141 = pneg %p77
      $region22: #{timm_model_forward.33} parent=15 // pred_check_branch
        %143 = sbr.rel (%p141) target = $region24
      $region23: #{timm_model_forward.33} parent=15 // pred_region
        %s144 = smul.u32 16, %s17
        %p145 = scmp.lt.s32.totalorder %s144, 47
        %s146 = scalar_select %p145, %s144, 47
        %p147 = scmp.lt.s32.totalorder %s16, 0
        %s148 = scalar_select %p147, %s16, 0
        %s149 = sadd.s32 %s148, %s146
        %s150 = smul.addr %s149, 4
        %s151 = scalar_lea.vmem %s1, %s150
        %s152 = smul.u32 16, %s17
      $region24: #{timm_model_forward.33} parent=15 // pred_fallthru
        _
    $region16: #{timm_model_forward.33} parent=5 // pred_fallthru
      _
    %p153 = scmp.le.s32.totalorder 1, %s8
    %p154 = scmp.lt.s32.totalorder %s8, 4
    %p155 = pnand %p153, %p154
    %p156 = pneg %p155
    // Predicated region
    $region25: #{timm_model_forward.33} parent=5 // pred_check
      _
    $region26: #{timm_model_forward.33} parent=5 // pred_check_branch
      %158 = sbr.rel (%p155) target = $region28
    $region27: #{timm_model_forward.33} parent=5 // pred_region
      %s159 = ssub.s32 %s8, 1
      %p160 = scmp.lt.s32.totalorder %s18, 0
      %s161 = scalar_select %p160, %s18, 0
      %p162 = scmp.lt.s32.totalorder %s20, 2
      %s163 = scalar_select %p162, %s20, 2
      %s164 = smul.addr %s161, 3
      %s165 = sadd.s32 %s163, %s164
      %s166 = smul.addr %s165, 8
      %s167 = scalar_lea.vmem %s0, %s166
      %p168 = pneg %p55
      %p169 = pneg %p52
      %s170 = smul.u32 16, %s20
      %p171 = scmp.lt.s32.totalorder %s170, 47
      %s172 = scalar_select %p171, %s170, 47
      %p173 = scmp.lt.s32.totalorder %s19, 0
      %s174 = scalar_select %p173, %s19, 0
      %s175 = sadd.s32 %s174, %s172
      %s176 = smul.addr %s175, 4
      %s177 = scalar_lea.vmem %s1, %s176
      %p178 = pneg %p83
      %p179 = pneg %p80
      %p180 = pneg %p111
      %p181 = pneg %p108
      %p182 = scmp.lt.s32.totalorder %s18, 0
      %s183 = scalar_select %p182, %s18, 0
      %p184 = scmp.lt.s32.totalorder %s19, 0
      %s185 = scalar_select %p184, %s19, 0
      %s186 = sadd.s32 %s185, %s183
      %s187 = smul.addr %s186, 8
      %s188 = scalar_lea.vmem %s2, %s187
      %p189 = scmp.lt.s32.totalorder %s18, 0
      %s190 = scalar_select %p189, %s18, 0
      %p191 = scmp.lt.s32.totalorder %s20, 2
      %s192 = scalar_select %p191, %s20, 2
      %s193 = smul.addr %s190, 3
      %s194 = sadd.s32 %s192, %s193
      %s195 = smul.addr %s194, 8
      %s196 = scalar_lea.vmem %s0, %s195
      %s197 = smul.u32 16, %s20
      %p198 = scmp.lt.s32.totalorder %s197, 47
      %s199 = scalar_select %p198, %s197, 47
      %p200 = scmp.lt.s32.totalorder %s19, 0
      %s201 = scalar_select %p200, %s19, 0
      %s202 = sadd.s32 %s201, %s199
      %s203 = smul.addr %s202, 4
      %s204 = scalar_lea.vmem %s1, %s203
      %s205 = smul.u32 16, %s20
      %p206 = scmp.lt.s32.totalorder %s18, 0
      %s207 = scalar_select %p206, %s18, 0
      %p208 = scmp.lt.s32.totalorder %s19, 0
      %s209 = scalar_select %p208, %s19, 0
      %s210 = sadd.s32 %s209, %s207
      %s211 = smul.addr %s210, 8
      %s212 = scalar_lea.vmem %s2, %s211
      %p213 = scmp.eq.s32.totalorder %s20, 0
      // Predicated region
      $region29: #{timm_model_forward.33} parent=27 // pred_check
        %p214 = pneg %p213
      $region30: #{timm_model_forward.33} parent=27 // pred_check_branch
        %216 = sbr.rel (%p214) target = $region32
      $region31: #{timm_model_forward.33} parent=27 // pred_region
        %217 = vst [vmem:[#allocation2] sm:$0xff] 0.0
      $region32: #{timm_model_forward.33} parent=27 // pred_fallthru
        _
      %v218 = vld [vmem:[%s196] sm:$0xff]
      %v219 = vld [vmem:[#allocation2] sm:$0xff]
      %v220 = vpack.c.bf16 %v218, %v218
      %v221 = vld [vmem:[%s204] sm:$0xf]
      %v222 = vld [vmem:[%s204 + $0x4] sm:$0xf]
      %v223 = vld [vmem:[%s204 + $0x8] sm:$0xf]
      %v224 = vld [vmem:[%s204 + $0xc] sm:$0xf]
      %v225 = vld [vmem:[%s204 + $0x10] sm:$0xf]
      %v226 = vld [vmem:[%s204 + $0x14] sm:$0xf]
      %v227 = vld [vmem:[%s204 + $0x18] sm:$0xf]
      %v228 = vld [vmem:[%s204 + $0x1c] sm:$0xf]
      %v229 = vld [vmem:[%s204 + $0x20] sm:$0xf]
      %v230 = vld [vmem:[%s204 + $0x24] sm:$0xf]
      %v231 = vld [vmem:[%s204 + $0x28] sm:$0xf]
      %v232 = vld [vmem:[%s204 + $0x2c] sm:$0xf]
      %v233 = vld [vmem:[%s204 + $0x30] sm:$0xf]
      %v234 = vld [vmem:[%s204 + $0x34] sm:$0xf]
      %v235 = vld [vmem:[%s204 + $0x38] sm:$0xf]
      %v236 = vld [vmem:[%s204 + $0x3c] sm:$0xf]
      %v253 = vunpack.c.l.b16 %v221
      %v254 = vunpack.c.l.b16 %v222
      %v255 = vunpack.c.l.b16 %v223
      %v256 = vunpack.c.l.b16 %v224
      %v257 = vunpack.c.l.b16 %v225
      %v258 = vunpack.c.l.b16 %v226
      %v259 = vunpack.c.l.b16 %v227
      %v260 = vunpack.c.l.b16 %v228
      %v261 = vunpack.c.l.b16 %v229
      %v262 = vunpack.c.l.b16 %v230
      %v263 = vunpack.c.l.b16 %v231
      %v264 = vunpack.c.l.b16 %v232
      %v265 = vunpack.c.l.b16 %v233
      %v266 = vunpack.c.l.b16 %v234
      %v267 = vunpack.c.l.b16 %v235
      %v268 = vunpack.c.l.b16 %v236
      %v269 = vpack.c.b16 %v254, %v253
      %v270 = vpack.c.b16 %v256, %v255
      %v271 = vpack.c.b16 %v258, %v257
      %v272 = vpack.c.b16 %v260, %v259
      %v273 = vpack.c.b16 %v262, %v261
      %v274 = vpack.c.b16 %v264, %v263
      %v275 = vpack.c.b16 %v266, %v265
      %v276 = vpack.c.b16 %v268, %v267
      %285 = vmatpush.bf16.msra.mxu0 %v276
      %286 = vmatpush.bf16.msra.mxu0 %v275
      %287 = vmatpush.bf16.msra.mxu0 %v274
      %288 = vmatpush.bf16.msra.mxu0 %v273
      %289 = vmatpush.bf16.msra.mxu0 %v272
      %290 = vmatpush.bf16.msra.mxu0 %v271
      %291 = vmatpush.bf16.msra.mxu0 %v270
      %292 = vmatpush.bf16.msra.mxu0 %v269
      %293 = vmatmul.bf16.gmra.mxu0 %v220
      %v294 = vpop.f32.mrf.mxu0
      %v295 = vadd.f32 0.0, %v294
      %v296 = vpop.f32.mrf.mxu0
      %297 = vdwg.mxu0
      %v298 = vadd.f32 %v219, %v295
      %299 = vst [vmem:[#allocation2] sm:$0xff] %v298
      %p300 = scmp.eq.s32.totalorder %s20, 2
      // Predicated region
      $region33: #{timm_model_forward.33} parent=27 // pred_check
        %p301 = pneg %p300
      $region34: #{timm_model_forward.33} parent=27 // pred_check_branch
        %303 = sbr.rel (%p301) target = $region36
      $region35: #{timm_model_forward.33} parent=27 // pred_region
        %v304 = vld [vmem:[#allocation2] sm:$0xff]
        %305 = vst [vmem:[%s212] sm:$0xff] %v304
      $region36: #{timm_model_forward.33} parent=27 // pred_fallthru
        _
      %p306 = scmp.lt.s32.totalorder %s18, 0
      %s307 = scalar_select %p306, %s18, 0
      %p308 = scmp.lt.s32.totalorder %s19, 0
      %s309 = scalar_select %p308, %s19, 0
      %s310 = sadd.s32 %s309, %s307
      %s311 = smul.addr %s310, 8
      %s312 = scalar_lea.vmem %s2, %s311
      // Predicated region
      $region37: #{timm_model_forward.33} parent=27 // pred_check
        %p313 = pneg %p108
      $region38: #{timm_model_forward.33} parent=27 // pred_check_branch
        %315 = sbr.rel (%p313) target = $region40
      $region39: #{timm_model_forward.33} parent=27 // pred_region
        _
      $region40: #{timm_model_forward.33} parent=27 // pred_fallthru
        _
      // Predicated region
      $region41: #{timm_model_forward.33} parent=27 // pred_check
        %p316 = pneg %p108
      $region42: #{timm_model_forward.33} parent=27 // pred_check_branch
        %318 = sbr.rel (%p316) target = $region44
      $region43: #{timm_model_forward.33} parent=27 // pred_region
        %p319 = scmp.lt.s32.totalorder %s18, 0
        %s320 = scalar_select %p319, %s18, 0
        %p321 = scmp.lt.s32.totalorder %s19, 0
        %s322 = scalar_select %p321, %s19, 0
        %s323 = sadd.s32 %s322, %s320
        %s324 = smul.addr %s323, 8
        %s325 = scalar_lea.vmem %s2, %s324
      $region44: #{timm_model_forward.33} parent=27 // pred_fallthru
        _
    $region28: #{timm_model_forward.33} parent=5 // pred_fallthru
      _
    %p326 = scmp.le.s32.totalorder 2, %s8
    // Predicated region
    $region45: #{timm_model_forward.33} parent=5 // pred_check
      %p327 = pneg %p326
    $region46: #{timm_model_forward.33} parent=5 // pred_check_branch
      %329 = sbr.rel (%p327) target = $region48
    $region47: #{timm_model_forward.33} parent=5 // pred_region
      %s330 = ssub.s32 %s8, 2
    $region48: #{timm_model_forward.33} parent=5 // pred_fallthru
      _
  $region6: #{timm_model_forward.33} parent=0 // loop_footer
    %s12 = sadd.s32 1, %s8
  $region7: #{timm_model_forward.33} parent=0 // loop_footer_branch
    %7 = sbr.rel target = $region3
  $region8: #{timm_model_forward.33} parent=0 // loop_exit
    _

// kernel: timm_model_forward.36
$region0: #{timm_model_forward.36}
  #allocation0 [shape = 'u32[]', space=smem, size = 0x4, offset = 0x4, fixed_abs, tag = 'smem constant byte address 0x4 - core index']
  #allocation1 [shape = 'u32[72,128]{1,0:T(1,128)}', space=vmem, size = 0x9000, scoped, tag = 'internal scratch']
  #allocation2 [shape = 'f32[8,128]{1,0:T(8,128)}', space=vmem, size = 0x1000, scoped, tag = 'scratch operand']
  %s0 = inlined_call_operand.vmem [shape: f32[8,128], index: 0, kind: input, shape index: {}]
  %s1 = inlined_call_operand.vmem [shape: bf16[128,128], index: 1, kind: input, shape index: {}]
  %s2 = inlined_call_operand.vmem [shape: f32[1,128], index: 2, kind: input, shape index: {}]
  %s3 = inlined_call_operand.vmem [shape: f32[1,128], index: 3, kind: input, shape index: {}]
  %s4 = inlined_call_operand.vmem [shape: f32[8,128], index: 4, kind: output, shape index: {}]
  %s5 = sld [smem:[#allocation0]]
  $region34: #{timm_model_forward.36} parent=0
    _
  %s7 = ssub.s32 1, %s5
  %s8 = scalar_select 0, %s7, %s5
  // Predicated region
  $region2: #{timm_model_forward.36} parent=0 // pred_check
    _
  $region3: #{timm_model_forward.36} parent=0 // pred_check_branch
    %10 = sbr.rel (0) target = $region5
  $region4: #{timm_model_forward.36} parent=0 // pred_region
    _
  $region5: #{timm_model_forward.36} parent=0 // pred_fallthru
    _
  // Predicated region
  $region6: #{timm_model_forward.36} parent=0 // pred_check
    _
  $region7: #{timm_model_forward.36} parent=0 // pred_check_branch
    %12 = sbr.rel (0) target = $region9
  $region8: #{timm_model_forward.36} parent=0 // pred_region
    _
  $region9: #{timm_model_forward.36} parent=0 // pred_fallthru
    _
  // Predicated region
  $region10: #{timm_model_forward.36} parent=0 // pred_check
    _
  $region11: #{timm_model_forward.36} parent=0 // pred_check_branch
    %14 = sbr.rel (0) target = $region13
  $region12: #{timm_model_forward.36} parent=0 // pred_region
    _
  $region13: #{timm_model_forward.36} parent=0 // pred_fallthru
    _
  // Predicated region
  $region14: #{timm_model_forward.36} parent=0 // pred_check
    _
  $region15: #{timm_model_forward.36} parent=0 // pred_check_branch
    %16 = sbr.rel (0) target = $region17
  $region16: #{timm_model_forward.36} parent=0 // pred_region
    _
  $region17: #{timm_model_forward.36} parent=0 // pred_fallthru
    _
  %p17 = scmp.eq.s32.totalorder 0, 0
  // Predicated region
  $region18: #{timm_model_forward.36} parent=0 // pred_check
    %p18 = pneg %p17
  $region19: #{timm_model_forward.36} parent=0 // pred_check_branch
    %20 = sbr.rel (%p18) target = $region21
  $region20: #{timm_model_forward.36} parent=0 // pred_region
    %21 = vst [vmem:[#allocation2] sm:$0xff] 0.0
  $region21: #{timm_model_forward.36} parent=0 // pred_fallthru
    _
  %v22 = vld [vmem:[%s0] sm:$0xff]
  %v23 = vld [vmem:[%s2] sm:$0x1]
  %v25 = vperm.slane %v23, 0
  %v27 = vmul.f32 %v22, %v25
  %v28 = vld [vmem:[%s3] sm:$0x1]
  %v30 = vperm.slane %v28, 0
  %v32 = vadd.f32 %v27, %v30
  %v33 = vmax.f32 %v32, 0.0
  %v34 = vld [vmem:[#allocation2] sm:$0xff]
  %v35 = vpack.c.bf16 %v33, %v33
  %v36 = vld [vmem:[%s1] sm:$0xf]
  %v37 = vld [vmem:[%s1 + $0x4] sm:$0xf]
  %v38 = vld [vmem:[%s1 + $0x8] sm:$0xf]
  %v39 = vld [vmem:[%s1 + $0xc] sm:$0xf]
  %v40 = vld [vmem:[%s1 + $0x10] sm:$0xf]
  %v41 = vld [vmem:[%s1 + $0x14] sm:$0xf]
  %v42 = vld [vmem:[%s1 + $0x18] sm:$0xf]
  %v43 = vld [vmem:[%s1 + $0x1c] sm:$0xf]
  %v44 = vld [vmem:[%s1 + $0x20] sm:$0xf]
  %v45 = vld [vmem:[%s1 + $0x24] sm:$0xf]
  %v46 = vld [vmem:[%s1 + $0x28] sm:$0xf]
  %v47 = vld [vmem:[%s1 + $0x2c] sm:$0xf]
  %v48 = vld [vmem:[%s1 + $0x30] sm:$0xf]
  %v49 = vld [vmem:[%s1 + $0x34] sm:$0xf]
  %v50 = vld [vmem:[%s1 + $0x38] sm:$0xf]
  %v51 = vld [vmem:[%s1 + $0x3c] sm:$0xf]
  %v68 = vunpack.c.l.b16 %v36
  %v69 = vunpack.c.l.b16 %v37
  %v70 = vunpack.c.l.b16 %v38
  %v71 = vunpack.c.l.b16 %v39
  %v72 = vunpack.c.l.b16 %v40
  %v73 = vunpack.c.l.b16 %v41
  %v74 = vunpack.c.l.b16 %v42
  %v75 = vunpack.c.l.b16 %v43
  %v76 = vunpack.c.l.b16 %v44
  %v77 = vunpack.c.l.b16 %v45
  %v78 = vunpack.c.l.b16 %v46
  %v79 = vunpack.c.l.b16 %v47
  %v80 = vunpack.c.l.b16 %v48
  %v81 = vunpack.c.l.b16 %v49
  %v82 = vunpack.c.l.b16 %v50
  %v83 = vunpack.c.l.b16 %v51
  %v84 = vpack.c.b16 %v69, %v68
  %v85 = vpack.c.b16 %v71, %v70
  %v86 = vpack.c.b16 %v73, %v72
  %v87 = vpack.c.b16 %v75, %v74
  %v88 = vpack.c.b16 %v77, %v76
  %v89 = vpack.c.b16 %v79, %v78
  %v90 = vpack.c.b16 %v81, %v80
  %v91 = vpack.c.b16 %v83, %v82
  %100 = vmatpush.bf16.msra.mxu0 %v91
  %101 = vmatpush.bf16.msra.mxu0 %v90
  %102 = vmatpush.bf16.msra.mxu0 %v89
  %103 = vmatpush.bf16.msra.mxu0 %v88
  %104 = vmatpush.bf16.msra.mxu0 %v87
  %105 = vmatpush.bf16.msra.mxu0 %v86
  %106 = vmatpush.bf16.msra.mxu0 %v85
  %107 = vmatpush.bf16.msra.mxu0 %v84
  %108 = vmatmul.bf16.gmra.mxu0 %v35
  %v109 = vpop.f32.mrf.mxu0
  %v110 = vadd.f32 0.0, %v109
  %v111 = vpop.f32.mrf.mxu0
  %112 = vdwg.mxu0
  %v113 = vadd.f32 %v34, %v110
  %114 = vst [vmem:[#allocation2] sm:$0xff] %v113
  // Predicated region
  $region22: #{timm_model_forward.36} parent=0 // pred_check
    %p115 = pneg %p17
  $region23: #{timm_model_forward.36} parent=0 // pred_check_branch
    %117 = sbr.rel (%p115) target = $region25
  $region24: #{timm_model_forward.36} parent=0 // pred_region
    %v118 = vld [vmem:[#allocation2] sm:$0xff]
    %119 = vst [vmem:[%s4] sm:$0xff] %v118
  $region25: #{timm_model_forward.36} parent=0 // pred_fallthru
    _
  // Predicated region
  $region26: #{timm_model_forward.36} parent=0 // pred_check
    _
  $region27: #{timm_model_forward.36} parent=0 // pred_check_branch
    %121 = sbr.rel (0) target = $region29
  $region28: #{timm_model_forward.36} parent=0 // pred_region
    _
  $region29: #{timm_model_forward.36} parent=0 // pred_fallthru
    _
  // Predicated region
  $region30: #{timm_model_forward.36} parent=0 // pred_check
    _
  $region31: #{timm_model_forward.36} parent=0 // pred_check_branch
    %123 = sbr.rel (0) target = $region33
  $region32: #{timm_model_forward.36} parent=0 // pred_region
    _
  $region33: #{timm_model_forward.36} parent=0 // pred_fallthru
    _

// kernel: timm_model_forward.41
$region0: #{timm_model_forward.41}
  #allocation0 [shape = 'u32[]', space=smem, size = 0x4, offset = 0x4, fixed_abs, tag = 'smem constant byte address 0x4 - core index']
  #allocation1 [shape = 'u32[72,128]{1,0:T(1,128)}', space=vmem, size = 0x9000, scoped, tag = 'internal scratch']
  %s0 = inlined_call_operand.vmem [shape: f32[2,1,128], index: 0, kind: input, shape index: {}]
  %s1 = inlined_call_operand.vmem [shape: f32[1,128], index: 1, kind: input, shape index: {}]
  %s2 = inlined_call_operand.vmem [shape: f32[1,128], index: 2, kind: input, shape index: {}]
  %s3 = inlined_call_operand.vmem [shape: bf16[128,128], index: 3, kind: input, shape index: {}]
  %s4 = inlined_call_operand.vmem [shape: f32[1,128], index: 4, kind: input, shape index: {}]
  %s5 = inlined_call_operand.hbm [shape: f32[2,1,128], index: 5, kind: output, shape index: {}]
  %s6 = sld [smem:[#allocation0]]
  $region53: #{timm_model_forward.41} parent=0
    _
  %s8 = ssub.s32 1, %s6
  %s9 = scalar_select 0, %s8, %s6
  $region1: #{timm_model_forward.41} parent=0
    #allocation2 [shape = 'u8[1024]{0}', space=vmem, size = 0x400, scoped, tag = 'output window, operand 0']
    #allocation3 [shape = 's32[2]{0}', space=sflag, size = 0x8, scoped, tag = 'scoped memory for timm_model_forward.41']
    %10 = vsyncpa [#allocation3], 0
    %s11 = scalar_lea.sflag [#allocation3], 1
    %12 = vsyncpa %s11, 0
    loop: start=0, step=1, limit=4
    $region2: #{timm_model_forward.41} parent=1 // loop_pre_header
      _
    $region3: #{timm_model_forward.41} parent=1 // loop_header
      %s14 = sphi 0, %s18
      %p15 = scmp.ge.s32.totalorder %s14, 4
      %s24 = sphi 0, %s26
      %s27 = sphi 0, %s24
      %s28 = sphi 0, %s27
      %s44 = sphi 0, %s28
      %s48 = sphi 0, %s48
      %s50 = sphi 0, %s48
      %s51 = sphi 0, %s50
      %s65 = sphi 0, %s51
      %s69 = sphi 0, %s69
      %s71 = sphi 0, %s69
      %s72 = sphi 0, %s71
      %s86 = sphi 0, %s72
      %s90 = sphi 0, %s90
      %s92 = sphi 0, %s90
      %s93 = sphi 0, %s92
      %s107 = sphi 0, %s93
      %s111 = sphi 0, %s111
      %s113 = sphi 0, %s111
      %s114 = sphi 0, %s113
      %s128 = sphi 0, %s114
      %s134 = sphi 0, %s136
      %s137 = sphi 0, %s134
      %s138 = sphi 0, %s137
      %s154 = sphi 0, %s138
    $region4: #{timm_model_forward.41} parent=1 // loop_header_branch
      %17 = sbr.rel (%p15) target = $region8
    $region5: #{timm_model_forward.41} parent=1 // loop_body
      %s19 = ssub.s32 %s14, 1
      %s20 = ssub.s32 %s14, 2
      %s21 = sadd.s32 %s14, 1
      %s22 = ssub.s32 %s14, %s21
      %p23 = scmp.eq.s32.totalorder %s22, 0
      %s25 = sadd.s32 %s24, 1
      %s26 = scalar_select %p23, %s24, %s25
      %p29 = pneg %p23
      %p30 = scmp.eq.s32.totalorder %s14, 1
      %p31 = por %p29, %p30
      %p32 = scmp.ne.s32.totalorder %s24, %s27
      %p33 = scmp.eq.s32.totalorder %s14, 0
      %p34 = por %p32, %p33
      %p35 = scmp.ne.s32.totalorder %s24, %s27
      %p36 = scmp.eq.s32.totalorder %s19, 1
      %p37 = por %p35, %p36
      %p38 = scmp.ne.s32.totalorder %s27, %s28
      %p39 = scmp.eq.s32.totalorder %s19, 0
      %p40 = por %p38, %p39
      %p41 = scmp.ne.s32.totalorder %s27, %s28
      %p42 = scmp.eq.s32.totalorder %s20, 1
      %p43 = por %p41, %p42
      %p45 = scmp.ne.s32.totalorder %s28, %s44
      %p46 = scmp.eq.s32.totalorder %s20, 0
      %p47 = por %p45, %p46
      %s49 = sadd.s32 %s48, 1
      %p52 = scmp.eq.s32.totalorder %s14, 1
      %p53 = scmp.ne.s32.totalorder %s48, %s50
      %p54 = scmp.eq.s32.totalorder %s14, 0
      %p55 = por %p53, %p54
      %p56 = scmp.ne.s32.totalorder %s48, %s50
      %p57 = scmp.eq.s32.totalorder %s19, 1
      %p58 = por %p56, %p57
      %p59 = scmp.ne.s32.totalorder %s50, %s51
      %p60 = scmp.eq.s32.totalorder %s19, 0
      %p61 = por %p59, %p60
      %p62 = scmp.ne.s32.totalorder %s50, %s51
      %p63 = scmp.eq.s32.totalorder %s20, 1
      %p64 = por %p62, %p63
      %p66 = scmp.ne.s32.totalorder %s51, %s65
      %p67 = scmp.eq.s32.totalorder %s20, 0
      %p68 = por %p66, %p67
      %s70 = sadd.s32 %s69, 1
      %p73 = scmp.eq.s32.totalorder %s14, 1
      %p74 = scmp.ne.s32.totalorder %s69, %s71
      %p75 = scmp.eq.s32.totalorder %s14, 0
      %p76 = por %p74, %p75
      %p77 = scmp.ne.s32.totalorder %s69, %s71
      %p78 = scmp.eq.s32.totalorder %s19, 1
      %p79 = por %p77, %p78
      %p80 = scmp.ne.s32.totalorder %s71, %s72
      %p81 = scmp.eq.s32.totalorder %s19, 0
      %p82 = por %p80, %p81
      %p83 = scmp.ne.s32.totalorder %s71, %s72
      %p84 = scmp.eq.s32.totalorder %s20, 1
      %p85 = por %p83, %p84
      %p87 = scmp.ne.s32.totalorder %s72, %s86
      %p88 = scmp.eq.s32.totalorder %s20, 0
      %p89 = por %p87, %p88
      %s91 = sadd.s32 %s90, 1
      %p94 = scmp.eq.s32.totalorder %s14, 1
      %p95 = scmp.ne.s32.totalorder %s90, %s92
      %p96 = scmp.eq.s32.totalorder %s14, 0
      %p97 = por %p95, %p96
      %p98 = scmp.ne.s32.totalorder %s90, %s92
      %p99 = scmp.eq.s32.totalorder %s19, 1
      %p100 = por %p98, %p99
      %p101 = scmp.ne.s32.totalorder %s92, %s93
      %p102 = scmp.eq.s32.totalorder %s19, 0
      %p103 = por %p101, %p102
      %p104 = scmp.ne.s32.totalorder %s92, %s93
      %p105 = scmp.eq.s32.totalorder %s20, 1
      %p106 = por %p104, %p105
      %p108 = scmp.ne.s32.totalorder %s93, %s107
      %p109 = scmp.eq.s32.totalorder %s20, 0
      %p110 = por %p108, %p109
      %s112 = sadd.s32 %s111, 1
      %p115 = scmp.eq.s32.totalorder %s14, 1
      %p116 = scmp.ne.s32.totalorder %s111, %s113
      %p117 = scmp.eq.s32.totalorder %s14, 0
      %p118 = por %p116, %p117
      %p119 = scmp.ne.s32.totalorder %s111, %s113
      %p120 = scmp.eq.s32.totalorder %s19, 1
      %p121 = por %p119, %p120
      %p122 = scmp.ne.s32.totalorder %s113, %s114
      %p123 = scmp.eq.s32.totalorder %s19, 0
      %p124 = por %p122, %p123
      %p125 = scmp.ne.s32.totalorder %s113, %s114
      %p126 = scmp.eq.s32.totalorder %s20, 1
      %p127 = por %p125, %p126
      %p129 = scmp.ne.s32.totalorder %s114, %s128
      %p130 = scmp.eq.s32.totalorder %s20, 0
      %p131 = por %p129, %p130
      %s132 = ssub.s32 %s14, %s21
      %p133 = scmp.eq.s32.totalorder %s132, 0
      %s135 = sadd.s32 %s134, 1
      %s136 = scalar_select %p133, %s134, %s135
      %p139 = pneg %p133
      %p140 = scmp.eq.s32.totalorder %s14, 1
      %p141 = por %p139, %p140
      %p142 = scmp.ne.s32.totalorder %s134, %s137
      %p143 = scmp.eq.s32.totalorder %s14, 0
      %p144 = por %p142, %p143
      %p145 = scmp.ne.s32.totalorder %s134, %s137
      %p146 = scmp.eq.s32.totalorder %s19, 1
      %p147 = por %p145, %p146
      %p148 = scmp.ne.s32.totalorder %s137, %s138
      %p149 = scmp.eq.s32.totalorder %s19, 0
      %p150 = por %p148, %p149
      %p151 = scmp.ne.s32.totalorder %s137, %s138
      %p152 = scmp.eq.s32.totalorder %s20, 1
      %p153 = por %p151, %p152
      %p155 = scmp.ne.s32.totalorder %s138, %s154
      %p156 = scmp.eq.s32.totalorder %s20, 0
      %p157 = por %p155, %p156
      %p158 = scmp.le.s32.totalorder 1, %s14
      %p159 = scmp.lt.s32.totalorder %s14, 3
      %p160 = pnand %p158, %p159
      %p161 = pneg %p160
      // Predicated region
      $region9: #{timm_model_forward.41} parent=5 // pred_check
        _
      $region10: #{timm_model_forward.41} parent=5 // pred_check_branch
        %163 = sbr.rel (%p160) target = $region12
      $region11: #{timm_model_forward.41} parent=5 // pred_region
        %s164 = ssub.s32 %s14, 1
        // Predicated region
        $region13: #{timm_model_forward.41} parent=11 // pred_check
          %p165 = pneg %p61
        $region14: #{timm_model_forward.41} parent=11 // pred_check_branch
          %167 = sbr.rel (%p165) target = $region16
        $region15: #{timm_model_forward.41} parent=11 // pred_region
          _
        $region16: #{timm_model_forward.41} parent=11 // pred_fallthru
          _
        // Predicated region
        $region17: #{timm_model_forward.41} parent=11 // pred_check
          %p168 = pneg %p82
        $region18: #{timm_model_forward.41} parent=11 // pred_check_branch
          %170 = sbr.rel (%p168) target = $region20
        $region19: #{timm_model_forward.41} parent=11 // pred_region
          _
        $region20: #{timm_model_forward.41} parent=11 // pred_fallthru
          _
        // Predicated region
        $region21: #{timm_model_forward.41} parent=11 // pred_check
          %p171 = pneg %p103
        $region22: #{timm_model_forward.41} parent=11 // pred_check_branch
          %173 = sbr.rel (%p171) target = $region24
        $region23: #{timm_model_forward.41} parent=11 // pred_region
          _
        $region24: #{timm_model_forward.41} parent=11 // pred_fallthru
          _
        // Predicated region
        $region25: #{timm_model_forward.41} parent=11 // pred_check
          %p174 = pneg %p124
        $region26: #{timm_model_forward.41} parent=11 // pred_check_branch
          %176 = sbr.rel (%p174) target = $region28
        $region27: #{timm_model_forward.41} parent=11 // pred_region
          _
        $region28: #{timm_model_forward.41} parent=11 // pred_fallthru
          _
      $region12: #{timm_model_forward.41} parent=5 // pred_fallthru
        _
      %p177 = scmp.lt.s32.totalorder %s14, 2
      // Predicated region
      $region29: #{timm_model_forward.41} parent=5 // pred_check
        %p178 = pneg %p177
      $region30: #{timm_model_forward.41} parent=5 // pred_check_branch
        %180 = sbr.rel (%p178) target = $region32
      $region31: #{timm_model_forward.41} parent=5 // pred_region
        // Predicated region
        $region33: #{timm_model_forward.41} parent=31 // pred_check
          %p181 = pneg %p34
        $region34: #{timm_model_forward.41} parent=31 // pred_check_branch
          %183 = sbr.rel (%p181) target = $region36
        $region35: #{timm_model_forward.41} parent=31 // pred_region
          %p184 = scmp.lt.s32.totalorder %s14, 1
          %s185 = scalar_select %p184, %s14, 1
          %s186 = scalar_lea.vmem %s0, %s185
        $region36: #{timm_model_forward.41} parent=31 // pred_fallthru
          _
      $region32: #{timm_model_forward.41} parent=5 // pred_fallthru
        _
      %p187 = scmp.le.s32.totalorder 1, %s14
      %p188 = scmp.lt.s32.totalorder %s14, 3
      %p189 = pnand %p187, %p188
      %p190 = pneg %p189
      // Predicated region
      $region37: #{timm_model_forward.41} parent=5 // pred_check
        _
      $region38: #{timm_model_forward.41} parent=5 // pred_check_branch
        %192 = sbr.rel (%p189) target = $region40
      $region39: #{timm_model_forward.41} parent=5 // pred_region
        %s193 = ssub.s32 %s14, 1
        %p194 = scmp.lt.s32.totalorder %s19, 1
        %s195 = scalar_select %p194, %s19, 1
        %s196 = scalar_lea.vmem %s0, %s195
        %p197 = pneg %p40
        %p198 = pneg %p37
        %p199 = pneg %p61
        %p200 = pneg %p58
        %p201 = pneg %p82
        %p202 = pneg %p79
        %p203 = pneg %p103
        %p204 = pneg %p100
        %p205 = pneg %p124
        %p206 = pneg %p121
        %p207 = pneg %p150
        %p208 = pneg %p147
        %s209 = sand.u32 %s137, 1
        %s210 = scalar_lea.sflag [#allocation3], %s209
        %s211 = sand.u32 %s137, 1
        %s212 = scalar_lea.vmem [#allocation2], %s211
        %p213 = scmp.lt.s32.totalorder %s19, 1
        %s214 = scalar_select %p213, %s19, 1
        %s215 = scalar_lea.vmem %s0, %s214
        %v216 = vld [vmem:[%s215] sm:$0x1]
        %v217 = vld [vmem:[%s1] sm:$0x1]
        %v218 = vmul.f32 %v216, %v217
        %v219 = vld [vmem:[%s2] sm:$0x1]
        %v220 = vadd.f32 %v218, %v219
        %v221 = vmax.f32 %v220, 0.0
        %v222 = vadd.f32 %v221, 0.0
        %v223 = vpack.c.bf16 %v222, %v222
        %v224 = vld [vmem:[%s3] sm:$0xf]
        %v225 = vld [vmem:[%s3 + $0x4] sm:$0xf]
        %v226 = vld [vmem:[%s3 + $0x8] sm:$0xf]
        %v227 = vld [vmem:[%s3 + $0xc] sm:$0xf]
        %v228 = vld [vmem:[%s3 + $0x10] sm:$0xf]
        %v229 = vld [vmem:[%s3 + $0x14] sm:$0xf]
        %v230 = vld [vmem:[%s3 + $0x18] sm:$0xf]
        %v231 = vld [vmem:[%s3 + $0x1c] sm:$0xf]
        %v232 = vld [vmem:[%s3 + $0x20] sm:$0xf]
        %v233 = vld [vmem:[%s3 + $0x24] sm:$0xf]
        %v234 = vld [vmem:[%s3 + $0x28] sm:$0xf]
        %v235 = vld [vmem:[%s3 + $0x2c] sm:$0xf]
        %v236 = vld [vmem:[%s3 + $0x30] sm:$0xf]
        %v237 = vld [vmem:[%s3 + $0x34] sm:$0xf]
        %v238 = vld [vmem:[%s3 + $0x38] sm:$0xf]
        %v239 = vld [vmem:[%s3 + $0x3c] sm:$0xf]
        %v240 = vld [vmem:[%s4] sm:$0x1]
        %v257 = vunpack.c.l.b16 %v224
        %v258 = vunpack.c.l.b16 %v225
        %v259 = vunpack.c.l.b16 %v226
        %v260 = vunpack.c.l.b16 %v227
        %v261 = vunpack.c.l.b16 %v228
        %v262 = vunpack.c.l.b16 %v229
        %v263 = vunpack.c.l.b16 %v230
        %v264 = vunpack.c.l.b16 %v231
        %v265 = vunpack.c.l.b16 %v232
        %v266 = vunpack.c.l.b16 %v233
        %v267 = vunpack.c.l.b16 %v234
        %v268 = vunpack.c.l.b16 %v235
        %v269 = vunpack.c.l.b16 %v236
        %v270 = vunpack.c.l.b16 %v237
        %v271 = vunpack.c.l.b16 %v238
        %v272 = vunpack.c.l.b16 %v239
        %v273 = vpack.c.b16 %v258, %v257
        %v274 = vpack.c.b16 %v260, %v259
        %v275 = vpack.c.b16 %v262, %v261
        %v276 = vpack.c.b16 %v264, %v263
        %v277 = vpack.c.b16 %v266, %v265
        %v278 = vpack.c.b16 %v268, %v267
        %v279 = vpack.c.b16 %v270, %v269
        %v280 = vpack.c.b16 %v272, %v271
        %289 = vmatpush.bf16.msra.mxu0 %v280
        %290 = vmatpush.bf16.msra.mxu0 %v279
        %291 = vmatpush.bf16.msra.mxu0 %v278
        %292 = vmatpush.bf16.msra.mxu0 %v277
        %293 = vmatpush.bf16.msra.mxu0 %v276
        %294 = vmatpush.bf16.msra.mxu0 %v275
        %295 = vmatpush.bf16.msra.mxu0 %v274
        %296 = vmatpush.bf16.msra.mxu0 %v273
        %297 = vmatmul.bf16.gmra.mxu0 %v223
        %v298 = vpop.f32.mrf.mxu0
        %v299 = vadd.f32 %v240, %v298
        %v300 = vpop.f32.mrf.mxu0
        %301 = vdwg.mxu0
        %302 = vst [vmem:[%s212] sm:$0x1] %v299
        %s303 = sand.u32 %s137, 1
        %s304 = scalar_lea.sflag [#allocation3], %s303
        %s305 = sand.u32 %s137, 1
        %s306 = scalar_lea.vmem [#allocation2], %s305
        // Predicated region
        $region41: #{timm_model_forward.41} parent=39 // pred_check
          %p307 = pneg %p147
        $region42: #{timm_model_forward.41} parent=39 // pred_check_branch
          %309 = sbr.rel (%p307) target = $region44
        $region43: #{timm_model_forward.41} parent=39 // pred_region
          %311 = vsyncadd %s304, 0
          %s312 = scalar_lea.hbm %s5, %s19
          %s314 = sshll.u32 %s306, 4
          %s315 = int_to_ptr.vmem [resolvable:$true] %s314
          %s316 = sshll.u32 %s312, 4
          %s317 = int_to_ptr.hbm [resolvable:$true] %s316
          %319 = dma.vmem_to_hbm [thread:$0]  %s315, 16, %s317, %s304
        $region44: #{timm_model_forward.41} parent=39 // pred_fallthru
          _
      $region40: #{timm_model_forward.41} parent=5 // pred_fallthru
        _
      %p320 = scmp.le.s32.totalorder 2, %s14
      // Predicated region
      $region45: #{timm_model_forward.41} parent=5 // pred_check
        %p321 = pneg %p320
      $region46: #{timm_model_forward.41} parent=5 // pred_check_branch
        %323 = sbr.rel (%p321) target = $region48
      $region47: #{timm_model_forward.41} parent=5 // pred_region
        %s324 = ssub.s32 %s14, 2
        // Predicated region
        $region49: #{timm_model_forward.41} parent=47 // pred_check
          %p325 = pneg %p153
        $region50: #{timm_model_forward.41} parent=47 // pred_check_branch
          %327 = sbr.rel (%p325) target = $region52
        $region51: #{timm_model_forward.41} parent=47 // pred_region
          %s328 = sand.u32 %s138, 1
          %s329 = scalar_lea.sflag [#allocation3], %s328
          %s330 = sand.u32 %s138, 1
          %s331 = scalar_lea.vmem [#allocation2], %s330
          %333 = dma.done %s329, 16
        $region52: #{timm_model_forward.41} parent=47 // pred_fallthru
          _
      $region48: #{timm_model_forward.41} parent=5 // pred_fallthru
        _
    $region6: #{timm_model_forward.41} parent=1 // loop_footer
      %s18 = sadd.s32 1, %s14
    $region7: #{timm_model_forward.41} parent=1 // loop_footer_branch
      %13 = sbr.rel target = $region3
    $region8: #{timm_model_forward.41} parent=1 // loop_exit
      _
    %334 = vsyncpa [#allocation3], 1
    %s335 = scalar_lea.sflag [#allocation3], 1
    %336 = vsyncpa %s335, 1

</llo_original>
